<compile_context>
chip_gen: v7x
topology: tpu7x:2x2x1
jax: 0.10.0
libtpu: 0.0.40
codegen_flags: <defaults>
</compile_context>

<pallas_src>
from functools import partial

import jax
import jax.numpy as jnp
from jax.experimental import pallas as pl
from jax.experimental.pallas import tpu as pltpu


def _round_up(x, m):
    return (x + m - 1) // m * m


def block_kernel(x_ref, wslab_ref, w1_ref, w2_ref, b1_ref, b2_ref, out_ref,
                 *, C, K, HID, WP, LOUT, B):
    """B images per grid step.

    x_ref    : (B, C, LIN)      zero-padded images, channels on sublanes,
                                flattened padded pixels (h * WP + w) on lanes.
    wslab_ref: (K*K, C, LOUT)   BN-folded depthwise tap weights, pre-broadcast
                                across lanes (tap-major).
    w1_ref   : (HID, C) bf16    pwconv1 weight.
    w2_ref   : (C, HID) bf16    pwconv2 weight with gamma folded in.
    b1_ref   : (HID, 1) f32     pwconv1 bias with the depthwise bias folded in.
    b2_ref   : (C, 1)   f32     pwconv2 bias * gamma.
    out_ref  : (B, C, LOUT)     lane L = h * WP + w (w < W valid, rest junk).
    """
    LIN = x_ref.shape[-1]
    P = (K - 1) // 2

    w1 = w1_ref[...]                     # (HID, C)  bf16
    w2 = w2_ref[...]                     # (C, HID)  bf16
    b1 = b1_ref[...]                     # (HID, 1)  f32
    b2 = b2_ref[...]                     # (C, 1)    f32

    for b in range(B):                   # static unrolled, B is small
        x = x_ref[b]                     # (C, LIN)

        # ---- depthwise KxK conv (BN folded), roll-based lane shifts ---------
        # output lane L = h*WP + w reads input lane L + kh*WP + kw.
        acc = None
        sc = None
        for kh in range(K):
            if kh == 0:
                xh = x[:, :LOUT]
            else:
                # xh[:, L] = x[:, L + kh*WP]
                xh = pltpu.roll(x, shift=LIN - kh * WP, axis=1)[:, :LOUT]
            for kw in range(K):
                xs = xh if kw == 0 else pltpu.roll(xh, shift=LOUT - kw, axis=1)
                if kh == P and kw == P:
                    sc = xs              # centre tap == residual shortcut
                wt = wslab_ref[kh * K + kw]          # (C, LOUT) lane-dense
                t = xs * wt
                acc = t if acc is None else acc + t  # f32 accumulate

        # ---- pointwise MLP: expand -> ReLU -> project (pixels on MXU lanes) -
        # depthwise bias already folded into b1; bf16 operands, f32 accumulate.
        h = jnp.dot(w1, acc.astype(jnp.bfloat16),
                    preferred_element_type=jnp.float32) + b1
        h = jnp.maximum(h, 0.0)
        z = jnp.dot(w2, h.astype(jnp.bfloat16),
                    preferred_element_type=jnp.float32) + b2

        # ---- residual: centre-tap slab reused, no extra roll -----------------
        out_ref[b] = z + sc


def robust_resnet_dw_up_inverted_block(x_nchw, params, *, eps=1e-5,
                                       images_per_step=None):
    """x_nchw: (N, C, H, W) float32. Returns (N, C, H, W)."""
    N, C, H, W = x_nchw.shape
    K = params["w_dw"].shape[0]
    P = (K - 1) // 2
    HID = params["w1"].shape[1]
    Hp, Wp = H + 2 * P, W + 2 * P
    LIN = _round_up(Hp * Wp, 128)          # padded-pixel lanes of the input slab
    LOUT = _round_up(H * Wp, 128)          # output lanes (h*Wp + w), 128-aligned

    # images per grid step: amortize per-step overhead for larger N while
    # keeping >= 2 parallel grid steps (v7x has 2 TensorCores per chip).
    if images_per_step is None:
        B = 1
        if N >= 4:
            B = min(8, N // 2)
            while N % B:
                B -= 1
    else:
        B = images_per_step
    assert N % B == 0, "batch must divide images_per_step"

    x = x_nchw.astype(jnp.float32)

    # ---- fold eval-mode BatchNorm into conv_dw, gamma into pwconv2 -----------
    scale = params["bn_w"][0] / jnp.sqrt(params["bn_var"][0] + eps)   # (C,)
    shift = params["bn_b"][0] - params["bn_mean"][0] * scale          # (C,)
    w_dw_f = params["w_dw"] * scale[None, None, :]                    # (K, K, C)
    b_dw_f = params["b_dw"][0] * scale + shift                        # (C,)
    gamma = params["gamma"][0]                                        # (C,)
    w1_t = params["w1"].T                                             # (HID, C)
    b1 = params["b1"][0] + w1_t @ b_dw_f                              # fold b_dw
    w2_g = params["w2"].T * gamma[:, None]                            # (C, HID)
    b2_g = params["b2"][0] * gamma                                    # (C,)

    # lane-dense pre-broadcast depthwise weight slab: (K*K, C, LOUT) f32 (~2 MB)
    w_slab = jnp.broadcast_to(
        w_dw_f.reshape(K * K, C)[:, :, None], (K * K, C, LOUT)).astype(jnp.float32)

    # matmul weights in bf16 (MXU-native); biases stay f32
    w1_bf = w1_t.astype(jnp.bfloat16)
    w2_bf = w2_g.astype(jnp.bfloat16)
    b1_col = b1.reshape(HID, 1).astype(jnp.float32)
    b2_col = b2_g.reshape(C, 1).astype(jnp.float32)

    # lane-dense input slab: channels on sublanes, flattened padded pixels on lanes
    x_pad = jnp.pad(x, ((0, 0), (0, 0), (P, P), (P, P)))
    x_flat = x_pad.reshape(N, C, Hp * Wp)
    x_flat = jnp.pad(x_flat, ((0, 0), (0, 0), (0, LIN - Hp * Wp)))

    kernel = partial(block_kernel, C=C, K=K, HID=HID, WP=Wp, LOUT=LOUT, B=B)
    c2 = lambda n: (0, 0)
    c3 = lambda n: (0, 0, 0)

    out_flat = pl.pallas_call(
        kernel,
        out_shape=jax.ShapeDtypeStruct((N, C, LOUT), jnp.float32),
        grid_spec=pltpu.PrefetchScalarGridSpec(
            num_scalar_prefetch=0,
            grid=(N // B,),
            in_specs=[
                pl.BlockSpec((B, C, LIN), lambda n: (n, 0, 0)),       # images
                pl.BlockSpec((K * K, C, LOUT), c3),                   # dw weight slab
                pl.BlockSpec((HID, C), c2),                           # pwconv1 weight
                pl.BlockSpec((C, HID), c2),                           # pwconv2*gamma
                pl.BlockSpec((HID, 1), c2),                           # pwconv1 bias'
                pl.BlockSpec((C, 1), c2),                             # pwconv2 bias*g
            ],
            out_specs=pl.BlockSpec((B, C, LOUT), lambda n: (n, 0, 0)),
        ),
        compiler_params=pltpu.CompilerParams(
            dimension_semantics=("parallel",)),
    )(x_flat, w_slab, w1_bf, w2_bf, b1_col, b2_col)

    # decode: lane L = h*Wp + w, keep w < W
    out = out_flat[:, :, :H * Wp].reshape(N, C, H, Wp)[:, :, :, :W]
    return out


def reference_forward(x_nchw, params, *, eps=1e-5):
    """Pure-JAX reference matching the PyTorch forward (eval-mode BN)."""
    C = x_nchw.shape[1]
    hi = jax.lax.Precision.HIGHEST
    w_oihw = jnp.transpose(params["w_dw"], (2, 0, 1))[:, None, :, :]  # (C,1,K,K)
    K = w_oihw.shape[-1]
    P = (K - 1) // 2
    y = jax.lax.conv_general_dilated(
        x_nchw, w_oihw, window_strides=(1, 1), padding=((P, P), (P, P)),
        dimension_numbers=("NCHW", "OIHW", "NCHW"), feature_group_count=C,
        precision=hi)
    y = y + params["b_dw"].reshape(1, -1, 1, 1)
    mean = params["bn_mean"].reshape(1, -1, 1, 1)
    var = params["bn_var"].reshape(1, -1, 1, 1)
    y = (y - mean) / jnp.sqrt(var + eps)
    y = y * params["bn_w"].reshape(1, -1, 1, 1) + params["bn_b"].reshape(1, -1, 1, 1)
    h = jnp.einsum("nchw,cd->ndhw", y, params["w1"],
                   precision=hi) + params["b1"].reshape(1, -1, 1, 1)
    h = jnp.maximum(h, 0.0)
    z = jnp.einsum("ndhw,dc->nchw", h, params["w2"],
                   precision=hi) + params["b2"].reshape(1, -1, 1, 1)
    z = z * params["gamma"].reshape(1, -1, 1, 1)
    return z + x_nchw


def make_params(key, *, C, K, mlp_ratio=4.0, layer_scale_init_value=1e-6):
    hidden = int(mlp_ratio * C)
    ks = jax.random.split(key, 11)
    f32 = jnp.float32
    return {
        "w_dw":   (jax.random.normal(ks[0], (K, K, C), f32) * 0.05),
        "b_dw":   (jax.random.normal(ks[1], (1, C), f32) * 0.05),
        "bn_w":   (1.0 + 0.1 * jax.random.normal(ks[2], (1, C), f32)),
        "bn_b":   (0.1 * jax.random.normal(ks[3], (1, C), f32)),
        "bn_mean": (0.1 * jax.random.normal(ks[4], (1, C), f32)),
        "bn_var": (0.5 + 0.5 * jnp.abs(jax.random.normal(ks[5], (1, C), f32))),
        "w1":     (jax.random.normal(ks[6], (C, hidden), f32) * 0.1),
        "b1":     (jax.random.normal(ks[7], (1, hidden), f32) * 0.05),
        "w2":     (jax.random.normal(ks[8], (hidden, C), f32) * 0.1),
        "b2":     (jax.random.normal(ks[9], (1, C), f32) * 0.05),
        "gamma":  jnp.full((1, C), layer_scale_init_value, f32),
    }


if __name__ == "__main__":
    # Module config: indim == dim == 8, kernel_size=11, padding=5, mlp_ratio=4.
    N, C, H, W = 2, 8, 16, 16
    K = 11

    key = jax.random.PRNGKey(0)
    k_param, k_x = jax.random.split(key)
    # use a non-trivial layer-scale so the MLP branch is actually exercised
    params = make_params(k_param, C=C, K=K, layer_scale_init_value=0.2)
    x = jax.random.normal(k_x, (N, C, H, W), jnp.float32)

    out = jax.block_until_ready(robust_resnet_dw_up_inverted_block(x, params))
    ref = jax.block_until_ready(reference_forward(x, params))

    assert out.shape == (N, C, H, W)
    max_diff = float(jnp.max(jnp.abs(out - ref)))
    assert jnp.allclose(out, ref, atol=1e-3, rtol=1e-3), f"max abs diff {max_diff}"

    print("KERNEL_OK")
</pallas_src>

<mosaic_0001>
module attributes {stable_mosaic.version = 11 : i64} {
  func.func @block_kernel(%arg0: i32, %arg1: memref<1x8x768xf32, #tpu.memory_space<vmem>>, %arg2: memref<121x8x512xf32, #tpu.memory_space<vmem>>, %arg3: memref<32x8xbf16, #tpu.memory_space<vmem>>, %arg4: memref<8x32xbf16, #tpu.memory_space<vmem>>, %arg5: memref<32x1xf32, #tpu.memory_space<vmem>>, %arg6: memref<8x1xf32, #tpu.memory_space<vmem>>, %arg7: memref<1x8x512xf32, #tpu.memory_space<vmem>>) attributes {dimension_semantics = [#tpu.dimension_semantics<parallel>], iteration_bounds = array<i64: 2>, scalar_prefetch = 0 : i64, scratch_operands = 0 : i64, tpu.core_type = #tpu.core_type<tc>, window_params = [{transform_indices = @transform_0, window_bounds = array<i64: 1, 8, 768>}, {pipeline_mode = #tpu.pipeline_mode<synchronous>, transform_indices = @transform_1, window_bounds = array<i64: 121, 8, 512>}, {pipeline_mode = #tpu.pipeline_mode<synchronous>, transform_indices = @transform_2, window_bounds = array<i64: 32, 8>}, {pipeline_mode = #tpu.pipeline_mode<synchronous>, transform_indices = @transform_3, window_bounds = array<i64: 8, 32>}, {pipeline_mode = #tpu.pipeline_mode<synchronous>, transform_indices = @transform_4, window_bounds = array<i64: 32, 1>}, {pipeline_mode = #tpu.pipeline_mode<synchronous>, transform_indices = @transform_5, window_bounds = array<i64: 8, 1>}, {transform_indices = @transform_6, window_bounds = array<i64: 1, 8, 512>}]} {
    %c0 = arith.constant 0 : index
    %c0_0 = arith.constant 0 : index
    %0 = vector.load %arg3[%c0, %c0_0] : memref<32x8xbf16, #tpu.memory_space<vmem>>, vector<32x8xbf16>
    %c0_1 = arith.constant 0 : index
    %c0_2 = arith.constant 0 : index
    %1 = vector.load %arg4[%c0_1, %c0_2] : memref<8x32xbf16, #tpu.memory_space<vmem>>, vector<8x32xbf16>
    %c0_3 = arith.constant 0 : index
    %c0_4 = arith.constant 0 : index
    %2 = vector.load %arg5[%c0_3, %c0_4] : memref<32x1xf32, #tpu.memory_space<vmem>>, vector<32x1xf32>
    %c0_5 = arith.constant 0 : index
    %c0_6 = arith.constant 0 : index
    %3 = vector.load %arg6[%c0_5, %c0_6] : memref<8x1xf32, #tpu.memory_space<vmem>>, vector<8x1xf32>
    %c0_7 = arith.constant 0 : index
    %c0_8 = arith.constant 0 : index
    %c0_9 = arith.constant 0 : index
    %4 = vector.load %arg1[%c0_7, %c0_8, %c0_9] : memref<1x8x768xf32, #tpu.memory_space<vmem>>, vector<1x8x768xf32>
    %5 = vector.shape_cast %4 : vector<1x8x768xf32> to vector<8x768xf32>
    %6 = vector.extract_strided_slice %5 {offsets = [0, 0], sizes = [8, 512], strides = [1, 1]} : vector<8x768xf32> to vector<8x512xf32>
    %c0_10 = arith.constant 0 : index
    %c0_11 = arith.constant 0 : index
    %c0_12 = arith.constant 0 : index
    %7 = vector.load %arg2[%c0_10, %c0_11, %c0_12] : memref<121x8x512xf32, #tpu.memory_space<vmem>>, vector<1x8x512xf32>
    %8 = vector.shape_cast %7 : vector<1x8x512xf32> to vector<8x512xf32>
    %9 = arith.mulf %6, %8 : vector<8x512xf32>
    %c511_i32 = arith.constant 511 : i32
    %10 = tpu.dynamic_rotate %6 by %c511_i32 dim 1 : vector<8x512xf32>, i32 -> vector<8x512xf32>
    %c1 = arith.constant 1 : index
    %c0_13 = arith.constant 0 : index
    %c0_14 = arith.constant 0 : index
    %11 = vector.load %arg2[%c1, %c0_13, %c0_14] : memref<121x8x512xf32, #tpu.memory_space<vmem>>, vector<1x8x512xf32>
    %12 = vector.shape_cast %11 : vector<1x8x512xf32> to vector<8x512xf32>
    %13 = arith.mulf %10, %12 : vector<8x512xf32>
    %14 = arith.addf %9, %13 : vector<8x512xf32>
    %c510_i32 = arith.constant 510 : i32
    %15 = tpu.dynamic_rotate %6 by %c510_i32 dim 1 : vector<8x512xf32>, i32 -> vector<8x512xf32>
    %c2 = arith.constant 2 : index
    %c0_15 = arith.constant 0 : index
    %c0_16 = arith.constant 0 : index
    %16 = vector.load %arg2[%c2, %c0_15, %c0_16] : memref<121x8x512xf32, #tpu.memory_space<vmem>>, vector<1x8x512xf32>
    %17 = vector.shape_cast %16 : vector<1x8x512xf32> to vector<8x512xf32>
    %18 = arith.mulf %15, %17 : vector<8x512xf32>
    %19 = arith.addf %14, %18 : vector<8x512xf32>
    %c509_i32 = arith.constant 509 : i32
    %20 = tpu.dynamic_rotate %6 by %c509_i32 dim 1 : vector<8x512xf32>, i32 -> vector<8x512xf32>
    %c3 = arith.constant 3 : index
    %c0_17 = arith.constant 0 : index
    %c0_18 = arith.constant 0 : index
    %21 = vector.load %arg2[%c3, %c0_17, %c0_18] : memref<121x8x512xf32, #tpu.memory_space<vmem>>, vector<1x8x512xf32>
    %22 = vector.shape_cast %21 : vector<1x8x512xf32> to vector<8x512xf32>
    %23 = arith.mulf %20, %22 : vector<8x512xf32>
    %24 = arith.addf %19, %23 : vector<8x512xf32>
    %c508_i32 = arith.constant 508 : i32
    %25 = tpu.dynamic_rotate %6 by %c508_i32 dim 1 : vector<8x512xf32>, i32 -> vector<8x512xf32>
    %c4 = arith.constant 4 : index
    %c0_19 = arith.constant 0 : index
    %c0_20 = arith.constant 0 : index
    %26 = vector.load %arg2[%c4, %c0_19, %c0_20] : memref<121x8x512xf32, #tpu.memory_space<vmem>>, vector<1x8x512xf32>
    %27 = vector.shape_cast %26 : vector<1x8x512xf32> to vector<8x512xf32>
    %28 = arith.mulf %25, %27 : vector<8x512xf32>
    %29 = arith.addf %24, %28 : vector<8x512xf32>
    %c507_i32 = arith.constant 507 : i32
    %30 = tpu.dynamic_rotate %6 by %c507_i32 dim 1 : vector<8x512xf32>, i32 -> vector<8x512xf32>
    %c5 = arith.constant 5 : index
    %c0_21 = arith.constant 0 : index
    %c0_22 = arith.constant 0 : index
    %31 = vector.load %arg2[%c5, %c0_21, %c0_22] : memref<121x8x512xf32, #tpu.memory_space<vmem>>, vector<1x8x512xf32>
    %32 = vector.shape_cast %31 : vector<1x8x512xf32> to vector<8x512xf32>
    %33 = arith.mulf %30, %32 : vector<8x512xf32>
    %34 = arith.addf %29, %33 : vector<8x512xf32>
    %c506_i32 = arith.constant 506 : i32
    %35 = tpu.dynamic_rotate %6 by %c506_i32 dim 1 : vector<8x512xf32>, i32 -> vector<8x512xf32>
    %c6 = arith.constant 6 : index
    %c0_23 = arith.constant 0 : index
    %c0_24 = arith.constant 0 : index
    %36 = vector.load %arg2[%c6, %c0_23, %c0_24] : memref<121x8x512xf32, #tpu.memory_space<vmem>>, vector<1x8x512xf32>
    %37 = vector.shape_cast %36 : vector<1x8x512xf32> to vector<8x512xf32>
    %38 = arith.mulf %35, %37 : vector<8x512xf32>
    %39 = arith.addf %34, %38 : vector<8x512xf32>
    %c505_i32 = arith.constant 505 : i32
    %40 = tpu.dynamic_rotate %6 by %c505_i32 dim 1 : vector<8x512xf32>, i32 -> vector<8x512xf32>
    %c7 = arith.constant 7 : index
    %c0_25 = arith.constant 0 : index
    %c0_26 = arith.constant 0 : index
    %41 = vector.load %arg2[%c7, %c0_25, %c0_26] : memref<121x8x512xf32, #tpu.memory_space<vmem>>, vector<1x8x512xf32>
    %42 = vector.shape_cast %41 : vector<1x8x512xf32> to vector<8x512xf32>
    %43 = arith.mulf %40, %42 : vector<8x512xf32>
    %44 = arith.addf %39, %43 : vector<8x512xf32>
    %c504_i32 = arith.constant 504 : i32
    %45 = tpu.dynamic_rotate %6 by %c504_i32 dim 1 : vector<8x512xf32>, i32 -> vector<8x512xf32>
    %c8 = arith.constant 8 : index
    %c0_27 = arith.constant 0 : index
    %c0_28 = arith.constant 0 : index
    %46 = vector.load %arg2[%c8, %c0_27, %c0_28] : memref<121x8x512xf32, #tpu.memory_space<vmem>>, vector<1x8x512xf32>
    %47 = vector.shape_cast %46 : vector<1x8x512xf32> to vector<8x512xf32>
    %48 = arith.mulf %45, %47 : vector<8x512xf32>
    %49 = arith.addf %44, %48 : vector<8x512xf32>
    %c503_i32 = arith.constant 503 : i32
    %50 = tpu.dynamic_rotate %6 by %c503_i32 dim 1 : vector<8x512xf32>, i32 -> vector<8x512xf32>
    %c9 = arith.constant 9 : index
    %c0_29 = arith.constant 0 : index
    %c0_30 = arith.constant 0 : index
    %51 = vector.load %arg2[%c9, %c0_29, %c0_30] : memref<121x8x512xf32, #tpu.memory_space<vmem>>, vector<1x8x512xf32>
    %52 = vector.shape_cast %51 : vector<1x8x512xf32> to vector<8x512xf32>
    %53 = arith.mulf %50, %52 : vector<8x512xf32>
    %54 = arith.addf %49, %53 : vector<8x512xf32>
    %c502_i32 = arith.constant 502 : i32
    %55 = tpu.dynamic_rotate %6 by %c502_i32 dim 1 : vector<8x512xf32>, i32 -> vector<8x512xf32>
    %c10 = arith.constant 10 : index
    %c0_31 = arith.constant 0 : index
    %c0_32 = arith.constant 0 : index
    %56 = vector.load %arg2[%c10, %c0_31, %c0_32] : memref<121x8x512xf32, #tpu.memory_space<vmem>>, vector<1x8x512xf32>
    %57 = vector.shape_cast %56 : vector<1x8x512xf32> to vector<8x512xf32>
    %58 = arith.mulf %55, %57 : vector<8x512xf32>
    %59 = arith.addf %54, %58 : vector<8x512xf32>
    %c742_i32 = arith.constant 742 : i32
    %60 = tpu.dynamic_rotate %5 by %c742_i32 dim 1 : vector<8x768xf32>, i32 -> vector<8x768xf32>
    %61 = vector.extract_strided_slice %60 {offsets = [0, 0], sizes = [8, 512], strides = [1, 1]} : vector<8x768xf32> to vector<8x512xf32>
    %c11 = arith.constant 11 : index
    %c0_33 = arith.constant 0 : index
    %c0_34 = arith.constant 0 : index
    %62 = vector.load %arg2[%c11, %c0_33, %c0_34] : memref<121x8x512xf32, #tpu.memory_space<vmem>>, vector<1x8x512xf32>
    %63 = vector.shape_cast %62 : vector<1x8x512xf32> to vector<8x512xf32>
    %64 = arith.mulf %61, %63 : vector<8x512xf32>
    %65 = arith.addf %59, %64 : vector<8x512xf32>
    %c511_i32_35 = arith.constant 511 : i32
    %66 = tpu.dynamic_rotate %61 by %c511_i32_35 dim 1 : vector<8x512xf32>, i32 -> vector<8x512xf32>
    %c12 = arith.constant 12 : index
    %c0_36 = arith.constant 0 : index
    %c0_37 = arith.constant 0 : index
    %67 = vector.load %arg2[%c12, %c0_36, %c0_37] : memref<121x8x512xf32, #tpu.memory_space<vmem>>, vector<1x8x512xf32>
    %68 = vector.shape_cast %67 : vector<1x8x512xf32> to vector<8x512xf32>
    %69 = arith.mulf %66, %68 : vector<8x512xf32>
    %70 = arith.addf %65, %69 : vector<8x512xf32>
    %c510_i32_38 = arith.constant 510 : i32
    %71 = tpu.dynamic_rotate %61 by %c510_i32_38 dim 1 : vector<8x512xf32>, i32 -> vector<8x512xf32>
    %c13 = arith.constant 13 : index
    %c0_39 = arith.constant 0 : index
    %c0_40 = arith.constant 0 : index
    %72 = vector.load %arg2[%c13, %c0_39, %c0_40] : memref<121x8x512xf32, #tpu.memory_space<vmem>>, vector<1x8x512xf32>
    %73 = vector.shape_cast %72 : vector<1x8x512xf32> to vector<8x512xf32>
    %74 = arith.mulf %71, %73 : vector<8x512xf32>
    %75 = arith.addf %70, %74 : vector<8x512xf32>
    %c509_i32_41 = arith.constant 509 : i32
    %76 = tpu.dynamic_rotate %61 by %c509_i32_41 dim 1 : vector<8x512xf32>, i32 -> vector<8x512xf32>
    %c14 = arith.constant 14 : index
    %c0_42 = arith.constant 0 : index
    %c0_43 = arith.constant 0 : index
    %77 = vector.load %arg2[%c14, %c0_42, %c0_43] : memref<121x8x512xf32, #tpu.memory_space<vmem>>, vector<1x8x512xf32>
    %78 = vector.shape_cast %77 : vector<1x8x512xf32> to vector<8x512xf32>
    %79 = arith.mulf %76, %78 : vector<8x512xf32>
    %80 = arith.addf %75, %79 : vector<8x512xf32>
    %c508_i32_44 = arith.constant 508 : i32
    %81 = tpu.dynamic_rotate %61 by %c508_i32_44 dim 1 : vector<8x512xf32>, i32 -> vector<8x512xf32>
    %c15 = arith.constant 15 : index
    %c0_45 = arith.constant 0 : index
    %c0_46 = arith.constant 0 : index
    %82 = vector.load %arg2[%c15, %c0_45, %c0_46] : memref<121x8x512xf32, #tpu.memory_space<vmem>>, vector<1x8x512xf32>
    %83 = vector.shape_cast %82 : vector<1x8x512xf32> to vector<8x512xf32>
    %84 = arith.mulf %81, %83 : vector<8x512xf32>
    %85 = arith.addf %80, %84 : vector<8x512xf32>
    %c507_i32_47 = arith.constant 507 : i32
    %86 = tpu.dynamic_rotate %61 by %c507_i32_47 dim 1 : vector<8x512xf32>, i32 -> vector<8x512xf32>
    %c16 = arith.constant 16 : index
    %c0_48 = arith.constant 0 : index
    %c0_49 = arith.constant 0 : index
    %87 = vector.load %arg2[%c16, %c0_48, %c0_49] : memref<121x8x512xf32, #tpu.memory_space<vmem>>, vector<1x8x512xf32>
    %88 = vector.shape_cast %87 : vector<1x8x512xf32> to vector<8x512xf32>
    %89 = arith.mulf %86, %88 : vector<8x512xf32>
    %90 = arith.addf %85, %89 : vector<8x512xf32>
    %c506_i32_50 = arith.constant 506 : i32
    %91 = tpu.dynamic_rotate %61 by %c506_i32_50 dim 1 : vector<8x512xf32>, i32 -> vector<8x512xf32>
    %c17 = arith.constant 17 : index
    %c0_51 = arith.constant 0 : index
    %c0_52 = arith.constant 0 : index
    %92 = vector.load %arg2[%c17, %c0_51, %c0_52] : memref<121x8x512xf32, #tpu.memory_space<vmem>>, vector<1x8x512xf32>
    %93 = vector.shape_cast %92 : vector<1x8x512xf32> to vector<8x512xf32>
    %94 = arith.mulf %91, %93 : vector<8x512xf32>
    %95 = arith.addf %90, %94 : vector<8x512xf32>
    %c505_i32_53 = arith.constant 505 : i32
    %96 = tpu.dynamic_rotate %61 by %c505_i32_53 dim 1 : vector<8x512xf32>, i32 -> vector<8x512xf32>
    %c18 = arith.constant 18 : index
    %c0_54 = arith.constant 0 : index
    %c0_55 = arith.constant 0 : index
    %97 = vector.load %arg2[%c18, %c0_54, %c0_55] : memref<121x8x512xf32, #tpu.memory_space<vmem>>, vector<1x8x512xf32>
    %98 = vector.shape_cast %97 : vector<1x8x512xf32> to vector<8x512xf32>
    %99 = arith.mulf %96, %98 : vector<8x512xf32>
    %100 = arith.addf %95, %99 : vector<8x512xf32>
    %c504_i32_56 = arith.constant 504 : i32
    %101 = tpu.dynamic_rotate %61 by %c504_i32_56 dim 1 : vector<8x512xf32>, i32 -> vector<8x512xf32>
    %c19 = arith.constant 19 : index
    %c0_57 = arith.constant 0 : index
    %c0_58 = arith.constant 0 : index
    %102 = vector.load %arg2[%c19, %c0_57, %c0_58] : memref<121x8x512xf32, #tpu.memory_space<vmem>>, vector<1x8x512xf32>
    %103 = vector.shape_cast %102 : vector<1x8x512xf32> to vector<8x512xf32>
    %104 = arith.mulf %101, %103 : vector<8x512xf32>
    %105 = arith.addf %100, %104 : vector<8x512xf32>
    %c503_i32_59 = arith.constant 503 : i32
    %106 = tpu.dynamic_rotate %61 by %c503_i32_59 dim 1 : vector<8x512xf32>, i32 -> vector<8x512xf32>
    %c20 = arith.constant 20 : index
    %c0_60 = arith.constant 0 : index
    %c0_61 = arith.constant 0 : index
    %107 = vector.load %arg2[%c20, %c0_60, %c0_61] : memref<121x8x512xf32, #tpu.memory_space<vmem>>, vector<1x8x512xf32>
    %108 = vector.shape_cast %107 : vector<1x8x512xf32> to vector<8x512xf32>
    %109 = arith.mulf %106, %108 : vector<8x512xf32>
    %110 = arith.addf %105, %109 : vector<8x512xf32>
    %c502_i32_62 = arith.constant 502 : i32
    %111 = tpu.dynamic_rotate %61 by %c502_i32_62 dim 1 : vector<8x512xf32>, i32 -> vector<8x512xf32>
    %c21 = arith.constant 21 : index
    %c0_63 = arith.constant 0 : index
    %c0_64 = arith.constant 0 : index
    %112 = vector.load %arg2[%c21, %c0_63, %c0_64] : memref<121x8x512xf32, #tpu.memory_space<vmem>>, vector<1x8x512xf32>
    %113 = vector.shape_cast %112 : vector<1x8x512xf32> to vector<8x512xf32>
    %114 = arith.mulf %111, %113 : vector<8x512xf32>
    %115 = arith.addf %110, %114 : vector<8x512xf32>
    %c716_i32 = arith.constant 716 : i32
    %116 = tpu.dynamic_rotate %5 by %c716_i32 dim 1 : vector<8x768xf32>, i32 -> vector<8x768xf32>
    %117 = vector.extract_strided_slice %116 {offsets = [0, 0], sizes = [8, 512], strides = [1, 1]} : vector<8x768xf32> to vector<8x512xf32>
    %c22 = arith.constant 22 : index
    %c0_65 = arith.constant 0 : index
    %c0_66 = arith.constant 0 : index
    %118 = vector.load %arg2[%c22, %c0_65, %c0_66] : memref<121x8x512xf32, #tpu.memory_space<vmem>>, vector<1x8x512xf32>
    %119 = vector.shape_cast %118 : vector<1x8x512xf32> to vector<8x512xf32>
    %120 = arith.mulf %117, %119 : vector<8x512xf32>
    %121 = arith.addf %115, %120 : vector<8x512xf32>
    %c511_i32_67 = arith.constant 511 : i32
    %122 = tpu.dynamic_rotate %117 by %c511_i32_67 dim 1 : vector<8x512xf32>, i32 -> vector<8x512xf32>
    %c23 = arith.constant 23 : index
    %c0_68 = arith.constant 0 : index
    %c0_69 = arith.constant 0 : index
    %123 = vector.load %arg2[%c23, %c0_68, %c0_69] : memref<121x8x512xf32, #tpu.memory_space<vmem>>, vector<1x8x512xf32>
    %124 = vector.shape_cast %123 : vector<1x8x512xf32> to vector<8x512xf32>
    %125 = arith.mulf %122, %124 : vector<8x512xf32>
    %126 = arith.addf %121, %125 : vector<8x512xf32>
    %c510_i32_70 = arith.constant 510 : i32
    %127 = tpu.dynamic_rotate %117 by %c510_i32_70 dim 1 : vector<8x512xf32>, i32 -> vector<8x512xf32>
    %c24 = arith.constant 24 : index
    %c0_71 = arith.constant 0 : index
    %c0_72 = arith.constant 0 : index
    %128 = vector.load %arg2[%c24, %c0_71, %c0_72] : memref<121x8x512xf32, #tpu.memory_space<vmem>>, vector<1x8x512xf32>
    %129 = vector.shape_cast %128 : vector<1x8x512xf32> to vector<8x512xf32>
    %130 = arith.mulf %127, %129 : vector<8x512xf32>
    %131 = arith.addf %126, %130 : vector<8x512xf32>
    %c509_i32_73 = arith.constant 509 : i32
    %132 = tpu.dynamic_rotate %117 by %c509_i32_73 dim 1 : vector<8x512xf32>, i32 -> vector<8x512xf32>
    %c25 = arith.constant 25 : index
    %c0_74 = arith.constant 0 : index
    %c0_75 = arith.constant 0 : index
    %133 = vector.load %arg2[%c25, %c0_74, %c0_75] : memref<121x8x512xf32, #tpu.memory_space<vmem>>, vector<1x8x512xf32>
    %134 = vector.shape_cast %133 : vector<1x8x512xf32> to vector<8x512xf32>
    %135 = arith.mulf %132, %134 : vector<8x512xf32>
    %136 = arith.addf %131, %135 : vector<8x512xf32>
    %c508_i32_76 = arith.constant 508 : i32
    %137 = tpu.dynamic_rotate %117 by %c508_i32_76 dim 1 : vector<8x512xf32>, i32 -> vector<8x512xf32>
    %c26 = arith.constant 26 : index
    %c0_77 = arith.constant 0 : index
    %c0_78 = arith.constant 0 : index
    %138 = vector.load %arg2[%c26, %c0_77, %c0_78] : memref<121x8x512xf32, #tpu.memory_space<vmem>>, vector<1x8x512xf32>
    %139 = vector.shape_cast %138 : vector<1x8x512xf32> to vector<8x512xf32>
    %140 = arith.mulf %137, %139 : vector<8x512xf32>
    %141 = arith.addf %136, %140 : vector<8x512xf32>
    %c507_i32_79 = arith.constant 507 : i32
    %142 = tpu.dynamic_rotate %117 by %c507_i32_79 dim 1 : vector<8x512xf32>, i32 -> vector<8x512xf32>
    %c27 = arith.constant 27 : index
    %c0_80 = arith.constant 0 : index
    %c0_81 = arith.constant 0 : index
    %143 = vector.load %arg2[%c27, %c0_80, %c0_81] : memref<121x8x512xf32, #tpu.memory_space<vmem>>, vector<1x8x512xf32>
    %144 = vector.shape_cast %143 : vector<1x8x512xf32> to vector<8x512xf32>
    %145 = arith.mulf %142, %144 : vector<8x512xf32>
    %146 = arith.addf %141, %145 : vector<8x512xf32>
    %c506_i32_82 = arith.constant 506 : i32
    %147 = tpu.dynamic_rotate %117 by %c506_i32_82 dim 1 : vector<8x512xf32>, i32 -> vector<8x512xf32>
    %c28 = arith.constant 28 : index
    %c0_83 = arith.constant 0 : index
    %c0_84 = arith.constant 0 : index
    %148 = vector.load %arg2[%c28, %c0_83, %c0_84] : memref<121x8x512xf32, #tpu.memory_space<vmem>>, vector<1x8x512xf32>
    %149 = vector.shape_cast %148 : vector<1x8x512xf32> to vector<8x512xf32>
    %150 = arith.mulf %147, %149 : vector<8x512xf32>
    %151 = arith.addf %146, %150 : vector<8x512xf32>
    %c505_i32_85 = arith.constant 505 : i32
    %152 = tpu.dynamic_rotate %117 by %c505_i32_85 dim 1 : vector<8x512xf32>, i32 -> vector<8x512xf32>
    %c29 = arith.constant 29 : index
    %c0_86 = arith.constant 0 : index
    %c0_87 = arith.constant 0 : index
    %153 = vector.load %arg2[%c29, %c0_86, %c0_87] : memref<121x8x512xf32, #tpu.memory_space<vmem>>, vector<1x8x512xf32>
    %154 = vector.shape_cast %153 : vector<1x8x512xf32> to vector<8x512xf32>
    %155 = arith.mulf %152, %154 : vector<8x512xf32>
    %156 = arith.addf %151, %155 : vector<8x512xf32>
    %c504_i32_88 = arith.constant 504 : i32
    %157 = tpu.dynamic_rotate %117 by %c504_i32_88 dim 1 : vector<8x512xf32>, i32 -> vector<8x512xf32>
    %c30 = arith.constant 30 : index
    %c0_89 = arith.constant 0 : index
    %c0_90 = arith.constant 0 : index
    %158 = vector.load %arg2[%c30, %c0_89, %c0_90] : memref<121x8x512xf32, #tpu.memory_space<vmem>>, vector<1x8x512xf32>
    %159 = vector.shape_cast %158 : vector<1x8x512xf32> to vector<8x512xf32>
    %160 = arith.mulf %157, %159 : vector<8x512xf32>
    %161 = arith.addf %156, %160 : vector<8x512xf32>
    %c503_i32_91 = arith.constant 503 : i32
    %162 = tpu.dynamic_rotate %117 by %c503_i32_91 dim 1 : vector<8x512xf32>, i32 -> vector<8x512xf32>
    %c31 = arith.constant 31 : index
    %c0_92 = arith.constant 0 : index
    %c0_93 = arith.constant 0 : index
    %163 = vector.load %arg2[%c31, %c0_92, %c0_93] : memref<121x8x512xf32, #tpu.memory_space<vmem>>, vector<1x8x512xf32>
    %164 = vector.shape_cast %163 : vector<1x8x512xf32> to vector<8x512xf32>
    %165 = arith.mulf %162, %164 : vector<8x512xf32>
    %166 = arith.addf %161, %165 : vector<8x512xf32>
    %c502_i32_94 = arith.constant 502 : i32
    %167 = tpu.dynamic_rotate %117 by %c502_i32_94 dim 1 : vector<8x512xf32>, i32 -> vector<8x512xf32>
    %c32 = arith.constant 32 : index
    %c0_95 = arith.constant 0 : index
    %c0_96 = arith.constant 0 : index
    %168 = vector.load %arg2[%c32, %c0_95, %c0_96] : memref<121x8x512xf32, #tpu.memory_space<vmem>>, vector<1x8x512xf32>
    %169 = vector.shape_cast %168 : vector<1x8x512xf32> to vector<8x512xf32>
    %170 = arith.mulf %167, %169 : vector<8x512xf32>
    %171 = arith.addf %166, %170 : vector<8x512xf32>
    %c690_i32 = arith.constant 690 : i32
    %172 = tpu.dynamic_rotate %5 by %c690_i32 dim 1 : vector<8x768xf32>, i32 -> vector<8x768xf32>
    %173 = vector.extract_strided_slice %172 {offsets = [0, 0], sizes = [8, 512], strides = [1, 1]} : vector<8x768xf32> to vector<8x512xf32>
    %c33 = arith.constant 33 : index
    %c0_97 = arith.constant 0 : index
    %c0_98 = arith.constant 0 : index
    %174 = vector.load %arg2[%c33, %c0_97, %c0_98] : memref<121x8x512xf32, #tpu.memory_space<vmem>>, vector<1x8x512xf32>
    %175 = vector.shape_cast %174 : vector<1x8x512xf32> to vector<8x512xf32>
    %176 = arith.mulf %173, %175 : vector<8x512xf32>
    %177 = arith.addf %171, %176 : vector<8x512xf32>
    %c511_i32_99 = arith.constant 511 : i32
    %178 = tpu.dynamic_rotate %173 by %c511_i32_99 dim 1 : vector<8x512xf32>, i32 -> vector<8x512xf32>
    %c34 = arith.constant 34 : index
    %c0_100 = arith.constant 0 : index
    %c0_101 = arith.constant 0 : index
    %179 = vector.load %arg2[%c34, %c0_100, %c0_101] : memref<121x8x512xf32, #tpu.memory_space<vmem>>, vector<1x8x512xf32>
    %180 = vector.shape_cast %179 : vector<1x8x512xf32> to vector<8x512xf32>
    %181 = arith.mulf %178, %180 : vector<8x512xf32>
    %182 = arith.addf %177, %181 : vector<8x512xf32>
    %c510_i32_102 = arith.constant 510 : i32
    %183 = tpu.dynamic_rotate %173 by %c510_i32_102 dim 1 : vector<8x512xf32>, i32 -> vector<8x512xf32>
    %c35 = arith.constant 35 : index
    %c0_103 = arith.constant 0 : index
    %c0_104 = arith.constant 0 : index
    %184 = vector.load %arg2[%c35, %c0_103, %c0_104] : memref<121x8x512xf32, #tpu.memory_space<vmem>>, vector<1x8x512xf32>
    %185 = vector.shape_cast %184 : vector<1x8x512xf32> to vector<8x512xf32>
    %186 = arith.mulf %183, %185 : vector<8x512xf32>
    %187 = arith.addf %182, %186 : vector<8x512xf32>
    %c509_i32_105 = arith.constant 509 : i32
    %188 = tpu.dynamic_rotate %173 by %c509_i32_105 dim 1 : vector<8x512xf32>, i32 -> vector<8x512xf32>
    %c36 = arith.constant 36 : index
    %c0_106 = arith.constant 0 : index
    %c0_107 = arith.constant 0 : index
    %189 = vector.load %arg2[%c36, %c0_106, %c0_107] : memref<121x8x512xf32, #tpu.memory_space<vmem>>, vector<1x8x512xf32>
    %190 = vector.shape_cast %189 : vector<1x8x512xf32> to vector<8x512xf32>
    %191 = arith.mulf %188, %190 : vector<8x512xf32>
    %192 = arith.addf %187, %191 : vector<8x512xf32>
    %c508_i32_108 = arith.constant 508 : i32
    %193 = tpu.dynamic_rotate %173 by %c508_i32_108 dim 1 : vector<8x512xf32>, i32 -> vector<8x512xf32>
    %c37 = arith.constant 37 : index
    %c0_109 = arith.constant 0 : index
    %c0_110 = arith.constant 0 : index
    %194 = vector.load %arg2[%c37, %c0_109, %c0_110] : memref<121x8x512xf32, #tpu.memory_space<vmem>>, vector<1x8x512xf32>
    %195 = vector.shape_cast %194 : vector<1x8x512xf32> to vector<8x512xf32>
    %196 = arith.mulf %193, %195 : vector<8x512xf32>
    %197 = arith.addf %192, %196 : vector<8x512xf32>
    %c507_i32_111 = arith.constant 507 : i32
    %198 = tpu.dynamic_rotate %173 by %c507_i32_111 dim 1 : vector<8x512xf32>, i32 -> vector<8x512xf32>
    %c38 = arith.constant 38 : index
    %c0_112 = arith.constant 0 : index
    %c0_113 = arith.constant 0 : index
    %199 = vector.load %arg2[%c38, %c0_112, %c0_113] : memref<121x8x512xf32, #tpu.memory_space<vmem>>, vector<1x8x512xf32>
    %200 = vector.shape_cast %199 : vector<1x8x512xf32> to vector<8x512xf32>
    %201 = arith.mulf %198, %200 : vector<8x512xf32>
    %202 = arith.addf %197, %201 : vector<8x512xf32>
    %c506_i32_114 = arith.constant 506 : i32
    %203 = tpu.dynamic_rotate %173 by %c506_i32_114 dim 1 : vector<8x512xf32>, i32 -> vector<8x512xf32>
    %c39 = arith.constant 39 : index
    %c0_115 = arith.constant 0 : index
    %c0_116 = arith.constant 0 : index
    %204 = vector.load %arg2[%c39, %c0_115, %c0_116] : memref<121x8x512xf32, #tpu.memory_space<vmem>>, vector<1x8x512xf32>
    %205 = vector.shape_cast %204 : vector<1x8x512xf32> to vector<8x512xf32>
    %206 = arith.mulf %203, %205 : vector<8x512xf32>
    %207 = arith.addf %202, %206 : vector<8x512xf32>
    %c505_i32_117 = arith.constant 505 : i32
    %208 = tpu.dynamic_rotate %173 by %c505_i32_117 dim 1 : vector<8x512xf32>, i32 -> vector<8x512xf32>
    %c40 = arith.constant 40 : index
    %c0_118 = arith.constant 0 : index
    %c0_119 = arith.constant 0 : index
    %209 = vector.load %arg2[%c40, %c0_118, %c0_119] : memref<121x8x512xf32, #tpu.memory_space<vmem>>, vector<1x8x512xf32>
    %210 = vector.shape_cast %209 : vector<1x8x512xf32> to vector<8x512xf32>
    %211 = arith.mulf %208, %210 : vector<8x512xf32>
    %212 = arith.addf %207, %211 : vector<8x512xf32>
    %c504_i32_120 = arith.constant 504 : i32
    %213 = tpu.dynamic_rotate %173 by %c504_i32_120 dim 1 : vector<8x512xf32>, i32 -> vector<8x512xf32>
    %c41 = arith.constant 41 : index
    %c0_121 = arith.constant 0 : index
    %c0_122 = arith.constant 0 : index
    %214 = vector.load %arg2[%c41, %c0_121, %c0_122] : memref<121x8x512xf32, #tpu.memory_space<vmem>>, vector<1x8x512xf32>
    %215 = vector.shape_cast %214 : vector<1x8x512xf32> to vector<8x512xf32>
    %216 = arith.mulf %213, %215 : vector<8x512xf32>
    %217 = arith.addf %212, %216 : vector<8x512xf32>
    %c503_i32_123 = arith.constant 503 : i32
    %218 = tpu.dynamic_rotate %173 by %c503_i32_123 dim 1 : vector<8x512xf32>, i32 -> vector<8x512xf32>
    %c42 = arith.constant 42 : index
    %c0_124 = arith.constant 0 : index
    %c0_125 = arith.constant 0 : index
    %219 = vector.load %arg2[%c42, %c0_124, %c0_125] : memref<121x8x512xf32, #tpu.memory_space<vmem>>, vector<1x8x512xf32>
    %220 = vector.shape_cast %219 : vector<1x8x512xf32> to vector<8x512xf32>
    %221 = arith.mulf %218, %220 : vector<8x512xf32>
    %222 = arith.addf %217, %221 : vector<8x512xf32>
    %c502_i32_126 = arith.constant 502 : i32
    %223 = tpu.dynamic_rotate %173 by %c502_i32_126 dim 1 : vector<8x512xf32>, i32 -> vector<8x512xf32>
    %c43 = arith.constant 43 : index
    %c0_127 = arith.constant 0 : index
    %c0_128 = arith.constant 0 : index
    %224 = vector.load %arg2[%c43, %c0_127, %c0_128] : memref<121x8x512xf32, #tpu.memory_space<vmem>>, vector<1x8x512xf32>
    %225 = vector.shape_cast %224 : vector<1x8x512xf32> to vector<8x512xf32>
    %226 = arith.mulf %223, %225 : vector<8x512xf32>
    %227 = arith.addf %222, %226 : vector<8x512xf32>
    %c664_i32 = arith.constant 664 : i32
    %228 = tpu.dynamic_rotate %5 by %c664_i32 dim 1 : vector<8x768xf32>, i32 -> vector<8x768xf32>
    %229 = vector.extract_strided_slice %228 {offsets = [0, 0], sizes = [8, 512], strides = [1, 1]} : vector<8x768xf32> to vector<8x512xf32>
    %c44 = arith.constant 44 : index
    %c0_129 = arith.constant 0 : index
    %c0_130 = arith.constant 0 : index
    %230 = vector.load %arg2[%c44, %c0_129, %c0_130] : memref<121x8x512xf32, #tpu.memory_space<vmem>>, vector<1x8x512xf32>
    %231 = vector.shape_cast %230 : vector<1x8x512xf32> to vector<8x512xf32>
    %232 = arith.mulf %229, %231 : vector<8x512xf32>
    %233 = arith.addf %227, %232 : vector<8x512xf32>
    %c511_i32_131 = arith.constant 511 : i32
    %234 = tpu.dynamic_rotate %229 by %c511_i32_131 dim 1 : vector<8x512xf32>, i32 -> vector<8x512xf32>
    %c45 = arith.constant 45 : index
    %c0_132 = arith.constant 0 : index
    %c0_133 = arith.constant 0 : index
    %235 = vector.load %arg2[%c45, %c0_132, %c0_133] : memref<121x8x512xf32, #tpu.memory_space<vmem>>, vector<1x8x512xf32>
    %236 = vector.shape_cast %235 : vector<1x8x512xf32> to vector<8x512xf32>
    %237 = arith.mulf %234, %236 : vector<8x512xf32>
    %238 = arith.addf %233, %237 : vector<8x512xf32>
    %c510_i32_134 = arith.constant 510 : i32
    %239 = tpu.dynamic_rotate %229 by %c510_i32_134 dim 1 : vector<8x512xf32>, i32 -> vector<8x512xf32>
    %c46 = arith.constant 46 : index
    %c0_135 = arith.constant 0 : index
    %c0_136 = arith.constant 0 : index
    %240 = vector.load %arg2[%c46, %c0_135, %c0_136] : memref<121x8x512xf32, #tpu.memory_space<vmem>>, vector<1x8x512xf32>
    %241 = vector.shape_cast %240 : vector<1x8x512xf32> to vector<8x512xf32>
    %242 = arith.mulf %239, %241 : vector<8x512xf32>
    %243 = arith.addf %238, %242 : vector<8x512xf32>
    %c509_i32_137 = arith.constant 509 : i32
    %244 = tpu.dynamic_rotate %229 by %c509_i32_137 dim 1 : vector<8x512xf32>, i32 -> vector<8x512xf32>
    %c47 = arith.constant 47 : index
    %c0_138 = arith.constant 0 : index
    %c0_139 = arith.constant 0 : index
    %245 = vector.load %arg2[%c47, %c0_138, %c0_139] : memref<121x8x512xf32, #tpu.memory_space<vmem>>, vector<1x8x512xf32>
    %246 = vector.shape_cast %245 : vector<1x8x512xf32> to vector<8x512xf32>
    %247 = arith.mulf %244, %246 : vector<8x512xf32>
    %248 = arith.addf %243, %247 : vector<8x512xf32>
    %c508_i32_140 = arith.constant 508 : i32
    %249 = tpu.dynamic_rotate %229 by %c508_i32_140 dim 1 : vector<8x512xf32>, i32 -> vector<8x512xf32>
    %c48 = arith.constant 48 : index
    %c0_141 = arith.constant 0 : index
    %c0_142 = arith.constant 0 : index
    %250 = vector.load %arg2[%c48, %c0_141, %c0_142] : memref<121x8x512xf32, #tpu.memory_space<vmem>>, vector<1x8x512xf32>
    %251 = vector.shape_cast %250 : vector<1x8x512xf32> to vector<8x512xf32>
    %252 = arith.mulf %249, %251 : vector<8x512xf32>
    %253 = arith.addf %248, %252 : vector<8x512xf32>
    %c507_i32_143 = arith.constant 507 : i32
    %254 = tpu.dynamic_rotate %229 by %c507_i32_143 dim 1 : vector<8x512xf32>, i32 -> vector<8x512xf32>
    %c49 = arith.constant 49 : index
    %c0_144 = arith.constant 0 : index
    %c0_145 = arith.constant 0 : index
    %255 = vector.load %arg2[%c49, %c0_144, %c0_145] : memref<121x8x512xf32, #tpu.memory_space<vmem>>, vector<1x8x512xf32>
    %256 = vector.shape_cast %255 : vector<1x8x512xf32> to vector<8x512xf32>
    %257 = arith.mulf %254, %256 : vector<8x512xf32>
    %258 = arith.addf %253, %257 : vector<8x512xf32>
    %c506_i32_146 = arith.constant 506 : i32
    %259 = tpu.dynamic_rotate %229 by %c506_i32_146 dim 1 : vector<8x512xf32>, i32 -> vector<8x512xf32>
    %c50 = arith.constant 50 : index
    %c0_147 = arith.constant 0 : index
    %c0_148 = arith.constant 0 : index
    %260 = vector.load %arg2[%c50, %c0_147, %c0_148] : memref<121x8x512xf32, #tpu.memory_space<vmem>>, vector<1x8x512xf32>
    %261 = vector.shape_cast %260 : vector<1x8x512xf32> to vector<8x512xf32>
    %262 = arith.mulf %259, %261 : vector<8x512xf32>
    %263 = arith.addf %258, %262 : vector<8x512xf32>
    %c505_i32_149 = arith.constant 505 : i32
    %264 = tpu.dynamic_rotate %229 by %c505_i32_149 dim 1 : vector<8x512xf32>, i32 -> vector<8x512xf32>
    %c51 = arith.constant 51 : index
    %c0_150 = arith.constant 0 : index
    %c0_151 = arith.constant 0 : index
    %265 = vector.load %arg2[%c51, %c0_150, %c0_151] : memref<121x8x512xf32, #tpu.memory_space<vmem>>, vector<1x8x512xf32>
    %266 = vector.shape_cast %265 : vector<1x8x512xf32> to vector<8x512xf32>
    %267 = arith.mulf %264, %266 : vector<8x512xf32>
    %268 = arith.addf %263, %267 : vector<8x512xf32>
    %c504_i32_152 = arith.constant 504 : i32
    %269 = tpu.dynamic_rotate %229 by %c504_i32_152 dim 1 : vector<8x512xf32>, i32 -> vector<8x512xf32>
    %c52 = arith.constant 52 : index
    %c0_153 = arith.constant 0 : index
    %c0_154 = arith.constant 0 : index
    %270 = vector.load %arg2[%c52, %c0_153, %c0_154] : memref<121x8x512xf32, #tpu.memory_space<vmem>>, vector<1x8x512xf32>
    %271 = vector.shape_cast %270 : vector<1x8x512xf32> to vector<8x512xf32>
    %272 = arith.mulf %269, %271 : vector<8x512xf32>
    %273 = arith.addf %268, %272 : vector<8x512xf32>
    %c503_i32_155 = arith.constant 503 : i32
    %274 = tpu.dynamic_rotate %229 by %c503_i32_155 dim 1 : vector<8x512xf32>, i32 -> vector<8x512xf32>
    %c53 = arith.constant 53 : index
    %c0_156 = arith.constant 0 : index
    %c0_157 = arith.constant 0 : index
    %275 = vector.load %arg2[%c53, %c0_156, %c0_157] : memref<121x8x512xf32, #tpu.memory_space<vmem>>, vector<1x8x512xf32>
    %276 = vector.shape_cast %275 : vector<1x8x512xf32> to vector<8x512xf32>
    %277 = arith.mulf %274, %276 : vector<8x512xf32>
    %278 = arith.addf %273, %277 : vector<8x512xf32>
    %c502_i32_158 = arith.constant 502 : i32
    %279 = tpu.dynamic_rotate %229 by %c502_i32_158 dim 1 : vector<8x512xf32>, i32 -> vector<8x512xf32>
    %c54 = arith.constant 54 : index
    %c0_159 = arith.constant 0 : index
    %c0_160 = arith.constant 0 : index
    %280 = vector.load %arg2[%c54, %c0_159, %c0_160] : memref<121x8x512xf32, #tpu.memory_space<vmem>>, vector<1x8x512xf32>
    %281 = vector.shape_cast %280 : vector<1x8x512xf32> to vector<8x512xf32>
    %282 = arith.mulf %279, %281 : vector<8x512xf32>
    %283 = arith.addf %278, %282 : vector<8x512xf32>
    %c638_i32 = arith.constant 638 : i32
    %284 = tpu.dynamic_rotate %5 by %c638_i32 dim 1 : vector<8x768xf32>, i32 -> vector<8x768xf32>
    %285 = vector.extract_strided_slice %284 {offsets = [0, 0], sizes = [8, 512], strides = [1, 1]} : vector<8x768xf32> to vector<8x512xf32>
    %c55 = arith.constant 55 : index
    %c0_161 = arith.constant 0 : index
    %c0_162 = arith.constant 0 : index
    %286 = vector.load %arg2[%c55, %c0_161, %c0_162] : memref<121x8x512xf32, #tpu.memory_space<vmem>>, vector<1x8x512xf32>
    %287 = vector.shape_cast %286 : vector<1x8x512xf32> to vector<8x512xf32>
    %288 = arith.mulf %285, %287 : vector<8x512xf32>
    %289 = arith.addf %283, %288 : vector<8x512xf32>
    %c511_i32_163 = arith.constant 511 : i32
    %290 = tpu.dynamic_rotate %285 by %c511_i32_163 dim 1 : vector<8x512xf32>, i32 -> vector<8x512xf32>
    %c56 = arith.constant 56 : index
    %c0_164 = arith.constant 0 : index
    %c0_165 = arith.constant 0 : index
    %291 = vector.load %arg2[%c56, %c0_164, %c0_165] : memref<121x8x512xf32, #tpu.memory_space<vmem>>, vector<1x8x512xf32>
    %292 = vector.shape_cast %291 : vector<1x8x512xf32> to vector<8x512xf32>
    %293 = arith.mulf %290, %292 : vector<8x512xf32>
    %294 = arith.addf %289, %293 : vector<8x512xf32>
    %c510_i32_166 = arith.constant 510 : i32
    %295 = tpu.dynamic_rotate %285 by %c510_i32_166 dim 1 : vector<8x512xf32>, i32 -> vector<8x512xf32>
    %c57 = arith.constant 57 : index
    %c0_167 = arith.constant 0 : index
    %c0_168 = arith.constant 0 : index
    %296 = vector.load %arg2[%c57, %c0_167, %c0_168] : memref<121x8x512xf32, #tpu.memory_space<vmem>>, vector<1x8x512xf32>
    %297 = vector.shape_cast %296 : vector<1x8x512xf32> to vector<8x512xf32>
    %298 = arith.mulf %295, %297 : vector<8x512xf32>
    %299 = arith.addf %294, %298 : vector<8x512xf32>
    %c509_i32_169 = arith.constant 509 : i32
    %300 = tpu.dynamic_rotate %285 by %c509_i32_169 dim 1 : vector<8x512xf32>, i32 -> vector<8x512xf32>
    %c58 = arith.constant 58 : index
    %c0_170 = arith.constant 0 : index
    %c0_171 = arith.constant 0 : index
    %301 = vector.load %arg2[%c58, %c0_170, %c0_171] : memref<121x8x512xf32, #tpu.memory_space<vmem>>, vector<1x8x512xf32>
    %302 = vector.shape_cast %301 : vector<1x8x512xf32> to vector<8x512xf32>
    %303 = arith.mulf %300, %302 : vector<8x512xf32>
    %304 = arith.addf %299, %303 : vector<8x512xf32>
    %c508_i32_172 = arith.constant 508 : i32
    %305 = tpu.dynamic_rotate %285 by %c508_i32_172 dim 1 : vector<8x512xf32>, i32 -> vector<8x512xf32>
    %c59 = arith.constant 59 : index
    %c0_173 = arith.constant 0 : index
    %c0_174 = arith.constant 0 : index
    %306 = vector.load %arg2[%c59, %c0_173, %c0_174] : memref<121x8x512xf32, #tpu.memory_space<vmem>>, vector<1x8x512xf32>
    %307 = vector.shape_cast %306 : vector<1x8x512xf32> to vector<8x512xf32>
    %308 = arith.mulf %305, %307 : vector<8x512xf32>
    %309 = arith.addf %304, %308 : vector<8x512xf32>
    %c507_i32_175 = arith.constant 507 : i32
    %310 = tpu.dynamic_rotate %285 by %c507_i32_175 dim 1 : vector<8x512xf32>, i32 -> vector<8x512xf32>
    %c60 = arith.constant 60 : index
    %c0_176 = arith.constant 0 : index
    %c0_177 = arith.constant 0 : index
    %311 = vector.load %arg2[%c60, %c0_176, %c0_177] : memref<121x8x512xf32, #tpu.memory_space<vmem>>, vector<1x8x512xf32>
    %312 = vector.shape_cast %311 : vector<1x8x512xf32> to vector<8x512xf32>
    %313 = arith.mulf %310, %312 : vector<8x512xf32>
    %314 = arith.addf %309, %313 : vector<8x512xf32>
    %c506_i32_178 = arith.constant 506 : i32
    %315 = tpu.dynamic_rotate %285 by %c506_i32_178 dim 1 : vector<8x512xf32>, i32 -> vector<8x512xf32>
    %c61 = arith.constant 61 : index
    %c0_179 = arith.constant 0 : index
    %c0_180 = arith.constant 0 : index
    %316 = vector.load %arg2[%c61, %c0_179, %c0_180] : memref<121x8x512xf32, #tpu.memory_space<vmem>>, vector<1x8x512xf32>
    %317 = vector.shape_cast %316 : vector<1x8x512xf32> to vector<8x512xf32>
    %318 = arith.mulf %315, %317 : vector<8x512xf32>
    %319 = arith.addf %314, %318 : vector<8x512xf32>
    %c505_i32_181 = arith.constant 505 : i32
    %320 = tpu.dynamic_rotate %285 by %c505_i32_181 dim 1 : vector<8x512xf32>, i32 -> vector<8x512xf32>
    %c62 = arith.constant 62 : index
    %c0_182 = arith.constant 0 : index
    %c0_183 = arith.constant 0 : index
    %321 = vector.load %arg2[%c62, %c0_182, %c0_183] : memref<121x8x512xf32, #tpu.memory_space<vmem>>, vector<1x8x512xf32>
    %322 = vector.shape_cast %321 : vector<1x8x512xf32> to vector<8x512xf32>
    %323 = arith.mulf %320, %322 : vector<8x512xf32>
    %324 = arith.addf %319, %323 : vector<8x512xf32>
    %c504_i32_184 = arith.constant 504 : i32
    %325 = tpu.dynamic_rotate %285 by %c504_i32_184 dim 1 : vector<8x512xf32>, i32 -> vector<8x512xf32>
    %c63 = arith.constant 63 : index
    %c0_185 = arith.constant 0 : index
    %c0_186 = arith.constant 0 : index
    %326 = vector.load %arg2[%c63, %c0_185, %c0_186] : memref<121x8x512xf32, #tpu.memory_space<vmem>>, vector<1x8x512xf32>
    %327 = vector.shape_cast %326 : vector<1x8x512xf32> to vector<8x512xf32>
    %328 = arith.mulf %325, %327 : vector<8x512xf32>
    %329 = arith.addf %324, %328 : vector<8x512xf32>
    %c503_i32_187 = arith.constant 503 : i32
    %330 = tpu.dynamic_rotate %285 by %c503_i32_187 dim 1 : vector<8x512xf32>, i32 -> vector<8x512xf32>
    %c64 = arith.constant 64 : index
    %c0_188 = arith.constant 0 : index
    %c0_189 = arith.constant 0 : index
    %331 = vector.load %arg2[%c64, %c0_188, %c0_189] : memref<121x8x512xf32, #tpu.memory_space<vmem>>, vector<1x8x512xf32>
    %332 = vector.shape_cast %331 : vector<1x8x512xf32> to vector<8x512xf32>
    %333 = arith.mulf %330, %332 : vector<8x512xf32>
    %334 = arith.addf %329, %333 : vector<8x512xf32>
    %c502_i32_190 = arith.constant 502 : i32
    %335 = tpu.dynamic_rotate %285 by %c502_i32_190 dim 1 : vector<8x512xf32>, i32 -> vector<8x512xf32>
    %c65 = arith.constant 65 : index
    %c0_191 = arith.constant 0 : index
    %c0_192 = arith.constant 0 : index
    %336 = vector.load %arg2[%c65, %c0_191, %c0_192] : memref<121x8x512xf32, #tpu.memory_space<vmem>>, vector<1x8x512xf32>
    %337 = vector.shape_cast %336 : vector<1x8x512xf32> to vector<8x512xf32>
    %338 = arith.mulf %335, %337 : vector<8x512xf32>
    %339 = arith.addf %334, %338 : vector<8x512xf32>
    %c612_i32 = arith.constant 612 : i32
    %340 = tpu.dynamic_rotate %5 by %c612_i32 dim 1 : vector<8x768xf32>, i32 -> vector<8x768xf32>
    %341 = vector.extract_strided_slice %340 {offsets = [0, 0], sizes = [8, 512], strides = [1, 1]} : vector<8x768xf32> to vector<8x512xf32>
    %c66 = arith.constant 66 : index
    %c0_193 = arith.constant 0 : index
    %c0_194 = arith.constant 0 : index
    %342 = vector.load %arg2[%c66, %c0_193, %c0_194] : memref<121x8x512xf32, #tpu.memory_space<vmem>>, vector<1x8x512xf32>
    %343 = vector.shape_cast %342 : vector<1x8x512xf32> to vector<8x512xf32>
    %344 = arith.mulf %341, %343 : vector<8x512xf32>
    %345 = arith.addf %339, %344 : vector<8x512xf32>
    %c511_i32_195 = arith.constant 511 : i32
    %346 = tpu.dynamic_rotate %341 by %c511_i32_195 dim 1 : vector<8x512xf32>, i32 -> vector<8x512xf32>
    %c67 = arith.constant 67 : index
    %c0_196 = arith.constant 0 : index
    %c0_197 = arith.constant 0 : index
    %347 = vector.load %arg2[%c67, %c0_196, %c0_197] : memref<121x8x512xf32, #tpu.memory_space<vmem>>, vector<1x8x512xf32>
    %348 = vector.shape_cast %347 : vector<1x8x512xf32> to vector<8x512xf32>
    %349 = arith.mulf %346, %348 : vector<8x512xf32>
    %350 = arith.addf %345, %349 : vector<8x512xf32>
    %c510_i32_198 = arith.constant 510 : i32
    %351 = tpu.dynamic_rotate %341 by %c510_i32_198 dim 1 : vector<8x512xf32>, i32 -> vector<8x512xf32>
    %c68 = arith.constant 68 : index
    %c0_199 = arith.constant 0 : index
    %c0_200 = arith.constant 0 : index
    %352 = vector.load %arg2[%c68, %c0_199, %c0_200] : memref<121x8x512xf32, #tpu.memory_space<vmem>>, vector<1x8x512xf32>
    %353 = vector.shape_cast %352 : vector<1x8x512xf32> to vector<8x512xf32>
    %354 = arith.mulf %351, %353 : vector<8x512xf32>
    %355 = arith.addf %350, %354 : vector<8x512xf32>
    %c509_i32_201 = arith.constant 509 : i32
    %356 = tpu.dynamic_rotate %341 by %c509_i32_201 dim 1 : vector<8x512xf32>, i32 -> vector<8x512xf32>
    %c69 = arith.constant 69 : index
    %c0_202 = arith.constant 0 : index
    %c0_203 = arith.constant 0 : index
    %357 = vector.load %arg2[%c69, %c0_202, %c0_203] : memref<121x8x512xf32, #tpu.memory_space<vmem>>, vector<1x8x512xf32>
    %358 = vector.shape_cast %357 : vector<1x8x512xf32> to vector<8x512xf32>
    %359 = arith.mulf %356, %358 : vector<8x512xf32>
    %360 = arith.addf %355, %359 : vector<8x512xf32>
    %c508_i32_204 = arith.constant 508 : i32
    %361 = tpu.dynamic_rotate %341 by %c508_i32_204 dim 1 : vector<8x512xf32>, i32 -> vector<8x512xf32>
    %c70 = arith.constant 70 : index
    %c0_205 = arith.constant 0 : index
    %c0_206 = arith.constant 0 : index
    %362 = vector.load %arg2[%c70, %c0_205, %c0_206] : memref<121x8x512xf32, #tpu.memory_space<vmem>>, vector<1x8x512xf32>
    %363 = vector.shape_cast %362 : vector<1x8x512xf32> to vector<8x512xf32>
    %364 = arith.mulf %361, %363 : vector<8x512xf32>
    %365 = arith.addf %360, %364 : vector<8x512xf32>
    %c507_i32_207 = arith.constant 507 : i32
    %366 = tpu.dynamic_rotate %341 by %c507_i32_207 dim 1 : vector<8x512xf32>, i32 -> vector<8x512xf32>
    %c71 = arith.constant 71 : index
    %c0_208 = arith.constant 0 : index
    %c0_209 = arith.constant 0 : index
    %367 = vector.load %arg2[%c71, %c0_208, %c0_209] : memref<121x8x512xf32, #tpu.memory_space<vmem>>, vector<1x8x512xf32>
    %368 = vector.shape_cast %367 : vector<1x8x512xf32> to vector<8x512xf32>
    %369 = arith.mulf %366, %368 : vector<8x512xf32>
    %370 = arith.addf %365, %369 : vector<8x512xf32>
    %c506_i32_210 = arith.constant 506 : i32
    %371 = tpu.dynamic_rotate %341 by %c506_i32_210 dim 1 : vector<8x512xf32>, i32 -> vector<8x512xf32>
    %c72 = arith.constant 72 : index
    %c0_211 = arith.constant 0 : index
    %c0_212 = arith.constant 0 : index
    %372 = vector.load %arg2[%c72, %c0_211, %c0_212] : memref<121x8x512xf32, #tpu.memory_space<vmem>>, vector<1x8x512xf32>
    %373 = vector.shape_cast %372 : vector<1x8x512xf32> to vector<8x512xf32>
    %374 = arith.mulf %371, %373 : vector<8x512xf32>
    %375 = arith.addf %370, %374 : vector<8x512xf32>
    %c505_i32_213 = arith.constant 505 : i32
    %376 = tpu.dynamic_rotate %341 by %c505_i32_213 dim 1 : vector<8x512xf32>, i32 -> vector<8x512xf32>
    %c73 = arith.constant 73 : index
    %c0_214 = arith.constant 0 : index
    %c0_215 = arith.constant 0 : index
    %377 = vector.load %arg2[%c73, %c0_214, %c0_215] : memref<121x8x512xf32, #tpu.memory_space<vmem>>, vector<1x8x512xf32>
    %378 = vector.shape_cast %377 : vector<1x8x512xf32> to vector<8x512xf32>
    %379 = arith.mulf %376, %378 : vector<8x512xf32>
    %380 = arith.addf %375, %379 : vector<8x512xf32>
    %c504_i32_216 = arith.constant 504 : i32
    %381 = tpu.dynamic_rotate %341 by %c504_i32_216 dim 1 : vector<8x512xf32>, i32 -> vector<8x512xf32>
    %c74 = arith.constant 74 : index
    %c0_217 = arith.constant 0 : index
    %c0_218 = arith.constant 0 : index
    %382 = vector.load %arg2[%c74, %c0_217, %c0_218] : memref<121x8x512xf32, #tpu.memory_space<vmem>>, vector<1x8x512xf32>
    %383 = vector.shape_cast %382 : vector<1x8x512xf32> to vector<8x512xf32>
    %384 = arith.mulf %381, %383 : vector<8x512xf32>
    %385 = arith.addf %380, %384 : vector<8x512xf32>
    %c503_i32_219 = arith.constant 503 : i32
    %386 = tpu.dynamic_rotate %341 by %c503_i32_219 dim 1 : vector<8x512xf32>, i32 -> vector<8x512xf32>
    %c75 = arith.constant 75 : index
    %c0_220 = arith.constant 0 : index
    %c0_221 = arith.constant 0 : index
    %387 = vector.load %arg2[%c75, %c0_220, %c0_221] : memref<121x8x512xf32, #tpu.memory_space<vmem>>, vector<1x8x512xf32>
    %388 = vector.shape_cast %387 : vector<1x8x512xf32> to vector<8x512xf32>
    %389 = arith.mulf %386, %388 : vector<8x512xf32>
    %390 = arith.addf %385, %389 : vector<8x512xf32>
    %c502_i32_222 = arith.constant 502 : i32
    %391 = tpu.dynamic_rotate %341 by %c502_i32_222 dim 1 : vector<8x512xf32>, i32 -> vector<8x512xf32>
    %c76 = arith.constant 76 : index
    %c0_223 = arith.constant 0 : index
    %c0_224 = arith.constant 0 : index
    %392 = vector.load %arg2[%c76, %c0_223, %c0_224] : memref<121x8x512xf32, #tpu.memory_space<vmem>>, vector<1x8x512xf32>
    %393 = vector.shape_cast %392 : vector<1x8x512xf32> to vector<8x512xf32>
    %394 = arith.mulf %391, %393 : vector<8x512xf32>
    %395 = arith.addf %390, %394 : vector<8x512xf32>
    %c586_i32 = arith.constant 586 : i32
    %396 = tpu.dynamic_rotate %5 by %c586_i32 dim 1 : vector<8x768xf32>, i32 -> vector<8x768xf32>
    %397 = vector.extract_strided_slice %396 {offsets = [0, 0], sizes = [8, 512], strides = [1, 1]} : vector<8x768xf32> to vector<8x512xf32>
    %c77 = arith.constant 77 : index
    %c0_225 = arith.constant 0 : index
    %c0_226 = arith.constant 0 : index
    %398 = vector.load %arg2[%c77, %c0_225, %c0_226] : memref<121x8x512xf32, #tpu.memory_space<vmem>>, vector<1x8x512xf32>
    %399 = vector.shape_cast %398 : vector<1x8x512xf32> to vector<8x512xf32>
    %400 = arith.mulf %397, %399 : vector<8x512xf32>
    %401 = arith.addf %395, %400 : vector<8x512xf32>
    %c511_i32_227 = arith.constant 511 : i32
    %402 = tpu.dynamic_rotate %397 by %c511_i32_227 dim 1 : vector<8x512xf32>, i32 -> vector<8x512xf32>
    %c78 = arith.constant 78 : index
    %c0_228 = arith.constant 0 : index
    %c0_229 = arith.constant 0 : index
    %403 = vector.load %arg2[%c78, %c0_228, %c0_229] : memref<121x8x512xf32, #tpu.memory_space<vmem>>, vector<1x8x512xf32>
    %404 = vector.shape_cast %403 : vector<1x8x512xf32> to vector<8x512xf32>
    %405 = arith.mulf %402, %404 : vector<8x512xf32>
    %406 = arith.addf %401, %405 : vector<8x512xf32>
    %c510_i32_230 = arith.constant 510 : i32
    %407 = tpu.dynamic_rotate %397 by %c510_i32_230 dim 1 : vector<8x512xf32>, i32 -> vector<8x512xf32>
    %c79 = arith.constant 79 : index
    %c0_231 = arith.constant 0 : index
    %c0_232 = arith.constant 0 : index
    %408 = vector.load %arg2[%c79, %c0_231, %c0_232] : memref<121x8x512xf32, #tpu.memory_space<vmem>>, vector<1x8x512xf32>
    %409 = vector.shape_cast %408 : vector<1x8x512xf32> to vector<8x512xf32>
    %410 = arith.mulf %407, %409 : vector<8x512xf32>
    %411 = arith.addf %406, %410 : vector<8x512xf32>
    %c509_i32_233 = arith.constant 509 : i32
    %412 = tpu.dynamic_rotate %397 by %c509_i32_233 dim 1 : vector<8x512xf32>, i32 -> vector<8x512xf32>
    %c80 = arith.constant 80 : index
    %c0_234 = arith.constant 0 : index
    %c0_235 = arith.constant 0 : index
    %413 = vector.load %arg2[%c80, %c0_234, %c0_235] : memref<121x8x512xf32, #tpu.memory_space<vmem>>, vector<1x8x512xf32>
    %414 = vector.shape_cast %413 : vector<1x8x512xf32> to vector<8x512xf32>
    %415 = arith.mulf %412, %414 : vector<8x512xf32>
    %416 = arith.addf %411, %415 : vector<8x512xf32>
    %c508_i32_236 = arith.constant 508 : i32
    %417 = tpu.dynamic_rotate %397 by %c508_i32_236 dim 1 : vector<8x512xf32>, i32 -> vector<8x512xf32>
    %c81 = arith.constant 81 : index
    %c0_237 = arith.constant 0 : index
    %c0_238 = arith.constant 0 : index
    %418 = vector.load %arg2[%c81, %c0_237, %c0_238] : memref<121x8x512xf32, #tpu.memory_space<vmem>>, vector<1x8x512xf32>
    %419 = vector.shape_cast %418 : vector<1x8x512xf32> to vector<8x512xf32>
    %420 = arith.mulf %417, %419 : vector<8x512xf32>
    %421 = arith.addf %416, %420 : vector<8x512xf32>
    %c507_i32_239 = arith.constant 507 : i32
    %422 = tpu.dynamic_rotate %397 by %c507_i32_239 dim 1 : vector<8x512xf32>, i32 -> vector<8x512xf32>
    %c82 = arith.constant 82 : index
    %c0_240 = arith.constant 0 : index
    %c0_241 = arith.constant 0 : index
    %423 = vector.load %arg2[%c82, %c0_240, %c0_241] : memref<121x8x512xf32, #tpu.memory_space<vmem>>, vector<1x8x512xf32>
    %424 = vector.shape_cast %423 : vector<1x8x512xf32> to vector<8x512xf32>
    %425 = arith.mulf %422, %424 : vector<8x512xf32>
    %426 = arith.addf %421, %425 : vector<8x512xf32>
    %c506_i32_242 = arith.constant 506 : i32
    %427 = tpu.dynamic_rotate %397 by %c506_i32_242 dim 1 : vector<8x512xf32>, i32 -> vector<8x512xf32>
    %c83 = arith.constant 83 : index
    %c0_243 = arith.constant 0 : index
    %c0_244 = arith.constant 0 : index
    %428 = vector.load %arg2[%c83, %c0_243, %c0_244] : memref<121x8x512xf32, #tpu.memory_space<vmem>>, vector<1x8x512xf32>
    %429 = vector.shape_cast %428 : vector<1x8x512xf32> to vector<8x512xf32>
    %430 = arith.mulf %427, %429 : vector<8x512xf32>
    %431 = arith.addf %426, %430 : vector<8x512xf32>
    %c505_i32_245 = arith.constant 505 : i32
    %432 = tpu.dynamic_rotate %397 by %c505_i32_245 dim 1 : vector<8x512xf32>, i32 -> vector<8x512xf32>
    %c84 = arith.constant 84 : index
    %c0_246 = arith.constant 0 : index
    %c0_247 = arith.constant 0 : index
    %433 = vector.load %arg2[%c84, %c0_246, %c0_247] : memref<121x8x512xf32, #tpu.memory_space<vmem>>, vector<1x8x512xf32>
    %434 = vector.shape_cast %433 : vector<1x8x512xf32> to vector<8x512xf32>
    %435 = arith.mulf %432, %434 : vector<8x512xf32>
    %436 = arith.addf %431, %435 : vector<8x512xf32>
    %c504_i32_248 = arith.constant 504 : i32
    %437 = tpu.dynamic_rotate %397 by %c504_i32_248 dim 1 : vector<8x512xf32>, i32 -> vector<8x512xf32>
    %c85 = arith.constant 85 : index
    %c0_249 = arith.constant 0 : index
    %c0_250 = arith.constant 0 : index
    %438 = vector.load %arg2[%c85, %c0_249, %c0_250] : memref<121x8x512xf32, #tpu.memory_space<vmem>>, vector<1x8x512xf32>
    %439 = vector.shape_cast %438 : vector<1x8x512xf32> to vector<8x512xf32>
    %440 = arith.mulf %437, %439 : vector<8x512xf32>
    %441 = arith.addf %436, %440 : vector<8x512xf32>
    %c503_i32_251 = arith.constant 503 : i32
    %442 = tpu.dynamic_rotate %397 by %c503_i32_251 dim 1 : vector<8x512xf32>, i32 -> vector<8x512xf32>
    %c86 = arith.constant 86 : index
    %c0_252 = arith.constant 0 : index
    %c0_253 = arith.constant 0 : index
    %443 = vector.load %arg2[%c86, %c0_252, %c0_253] : memref<121x8x512xf32, #tpu.memory_space<vmem>>, vector<1x8x512xf32>
    %444 = vector.shape_cast %443 : vector<1x8x512xf32> to vector<8x512xf32>
    %445 = arith.mulf %442, %444 : vector<8x512xf32>
    %446 = arith.addf %441, %445 : vector<8x512xf32>
    %c502_i32_254 = arith.constant 502 : i32
    %447 = tpu.dynamic_rotate %397 by %c502_i32_254 dim 1 : vector<8x512xf32>, i32 -> vector<8x512xf32>
    %c87 = arith.constant 87 : index
    %c0_255 = arith.constant 0 : index
    %c0_256 = arith.constant 0 : index
    %448 = vector.load %arg2[%c87, %c0_255, %c0_256] : memref<121x8x512xf32, #tpu.memory_space<vmem>>, vector<1x8x512xf32>
    %449 = vector.shape_cast %448 : vector<1x8x512xf32> to vector<8x512xf32>
    %450 = arith.mulf %447, %449 : vector<8x512xf32>
    %451 = arith.addf %446, %450 : vector<8x512xf32>
    %c560_i32 = arith.constant 560 : i32
    %452 = tpu.dynamic_rotate %5 by %c560_i32 dim 1 : vector<8x768xf32>, i32 -> vector<8x768xf32>
    %453 = vector.extract_strided_slice %452 {offsets = [0, 0], sizes = [8, 512], strides = [1, 1]} : vector<8x768xf32> to vector<8x512xf32>
    %c88 = arith.constant 88 : index
    %c0_257 = arith.constant 0 : index
    %c0_258 = arith.constant 0 : index
    %454 = vector.load %arg2[%c88, %c0_257, %c0_258] : memref<121x8x512xf32, #tpu.memory_space<vmem>>, vector<1x8x512xf32>
    %455 = vector.shape_cast %454 : vector<1x8x512xf32> to vector<8x512xf32>
    %456 = arith.mulf %453, %455 : vector<8x512xf32>
    %457 = arith.addf %451, %456 : vector<8x512xf32>
    %c511_i32_259 = arith.constant 511 : i32
    %458 = tpu.dynamic_rotate %453 by %c511_i32_259 dim 1 : vector<8x512xf32>, i32 -> vector<8x512xf32>
    %c89 = arith.constant 89 : index
    %c0_260 = arith.constant 0 : index
    %c0_261 = arith.constant 0 : index
    %459 = vector.load %arg2[%c89, %c0_260, %c0_261] : memref<121x8x512xf32, #tpu.memory_space<vmem>>, vector<1x8x512xf32>
    %460 = vector.shape_cast %459 : vector<1x8x512xf32> to vector<8x512xf32>
    %461 = arith.mulf %458, %460 : vector<8x512xf32>
    %462 = arith.addf %457, %461 : vector<8x512xf32>
    %c510_i32_262 = arith.constant 510 : i32
    %463 = tpu.dynamic_rotate %453 by %c510_i32_262 dim 1 : vector<8x512xf32>, i32 -> vector<8x512xf32>
    %c90 = arith.constant 90 : index
    %c0_263 = arith.constant 0 : index
    %c0_264 = arith.constant 0 : index
    %464 = vector.load %arg2[%c90, %c0_263, %c0_264] : memref<121x8x512xf32, #tpu.memory_space<vmem>>, vector<1x8x512xf32>
    %465 = vector.shape_cast %464 : vector<1x8x512xf32> to vector<8x512xf32>
    %466 = arith.mulf %463, %465 : vector<8x512xf32>
    %467 = arith.addf %462, %466 : vector<8x512xf32>
    %c509_i32_265 = arith.constant 509 : i32
    %468 = tpu.dynamic_rotate %453 by %c509_i32_265 dim 1 : vector<8x512xf32>, i32 -> vector<8x512xf32>
    %c91 = arith.constant 91 : index
    %c0_266 = arith.constant 0 : index
    %c0_267 = arith.constant 0 : index
    %469 = vector.load %arg2[%c91, %c0_266, %c0_267] : memref<121x8x512xf32, #tpu.memory_space<vmem>>, vector<1x8x512xf32>
    %470 = vector.shape_cast %469 : vector<1x8x512xf32> to vector<8x512xf32>
    %471 = arith.mulf %468, %470 : vector<8x512xf32>
    %472 = arith.addf %467, %471 : vector<8x512xf32>
    %c508_i32_268 = arith.constant 508 : i32
    %473 = tpu.dynamic_rotate %453 by %c508_i32_268 dim 1 : vector<8x512xf32>, i32 -> vector<8x512xf32>
    %c92 = arith.constant 92 : index
    %c0_269 = arith.constant 0 : index
    %c0_270 = arith.constant 0 : index
    %474 = vector.load %arg2[%c92, %c0_269, %c0_270] : memref<121x8x512xf32, #tpu.memory_space<vmem>>, vector<1x8x512xf32>
    %475 = vector.shape_cast %474 : vector<1x8x512xf32> to vector<8x512xf32>
    %476 = arith.mulf %473, %475 : vector<8x512xf32>
    %477 = arith.addf %472, %476 : vector<8x512xf32>
    %c507_i32_271 = arith.constant 507 : i32
    %478 = tpu.dynamic_rotate %453 by %c507_i32_271 dim 1 : vector<8x512xf32>, i32 -> vector<8x512xf32>
    %c93 = arith.constant 93 : index
    %c0_272 = arith.constant 0 : index
    %c0_273 = arith.constant 0 : index
    %479 = vector.load %arg2[%c93, %c0_272, %c0_273] : memref<121x8x512xf32, #tpu.memory_space<vmem>>, vector<1x8x512xf32>
    %480 = vector.shape_cast %479 : vector<1x8x512xf32> to vector<8x512xf32>
    %481 = arith.mulf %478, %480 : vector<8x512xf32>
    %482 = arith.addf %477, %481 : vector<8x512xf32>
    %c506_i32_274 = arith.constant 506 : i32
    %483 = tpu.dynamic_rotate %453 by %c506_i32_274 dim 1 : vector<8x512xf32>, i32 -> vector<8x512xf32>
    %c94 = arith.constant 94 : index
    %c0_275 = arith.constant 0 : index
    %c0_276 = arith.constant 0 : index
    %484 = vector.load %arg2[%c94, %c0_275, %c0_276] : memref<121x8x512xf32, #tpu.memory_space<vmem>>, vector<1x8x512xf32>
    %485 = vector.shape_cast %484 : vector<1x8x512xf32> to vector<8x512xf32>
    %486 = arith.mulf %483, %485 : vector<8x512xf32>
    %487 = arith.addf %482, %486 : vector<8x512xf32>
    %c505_i32_277 = arith.constant 505 : i32
    %488 = tpu.dynamic_rotate %453 by %c505_i32_277 dim 1 : vector<8x512xf32>, i32 -> vector<8x512xf32>
    %c95 = arith.constant 95 : index
    %c0_278 = arith.constant 0 : index
    %c0_279 = arith.constant 0 : index
    %489 = vector.load %arg2[%c95, %c0_278, %c0_279] : memref<121x8x512xf32, #tpu.memory_space<vmem>>, vector<1x8x512xf32>
    %490 = vector.shape_cast %489 : vector<1x8x512xf32> to vector<8x512xf32>
    %491 = arith.mulf %488, %490 : vector<8x512xf32>
    %492 = arith.addf %487, %491 : vector<8x512xf32>
    %c504_i32_280 = arith.constant 504 : i32
    %493 = tpu.dynamic_rotate %453 by %c504_i32_280 dim 1 : vector<8x512xf32>, i32 -> vector<8x512xf32>
    %c96 = arith.constant 96 : index
    %c0_281 = arith.constant 0 : index
    %c0_282 = arith.constant 0 : index
    %494 = vector.load %arg2[%c96, %c0_281, %c0_282] : memref<121x8x512xf32, #tpu.memory_space<vmem>>, vector<1x8x512xf32>
    %495 = vector.shape_cast %494 : vector<1x8x512xf32> to vector<8x512xf32>
    %496 = arith.mulf %493, %495 : vector<8x512xf32>
    %497 = arith.addf %492, %496 : vector<8x512xf32>
    %c503_i32_283 = arith.constant 503 : i32
    %498 = tpu.dynamic_rotate %453 by %c503_i32_283 dim 1 : vector<8x512xf32>, i32 -> vector<8x512xf32>
    %c97 = arith.constant 97 : index
    %c0_284 = arith.constant 0 : index
    %c0_285 = arith.constant 0 : index
    %499 = vector.load %arg2[%c97, %c0_284, %c0_285] : memref<121x8x512xf32, #tpu.memory_space<vmem>>, vector<1x8x512xf32>
    %500 = vector.shape_cast %499 : vector<1x8x512xf32> to vector<8x512xf32>
    %501 = arith.mulf %498, %500 : vector<8x512xf32>
    %502 = arith.addf %497, %501 : vector<8x512xf32>
    %c502_i32_286 = arith.constant 502 : i32
    %503 = tpu.dynamic_rotate %453 by %c502_i32_286 dim 1 : vector<8x512xf32>, i32 -> vector<8x512xf32>
    %c98 = arith.constant 98 : index
    %c0_287 = arith.constant 0 : index
    %c0_288 = arith.constant 0 : index
    %504 = vector.load %arg2[%c98, %c0_287, %c0_288] : memref<121x8x512xf32, #tpu.memory_space<vmem>>, vector<1x8x512xf32>
    %505 = vector.shape_cast %504 : vector<1x8x512xf32> to vector<8x512xf32>
    %506 = arith.mulf %503, %505 : vector<8x512xf32>
    %507 = arith.addf %502, %506 : vector<8x512xf32>
    %c534_i32 = arith.constant 534 : i32
    %508 = tpu.dynamic_rotate %5 by %c534_i32 dim 1 : vector<8x768xf32>, i32 -> vector<8x768xf32>
    %509 = vector.extract_strided_slice %508 {offsets = [0, 0], sizes = [8, 512], strides = [1, 1]} : vector<8x768xf32> to vector<8x512xf32>
    %c99 = arith.constant 99 : index
    %c0_289 = arith.constant 0 : index
    %c0_290 = arith.constant 0 : index
    %510 = vector.load %arg2[%c99, %c0_289, %c0_290] : memref<121x8x512xf32, #tpu.memory_space<vmem>>, vector<1x8x512xf32>
    %511 = vector.shape_cast %510 : vector<1x8x512xf32> to vector<8x512xf32>
    %512 = arith.mulf %509, %511 : vector<8x512xf32>
    %513 = arith.addf %507, %512 : vector<8x512xf32>
    %c511_i32_291 = arith.constant 511 : i32
    %514 = tpu.dynamic_rotate %509 by %c511_i32_291 dim 1 : vector<8x512xf32>, i32 -> vector<8x512xf32>
    %c100 = arith.constant 100 : index
    %c0_292 = arith.constant 0 : index
    %c0_293 = arith.constant 0 : index
    %515 = vector.load %arg2[%c100, %c0_292, %c0_293] : memref<121x8x512xf32, #tpu.memory_space<vmem>>, vector<1x8x512xf32>
    %516 = vector.shape_cast %515 : vector<1x8x512xf32> to vector<8x512xf32>
    %517 = arith.mulf %514, %516 : vector<8x512xf32>
    %518 = arith.addf %513, %517 : vector<8x512xf32>
    %c510_i32_294 = arith.constant 510 : i32
    %519 = tpu.dynamic_rotate %509 by %c510_i32_294 dim 1 : vector<8x512xf32>, i32 -> vector<8x512xf32>
    %c101 = arith.constant 101 : index
    %c0_295 = arith.constant 0 : index
    %c0_296 = arith.constant 0 : index
    %520 = vector.load %arg2[%c101, %c0_295, %c0_296] : memref<121x8x512xf32, #tpu.memory_space<vmem>>, vector<1x8x512xf32>
    %521 = vector.shape_cast %520 : vector<1x8x512xf32> to vector<8x512xf32>
    %522 = arith.mulf %519, %521 : vector<8x512xf32>
    %523 = arith.addf %518, %522 : vector<8x512xf32>
    %c509_i32_297 = arith.constant 509 : i32
    %524 = tpu.dynamic_rotate %509 by %c509_i32_297 dim 1 : vector<8x512xf32>, i32 -> vector<8x512xf32>
    %c102 = arith.constant 102 : index
    %c0_298 = arith.constant 0 : index
    %c0_299 = arith.constant 0 : index
    %525 = vector.load %arg2[%c102, %c0_298, %c0_299] : memref<121x8x512xf32, #tpu.memory_space<vmem>>, vector<1x8x512xf32>
    %526 = vector.shape_cast %525 : vector<1x8x512xf32> to vector<8x512xf32>
    %527 = arith.mulf %524, %526 : vector<8x512xf32>
    %528 = arith.addf %523, %527 : vector<8x512xf32>
    %c508_i32_300 = arith.constant 508 : i32
    %529 = tpu.dynamic_rotate %509 by %c508_i32_300 dim 1 : vector<8x512xf32>, i32 -> vector<8x512xf32>
    %c103 = arith.constant 103 : index
    %c0_301 = arith.constant 0 : index
    %c0_302 = arith.constant 0 : index
    %530 = vector.load %arg2[%c103, %c0_301, %c0_302] : memref<121x8x512xf32, #tpu.memory_space<vmem>>, vector<1x8x512xf32>
    %531 = vector.shape_cast %530 : vector<1x8x512xf32> to vector<8x512xf32>
    %532 = arith.mulf %529, %531 : vector<8x512xf32>
    %533 = arith.addf %528, %532 : vector<8x512xf32>
    %c507_i32_303 = arith.constant 507 : i32
    %534 = tpu.dynamic_rotate %509 by %c507_i32_303 dim 1 : vector<8x512xf32>, i32 -> vector<8x512xf32>
    %c104 = arith.constant 104 : index
    %c0_304 = arith.constant 0 : index
    %c0_305 = arith.constant 0 : index
    %535 = vector.load %arg2[%c104, %c0_304, %c0_305] : memref<121x8x512xf32, #tpu.memory_space<vmem>>, vector<1x8x512xf32>
    %536 = vector.shape_cast %535 : vector<1x8x512xf32> to vector<8x512xf32>
    %537 = arith.mulf %534, %536 : vector<8x512xf32>
    %538 = arith.addf %533, %537 : vector<8x512xf32>
    %c506_i32_306 = arith.constant 506 : i32
    %539 = tpu.dynamic_rotate %509 by %c506_i32_306 dim 1 : vector<8x512xf32>, i32 -> vector<8x512xf32>
    %c105 = arith.constant 105 : index
    %c0_307 = arith.constant 0 : index
    %c0_308 = arith.constant 0 : index
    %540 = vector.load %arg2[%c105, %c0_307, %c0_308] : memref<121x8x512xf32, #tpu.memory_space<vmem>>, vector<1x8x512xf32>
    %541 = vector.shape_cast %540 : vector<1x8x512xf32> to vector<8x512xf32>
    %542 = arith.mulf %539, %541 : vector<8x512xf32>
    %543 = arith.addf %538, %542 : vector<8x512xf32>
    %c505_i32_309 = arith.constant 505 : i32
    %544 = tpu.dynamic_rotate %509 by %c505_i32_309 dim 1 : vector<8x512xf32>, i32 -> vector<8x512xf32>
    %c106 = arith.constant 106 : index
    %c0_310 = arith.constant 0 : index
    %c0_311 = arith.constant 0 : index
    %545 = vector.load %arg2[%c106, %c0_310, %c0_311] : memref<121x8x512xf32, #tpu.memory_space<vmem>>, vector<1x8x512xf32>
    %546 = vector.shape_cast %545 : vector<1x8x512xf32> to vector<8x512xf32>
    %547 = arith.mulf %544, %546 : vector<8x512xf32>
    %548 = arith.addf %543, %547 : vector<8x512xf32>
    %c504_i32_312 = arith.constant 504 : i32
    %549 = tpu.dynamic_rotate %509 by %c504_i32_312 dim 1 : vector<8x512xf32>, i32 -> vector<8x512xf32>
    %c107 = arith.constant 107 : index
    %c0_313 = arith.constant 0 : index
    %c0_314 = arith.constant 0 : index
    %550 = vector.load %arg2[%c107, %c0_313, %c0_314] : memref<121x8x512xf32, #tpu.memory_space<vmem>>, vector<1x8x512xf32>
    %551 = vector.shape_cast %550 : vector<1x8x512xf32> to vector<8x512xf32>
    %552 = arith.mulf %549, %551 : vector<8x512xf32>
    %553 = arith.addf %548, %552 : vector<8x512xf32>
    %c503_i32_315 = arith.constant 503 : i32
    %554 = tpu.dynamic_rotate %509 by %c503_i32_315 dim 1 : vector<8x512xf32>, i32 -> vector<8x512xf32>
    %c108 = arith.constant 108 : index
    %c0_316 = arith.constant 0 : index
    %c0_317 = arith.constant 0 : index
    %555 = vector.load %arg2[%c108, %c0_316, %c0_317] : memref<121x8x512xf32, #tpu.memory_space<vmem>>, vector<1x8x512xf32>
    %556 = vector.shape_cast %555 : vector<1x8x512xf32> to vector<8x512xf32>
    %557 = arith.mulf %554, %556 : vector<8x512xf32>
    %558 = arith.addf %553, %557 : vector<8x512xf32>
    %c502_i32_318 = arith.constant 502 : i32
    %559 = tpu.dynamic_rotate %509 by %c502_i32_318 dim 1 : vector<8x512xf32>, i32 -> vector<8x512xf32>
    %c109 = arith.constant 109 : index
    %c0_319 = arith.constant 0 : index
    %c0_320 = arith.constant 0 : index
    %560 = vector.load %arg2[%c109, %c0_319, %c0_320] : memref<121x8x512xf32, #tpu.memory_space<vmem>>, vector<1x8x512xf32>
    %561 = vector.shape_cast %560 : vector<1x8x512xf32> to vector<8x512xf32>
    %562 = arith.mulf %559, %561 : vector<8x512xf32>
    %563 = arith.addf %558, %562 : vector<8x512xf32>
    %c508_i32_321 = arith.constant 508 : i32
    %564 = tpu.dynamic_rotate %5 by %c508_i32_321 dim 1 : vector<8x768xf32>, i32 -> vector<8x768xf32>
    %565 = vector.extract_strided_slice %564 {offsets = [0, 0], sizes = [8, 512], strides = [1, 1]} : vector<8x768xf32> to vector<8x512xf32>
    %c110 = arith.constant 110 : index
    %c0_322 = arith.constant 0 : index
    %c0_323 = arith.constant 0 : index
    %566 = vector.load %arg2[%c110, %c0_322, %c0_323] : memref<121x8x512xf32, #tpu.memory_space<vmem>>, vector<1x8x512xf32>
    %567 = vector.shape_cast %566 : vector<1x8x512xf32> to vector<8x512xf32>
    %568 = arith.mulf %565, %567 : vector<8x512xf32>
    %569 = arith.addf %563, %568 : vector<8x512xf32>
    %c511_i32_324 = arith.constant 511 : i32
    %570 = tpu.dynamic_rotate %565 by %c511_i32_324 dim 1 : vector<8x512xf32>, i32 -> vector<8x512xf32>
    %c111 = arith.constant 111 : index
    %c0_325 = arith.constant 0 : index
    %c0_326 = arith.constant 0 : index
    %571 = vector.load %arg2[%c111, %c0_325, %c0_326] : memref<121x8x512xf32, #tpu.memory_space<vmem>>, vector<1x8x512xf32>
    %572 = vector.shape_cast %571 : vector<1x8x512xf32> to vector<8x512xf32>
    %573 = arith.mulf %570, %572 : vector<8x512xf32>
    %574 = arith.addf %569, %573 : vector<8x512xf32>
    %c510_i32_327 = arith.constant 510 : i32
    %575 = tpu.dynamic_rotate %565 by %c510_i32_327 dim 1 : vector<8x512xf32>, i32 -> vector<8x512xf32>
    %c112 = arith.constant 112 : index
    %c0_328 = arith.constant 0 : index
    %c0_329 = arith.constant 0 : index
    %576 = vector.load %arg2[%c112, %c0_328, %c0_329] : memref<121x8x512xf32, #tpu.memory_space<vmem>>, vector<1x8x512xf32>
    %577 = vector.shape_cast %576 : vector<1x8x512xf32> to vector<8x512xf32>
    %578 = arith.mulf %575, %577 : vector<8x512xf32>
    %579 = arith.addf %574, %578 : vector<8x512xf32>
    %c509_i32_330 = arith.constant 509 : i32
    %580 = tpu.dynamic_rotate %565 by %c509_i32_330 dim 1 : vector<8x512xf32>, i32 -> vector<8x512xf32>
    %c113 = arith.constant 113 : index
    %c0_331 = arith.constant 0 : index
    %c0_332 = arith.constant 0 : index
    %581 = vector.load %arg2[%c113, %c0_331, %c0_332] : memref<121x8x512xf32, #tpu.memory_space<vmem>>, vector<1x8x512xf32>
    %582 = vector.shape_cast %581 : vector<1x8x512xf32> to vector<8x512xf32>
    %583 = arith.mulf %580, %582 : vector<8x512xf32>
    %584 = arith.addf %579, %583 : vector<8x512xf32>
    %c508_i32_333 = arith.constant 508 : i32
    %585 = tpu.dynamic_rotate %565 by %c508_i32_333 dim 1 : vector<8x512xf32>, i32 -> vector<8x512xf32>
    %c114 = arith.constant 114 : index
    %c0_334 = arith.constant 0 : index
    %c0_335 = arith.constant 0 : index
    %586 = vector.load %arg2[%c114, %c0_334, %c0_335] : memref<121x8x512xf32, #tpu.memory_space<vmem>>, vector<1x8x512xf32>
    %587 = vector.shape_cast %586 : vector<1x8x512xf32> to vector<8x512xf32>
    %588 = arith.mulf %585, %587 : vector<8x512xf32>
    %589 = arith.addf %584, %588 : vector<8x512xf32>
    %c507_i32_336 = arith.constant 507 : i32
    %590 = tpu.dynamic_rotate %565 by %c507_i32_336 dim 1 : vector<8x512xf32>, i32 -> vector<8x512xf32>
    %c115 = arith.constant 115 : index
    %c0_337 = arith.constant 0 : index
    %c0_338 = arith.constant 0 : index
    %591 = vector.load %arg2[%c115, %c0_337, %c0_338] : memref<121x8x512xf32, #tpu.memory_space<vmem>>, vector<1x8x512xf32>
    %592 = vector.shape_cast %591 : vector<1x8x512xf32> to vector<8x512xf32>
    %593 = arith.mulf %590, %592 : vector<8x512xf32>
    %594 = arith.addf %589, %593 : vector<8x512xf32>
    %c506_i32_339 = arith.constant 506 : i32
    %595 = tpu.dynamic_rotate %565 by %c506_i32_339 dim 1 : vector<8x512xf32>, i32 -> vector<8x512xf32>
    %c116 = arith.constant 116 : index
    %c0_340 = arith.constant 0 : index
    %c0_341 = arith.constant 0 : index
    %596 = vector.load %arg2[%c116, %c0_340, %c0_341] : memref<121x8x512xf32, #tpu.memory_space<vmem>>, vector<1x8x512xf32>
    %597 = vector.shape_cast %596 : vector<1x8x512xf32> to vector<8x512xf32>
    %598 = arith.mulf %595, %597 : vector<8x512xf32>
    %599 = arith.addf %594, %598 : vector<8x512xf32>
    %c505_i32_342 = arith.constant 505 : i32
    %600 = tpu.dynamic_rotate %565 by %c505_i32_342 dim 1 : vector<8x512xf32>, i32 -> vector<8x512xf32>
    %c117 = arith.constant 117 : index
    %c0_343 = arith.constant 0 : index
    %c0_344 = arith.constant 0 : index
    %601 = vector.load %arg2[%c117, %c0_343, %c0_344] : memref<121x8x512xf32, #tpu.memory_space<vmem>>, vector<1x8x512xf32>
    %602 = vector.shape_cast %601 : vector<1x8x512xf32> to vector<8x512xf32>
    %603 = arith.mulf %600, %602 : vector<8x512xf32>
    %604 = arith.addf %599, %603 : vector<8x512xf32>
    %c504_i32_345 = arith.constant 504 : i32
    %605 = tpu.dynamic_rotate %565 by %c504_i32_345 dim 1 : vector<8x512xf32>, i32 -> vector<8x512xf32>
    %c118 = arith.constant 118 : index
    %c0_346 = arith.constant 0 : index
    %c0_347 = arith.constant 0 : index
    %606 = vector.load %arg2[%c118, %c0_346, %c0_347] : memref<121x8x512xf32, #tpu.memory_space<vmem>>, vector<1x8x512xf32>
    %607 = vector.shape_cast %606 : vector<1x8x512xf32> to vector<8x512xf32>
    %608 = arith.mulf %605, %607 : vector<8x512xf32>
    %609 = arith.addf %604, %608 : vector<8x512xf32>
    %c503_i32_348 = arith.constant 503 : i32
    %610 = tpu.dynamic_rotate %565 by %c503_i32_348 dim 1 : vector<8x512xf32>, i32 -> vector<8x512xf32>
    %c119 = arith.constant 119 : index
    %c0_349 = arith.constant 0 : index
    %c0_350 = arith.constant 0 : index
    %611 = vector.load %arg2[%c119, %c0_349, %c0_350] : memref<121x8x512xf32, #tpu.memory_space<vmem>>, vector<1x8x512xf32>
    %612 = vector.shape_cast %611 : vector<1x8x512xf32> to vector<8x512xf32>
    %613 = arith.mulf %610, %612 : vector<8x512xf32>
    %614 = arith.addf %609, %613 : vector<8x512xf32>
    %c502_i32_351 = arith.constant 502 : i32
    %615 = tpu.dynamic_rotate %565 by %c502_i32_351 dim 1 : vector<8x512xf32>, i32 -> vector<8x512xf32>
    %c120 = arith.constant 120 : index
    %c0_352 = arith.constant 0 : index
    %c0_353 = arith.constant 0 : index
    %616 = vector.load %arg2[%c120, %c0_352, %c0_353] : memref<121x8x512xf32, #tpu.memory_space<vmem>>, vector<1x8x512xf32>
    %617 = vector.shape_cast %616 : vector<1x8x512xf32> to vector<8x512xf32>
    %618 = arith.mulf %615, %617 : vector<8x512xf32>
    %619 = arith.addf %614, %618 : vector<8x512xf32>
    %620 = arith.truncf %619 : vector<8x512xf32> to vector<8x512xbf16>
    %cst = arith.constant dense<0.000000e+00> : vector<32x512xf32>
    %621 = tpu.matmul %0, %620, %cst {dimension_numbers = #tpu.dot_dimension_numbers<[1], [0], [0], [1], [0, 0, 1, 1], [], []>} : vector<32x8xbf16>, vector<8x512xbf16>, vector<32x512xf32> -> vector<32x512xf32>
    %622 = vector.broadcast %2 : vector<32x1xf32> to vector<32x512xf32>
    %623 = arith.addf %621, %622 : vector<32x512xf32>
    %cst_354 = arith.constant 0.000000e+00 : f32
    %624 = vector.broadcast %cst_354 : f32 to vector<32x512xf32>
    %625 = arith.maximumf %623, %624 : vector<32x512xf32>
    %626 = arith.truncf %625 : vector<32x512xf32> to vector<32x512xbf16>
    %cst_355 = arith.constant dense<0.000000e+00> : vector<8x512xf32>
    %627 = tpu.matmul %1, %626, %cst_355 {dimension_numbers = #tpu.dot_dimension_numbers<[1], [0], [0], [1], [0, 0, 1, 1], [], []>} : vector<8x32xbf16>, vector<32x512xbf16>, vector<8x512xf32> -> vector<8x512xf32>
    %628 = vector.broadcast %3 : vector<8x1xf32> to vector<8x512xf32>
    %629 = arith.addf %627, %628 : vector<8x512xf32>
    %630 = arith.addf %629, %310 : vector<8x512xf32>
    %c0_356 = arith.constant 0 : index
    %c0_357 = arith.constant 0 : index
    %c0_358 = arith.constant 0 : index
    %631 = vector.load %arg7[%c0_356, %c0_357, %c0_358] : memref<1x8x512xf32, #tpu.memory_space<vmem>>, vector<1x8x512xf32>
    %632 = vector.shape_cast %631 : vector<1x8x512xf32> to vector<8x512xf32>
    %633 = vector.shape_cast %630 : vector<8x512xf32> to vector<1x8x512xf32>
    tpu.vector_store %arg7[%c0_356, %c0_357, %c0_358], %633 {strides = array<i32>} : memref<1x8x512xf32, #tpu.memory_space<vmem>>, vector<1x8x512xf32>,
    return
  }
  func.func @transform_0(%arg0: i32) -> (i32, i32, i32) {
    %c0_i32 = arith.constant 0 : i32
    %c0_i32_0 = arith.constant 0 : i32
    %c0_i32_1 = arith.constant 0 : i32
    return %arg0, %c0_i32, %c0_i32_0 : i32, i32, i32
  }
  func.func @transform_1(%arg0: i32) -> (i32, i32, i32) {
    %c0_i32 = arith.constant 0 : i32
    %c0_i32_0 = arith.constant 0 : i32
    %c0_i32_1 = arith.constant 0 : i32
    %c0_i32_2 = arith.constant 0 : i32
    return %c0_i32, %c0_i32_0, %c0_i32_1 : i32, i32, i32
  }
  func.func @transform_2(%arg0: i32) -> (i32, i32) {
    %c0_i32 = arith.constant 0 : i32
    %c0_i32_0 = arith.constant 0 : i32
    %c0_i32_1 = arith.constant 0 : i32
    return %c0_i32, %c0_i32_0 : i32, i32
  }
  func.func @transform_3(%arg0: i32) -> (i32, i32) {
    %c0_i32 = arith.constant 0 : i32
    %c0_i32_0 = arith.constant 0 : i32
    %c0_i32_1 = arith.constant 0 : i32
    return %c0_i32, %c0_i32_0 : i32, i32
  }
  func.func @transform_4(%arg0: i32) -> (i32, i32) {
    %c0_i32 = arith.constant 0 : i32
    %c0_i32_0 = arith.constant 0 : i32
    %c0_i32_1 = arith.constant 0 : i32
    return %c0_i32, %c0_i32_0 : i32, i32
  }
  func.func @transform_5(%arg0: i32) -> (i32, i32) {
    %c0_i32 = arith.constant 0 : i32
    %c0_i32_0 = arith.constant 0 : i32
    %c0_i32_1 = arith.constant 0 : i32
    return %c0_i32, %c0_i32_0 : i32, i32
  }
  func.func @transform_6(%arg0: i32) -> (i32, i32, i32) {
    %c0_i32 = arith.constant 0 : i32
    %c0_i32_0 = arith.constant 0 : i32
    %c0_i32_1 = arith.constant 0 : i32
    return %arg0, %c0_i32, %c0_i32_0 : i32, i32, i32
  }
}

</mosaic_0001>

<llo_original>
// kernel: tpu_custom_call.1
$region0: #{tpu_custom_call.1}
  #allocation0 [shape = 'u32[]', space=smem, size = 0x4, offset = 0x4, fixed_abs, tag = 'smem constant byte address 0x4 - core index']
  #allocation1 [shape = 'u32[144,128]{1,0:T(1,128)}', space=vmem, size = 0x12000, scoped, tag = 'internal scratch']
  %s0 = inlined_call_operand.hbm [shape: f32[2,8,768], index: 0, kind: input, shape index: {}]
  %s1 = inlined_call_operand.hbm [shape: f32[121,8,512], index: 1, kind: input, shape index: {}]
  %s2 = inlined_call_operand.vmem [shape: bf16[32,8], index: 2, kind: input, shape index: {}]
  %s3 = inlined_call_operand.hbm [shape: bf16[8,32], index: 3, kind: input, shape index: {}]
  %s4 = inlined_call_operand.vmem [shape: f32[32,1], index: 4, kind: input, shape index: {}]
  %s5 = inlined_call_operand.vmem [shape: f32[8,1], index: 5, kind: input, shape index: {}]
  %s6 = inlined_call_operand.hbm [shape: f32[2,8,512], index: 6, kind: output, shape index: {}]
  %s7 = sld [smem:[#allocation0]]
  $region69: #{tpu_custom_call.1} parent=0
    _
  %s9 = ssub.s32 1, %s7
  %s10 = scalar_select 0, %s9, %s7
  $region1: #{tpu_custom_call.1} parent=0
    #allocation2 [shape = 'u8[49152]{0}', space=vmem, size = 0xc000, scoped, tag = 'input window, operand 0']
    #allocation3 [shape = 's32[2]{0}', space=sflag, size = 0x8, scoped, tag = 'scoped memory for tpu_custom_call.1']
    #allocation4 [shape = 's32[2]{0}', space=sflag, size = 0x8, scoped, tag = 'scoped memory for tpu_custom_call.1']
    #allocation5 [shape = 'u8[1982464]{0}', space=vmem, size = 0x1e4000, scoped, tag = 'input window, operand 1, single buffered']
    #allocation6 [shape = 's32[1]{0}', space=sflag, size = 0x4, scoped, tag = 'scoped memory for tpu_custom_call.1']
    #allocation7 [shape = 'u8[2048]{0}', space=vmem, size = 0x800, scoped, tag = 'input window, operand 3, single buffered']
    #allocation8 [shape = 'u8[32768]{0}', space=vmem, size = 0x8000, scoped, tag = 'output window, operand 0']
    %11 = vsyncpa [#allocation3], 0
    %s12 = scalar_lea.sflag [#allocation3], 1
    %13 = vsyncpa %s12, 0
    %14 = vsyncpa [#allocation6], 0
    %15 = vsyncpa [#allocation4], 0
    %s16 = scalar_lea.sflag [#allocation4], 1
    %17 = vsyncpa %s16, 0
    loop: start=0, step=1, limit=4
    $region2: #{tpu_custom_call.1} parent=1 // loop_pre_header
      _
    $region3: #{tpu_custom_call.1} parent=1 // loop_header
      %s19 = sphi 0, %s23
      %p20 = scmp.ge.s32.totalorder %s19, 4
      %s29 = sphi 0, %s31
      %s32 = sphi 0, %s29
      %s33 = sphi 0, %s32
      %s49 = sphi 0, %s33
      %s53 = sphi 0, %s53
      %s55 = sphi 0, %s53
      %s56 = sphi 0, %s55
      %s70 = sphi 0, %s56
      %s74 = sphi 0, %s74
      %s76 = sphi 0, %s74
      %s77 = sphi 0, %s76
      %s91 = sphi 0, %s77
      %s95 = sphi 0, %s95
      %s97 = sphi 0, %s95
      %s98 = sphi 0, %s97
      %s112 = sphi 0, %s98
      %s116 = sphi 0, %s116
      %s118 = sphi 0, %s116
      %s119 = sphi 0, %s118
      %s133 = sphi 0, %s119
      %s137 = sphi 0, %s137
      %s139 = sphi 0, %s137
      %s140 = sphi 0, %s139
      %s154 = sphi 0, %s140
      %s160 = sphi 0, %s162
      %s163 = sphi 0, %s160
      %s164 = sphi 0, %s163
      %s180 = sphi 0, %s164
    $region4: #{tpu_custom_call.1} parent=1 // loop_header_branch
      %22 = sbr.rel (%p20) target = $region8
    $region5: #{tpu_custom_call.1} parent=1 // loop_body
      %s24 = ssub.s32 %s19, 1
      %s25 = ssub.s32 %s19, 2
      %s26 = sadd.s32 %s19, 1
      %s27 = ssub.s32 %s19, %s26
      %p28 = scmp.eq.s32.totalorder %s27, 0
      %s30 = sadd.s32 %s29, 1
      %s31 = scalar_select %p28, %s29, %s30
      %p34 = pneg %p28
      %p35 = scmp.eq.s32.totalorder %s19, 1
      %p36 = por %p34, %p35
      %p37 = scmp.ne.s32.totalorder %s29, %s32
      %p38 = scmp.eq.s32.totalorder %s19, 0
      %p39 = por %p37, %p38
      %p40 = scmp.ne.s32.totalorder %s29, %s32
      %p41 = scmp.eq.s32.totalorder %s24, 1
      %p42 = por %p40, %p41
      %p43 = scmp.ne.s32.totalorder %s32, %s33
      %p44 = scmp.eq.s32.totalorder %s24, 0
      %p45 = por %p43, %p44
      %p46 = scmp.ne.s32.totalorder %s32, %s33
      %p47 = scmp.eq.s32.totalorder %s25, 1
      %p48 = por %p46, %p47
      %p50 = scmp.ne.s32.totalorder %s33, %s49
      %p51 = scmp.eq.s32.totalorder %s25, 0
      %p52 = por %p50, %p51
      %s54 = sadd.s32 %s53, 1
      %p57 = scmp.eq.s32.totalorder %s19, 1
      %p58 = scmp.ne.s32.totalorder %s53, %s55
      %p59 = scmp.eq.s32.totalorder %s19, 0
      %p60 = por %p58, %p59
      %p61 = scmp.ne.s32.totalorder %s53, %s55
      %p62 = scmp.eq.s32.totalorder %s24, 1
      %p63 = por %p61, %p62
      %p64 = scmp.ne.s32.totalorder %s55, %s56
      %p65 = scmp.eq.s32.totalorder %s24, 0
      %p66 = por %p64, %p65
      %p67 = scmp.ne.s32.totalorder %s55, %s56
      %p68 = scmp.eq.s32.totalorder %s25, 1
      %p69 = por %p67, %p68
      %p71 = scmp.ne.s32.totalorder %s56, %s70
      %p72 = scmp.eq.s32.totalorder %s25, 0
      %p73 = por %p71, %p72
      %s75 = sadd.s32 %s74, 1
      %p78 = scmp.eq.s32.totalorder %s19, 1
      %p79 = scmp.ne.s32.totalorder %s74, %s76
      %p80 = scmp.eq.s32.totalorder %s19, 0
      %p81 = por %p79, %p80
      %p82 = scmp.ne.s32.totalorder %s74, %s76
      %p83 = scmp.eq.s32.totalorder %s24, 1
      %p84 = por %p82, %p83
      %p85 = scmp.ne.s32.totalorder %s76, %s77
      %p86 = scmp.eq.s32.totalorder %s24, 0
      %p87 = por %p85, %p86
      %p88 = scmp.ne.s32.totalorder %s76, %s77
      %p89 = scmp.eq.s32.totalorder %s25, 1
      %p90 = por %p88, %p89
      %p92 = scmp.ne.s32.totalorder %s77, %s91
      %p93 = scmp.eq.s32.totalorder %s25, 0
      %p94 = por %p92, %p93
      %s96 = sadd.s32 %s95, 1
      %p99 = scmp.eq.s32.totalorder %s19, 1
      %p100 = scmp.ne.s32.totalorder %s95, %s97
      %p101 = scmp.eq.s32.totalorder %s19, 0
      %p102 = por %p100, %p101
      %p103 = scmp.ne.s32.totalorder %s95, %s97
      %p104 = scmp.eq.s32.totalorder %s24, 1
      %p105 = por %p103, %p104
      %p106 = scmp.ne.s32.totalorder %s97, %s98
      %p107 = scmp.eq.s32.totalorder %s24, 0
      %p108 = por %p106, %p107
      %p109 = scmp.ne.s32.totalorder %s97, %s98
      %p110 = scmp.eq.s32.totalorder %s25, 1
      %p111 = por %p109, %p110
      %p113 = scmp.ne.s32.totalorder %s98, %s112
      %p114 = scmp.eq.s32.totalorder %s25, 0
      %p115 = por %p113, %p114
      %s117 = sadd.s32 %s116, 1
      %p120 = scmp.eq.s32.totalorder %s19, 1
      %p121 = scmp.ne.s32.totalorder %s116, %s118
      %p122 = scmp.eq.s32.totalorder %s19, 0
      %p123 = por %p121, %p122
      %p124 = scmp.ne.s32.totalorder %s116, %s118
      %p125 = scmp.eq.s32.totalorder %s24, 1
      %p126 = por %p124, %p125
      %p127 = scmp.ne.s32.totalorder %s118, %s119
      %p128 = scmp.eq.s32.totalorder %s24, 0
      %p129 = por %p127, %p128
      %p130 = scmp.ne.s32.totalorder %s118, %s119
      %p131 = scmp.eq.s32.totalorder %s25, 1
      %p132 = por %p130, %p131
      %p134 = scmp.ne.s32.totalorder %s119, %s133
      %p135 = scmp.eq.s32.totalorder %s25, 0
      %p136 = por %p134, %p135
      %s138 = sadd.s32 %s137, 1
      %p141 = scmp.eq.s32.totalorder %s19, 1
      %p142 = scmp.ne.s32.totalorder %s137, %s139
      %p143 = scmp.eq.s32.totalorder %s19, 0
      %p144 = por %p142, %p143
      %p145 = scmp.ne.s32.totalorder %s137, %s139
      %p146 = scmp.eq.s32.totalorder %s24, 1
      %p147 = por %p145, %p146
      %p148 = scmp.ne.s32.totalorder %s139, %s140
      %p149 = scmp.eq.s32.totalorder %s24, 0
      %p150 = por %p148, %p149
      %p151 = scmp.ne.s32.totalorder %s139, %s140
      %p152 = scmp.eq.s32.totalorder %s25, 1
      %p153 = por %p151, %p152
      %p155 = scmp.ne.s32.totalorder %s140, %s154
      %p156 = scmp.eq.s32.totalorder %s25, 0
      %p157 = por %p155, %p156
      %s158 = ssub.s32 %s19, %s26
      %p159 = scmp.eq.s32.totalorder %s158, 0
      %s161 = sadd.s32 %s160, 1
      %s162 = scalar_select %p159, %s160, %s161
      %p165 = pneg %p159
      %p166 = scmp.eq.s32.totalorder %s19, 1
      %p167 = por %p165, %p166
      %p168 = scmp.ne.s32.totalorder %s160, %s163
      %p169 = scmp.eq.s32.totalorder %s19, 0
      %p170 = por %p168, %p169
      %p171 = scmp.ne.s32.totalorder %s160, %s163
      %p172 = scmp.eq.s32.totalorder %s24, 1
      %p173 = por %p171, %p172
      %p174 = scmp.ne.s32.totalorder %s163, %s164
      %p175 = scmp.eq.s32.totalorder %s24, 0
      %p176 = por %p174, %p175
      %p177 = scmp.ne.s32.totalorder %s163, %s164
      %p178 = scmp.eq.s32.totalorder %s25, 1
      %p179 = por %p177, %p178
      %p181 = scmp.ne.s32.totalorder %s164, %s180
      %p182 = scmp.eq.s32.totalorder %s25, 0
      %p183 = por %p181, %p182
      %p184 = scmp.le.s32.totalorder 1, %s19
      %p185 = scmp.lt.s32.totalorder %s19, 3
      %p186 = pnand %p184, %p185
      %p187 = pneg %p186
      // Predicated region
      $region9: #{tpu_custom_call.1} parent=5 // pred_check
        _
      $region10: #{tpu_custom_call.1} parent=5 // pred_check_branch
        %189 = sbr.rel (%p186) target = $region12
      $region11: #{tpu_custom_call.1} parent=5 // pred_region
        %s190 = ssub.s32 %s19, 1
        // Predicated region
        $region13: #{tpu_custom_call.1} parent=11 // pred_check
          %p191 = pneg %p66
        $region14: #{tpu_custom_call.1} parent=11 // pred_check_branch
          %193 = sbr.rel (%p191) target = $region16
        $region15: #{tpu_custom_call.1} parent=11 // pred_region
          %s195 = ssub.s32 61952, 61952
          %196 = vsyncadd [#allocation6], %s195
          %s197 = sshll.u32 [#allocation5], 4
          %s198 = int_to_ptr.vmem [resolvable:$true] %s197
          %203 = dma.hbm_to_vmem [thread:$0]  %s1, 61952, %s198, [#allocation6], 512, 512, 32
        $region16: #{tpu_custom_call.1} parent=11 // pred_fallthru
          _
        // Predicated region
        $region17: #{tpu_custom_call.1} parent=11 // pred_check
          %p204 = pneg %p87
        $region18: #{tpu_custom_call.1} parent=11 // pred_check_branch
          %206 = sbr.rel (%p204) target = $region20
        $region19: #{tpu_custom_call.1} parent=11 // pred_region
          _
        $region20: #{tpu_custom_call.1} parent=11 // pred_fallthru
          _
        // Predicated region
        $region21: #{tpu_custom_call.1} parent=11 // pred_check
          %p207 = pneg %p108
        $region22: #{tpu_custom_call.1} parent=11 // pred_check_branch
          %209 = sbr.rel (%p207) target = $region24
        $region23: #{tpu_custom_call.1} parent=11 // pred_region
          %s211 = ssub.s32 64, 64
          %212 = vsyncadd [#allocation6], %s211
          %s214 = sshll.u32 [#allocation7], 4
          %s215 = int_to_ptr.vmem [resolvable:$true] %s214
          %217 = dma.hbm_to_vmem [thread:$0]  %s3, 64, %s215, [#allocation6]
        $region24: #{tpu_custom_call.1} parent=11 // pred_fallthru
          _
        // Predicated region
        $region25: #{tpu_custom_call.1} parent=11 // pred_check
          %p218 = pneg %p129
        $region26: #{tpu_custom_call.1} parent=11 // pred_check_branch
          %220 = sbr.rel (%p218) target = $region28
        $region27: #{tpu_custom_call.1} parent=11 // pred_region
          _
        $region28: #{tpu_custom_call.1} parent=11 // pred_fallthru
          _
        // Predicated region
        $region29: #{tpu_custom_call.1} parent=11 // pred_check
          %p221 = pneg %p150
        $region30: #{tpu_custom_call.1} parent=11 // pred_check_branch
          %223 = sbr.rel (%p221) target = $region32
        $region31: #{tpu_custom_call.1} parent=11 // pred_region
          _
        $region32: #{tpu_custom_call.1} parent=11 // pred_fallthru
          _
      $region12: #{tpu_custom_call.1} parent=5 // pred_fallthru
        _
      %p224 = scmp.lt.s32.totalorder %s19, 2
      // Predicated region
      $region33: #{tpu_custom_call.1} parent=5 // pred_check
        %p225 = pneg %p224
      $region34: #{tpu_custom_call.1} parent=5 // pred_check_branch
        %227 = sbr.rel (%p225) target = $region36
      $region35: #{tpu_custom_call.1} parent=5 // pred_region
        // Predicated region
        $region37: #{tpu_custom_call.1} parent=35 // pred_check
          %p228 = pneg %p39
        $region38: #{tpu_custom_call.1} parent=35 // pred_check_branch
          %230 = sbr.rel (%p228) target = $region40
        $region39: #{tpu_custom_call.1} parent=35 // pred_region
          %s231 = sand.u32 %s29, 1
          %s232 = scalar_lea.sflag [#allocation3], %s231
          %s233 = sand.u32 %s29, 1
          %s234 = smul.addr %s233, 48
          %s235 = scalar_lea.vmem [#allocation2], %s234
          %s237 = ssub.s32 768, 768
          %238 = vsyncadd %s232, %s237
          %s239 = smul.addr %s19, 6
          %s240 = smul.addr %s239, 128
          %s241 = scalar_lea.hbm %s0, %s240
          %s243 = sshll.u32 %s235, 4
          %s244 = int_to_ptr.vmem [resolvable:$true] %s243
          %246 = dma.hbm_to_vmem [thread:$0]  %s241, 768, %s244, %s232
        $region40: #{tpu_custom_call.1} parent=35 // pred_fallthru
          _
      $region36: #{tpu_custom_call.1} parent=5 // pred_fallthru
        _
      %p247 = scmp.le.s32.totalorder 1, %s19
      %p248 = scmp.lt.s32.totalorder %s19, 3
      %p249 = pnand %p247, %p248
      %p250 = pneg %p249
      // Predicated region
      $region41: #{tpu_custom_call.1} parent=5 // pred_check
        _
      $region42: #{tpu_custom_call.1} parent=5 // pred_check_branch
        %252 = sbr.rel (%p249) target = $region44
      $region43: #{tpu_custom_call.1} parent=5 // pred_region
        %s253 = ssub.s32 %s19, 1
        %s254 = sand.u32 %s32, 1
        %s255 = scalar_lea.sflag [#allocation3], %s254
        %s256 = sand.u32 %s32, 1
        %s257 = smul.addr %s256, 48
        %s258 = scalar_lea.vmem [#allocation2], %s257
        // Predicated region
        $region45: #{tpu_custom_call.1} parent=43 // pred_check
          %p259 = pneg %p45
        $region46: #{tpu_custom_call.1} parent=43 // pred_check_branch
          %261 = sbr.rel (%p259) target = $region48
        $region47: #{tpu_custom_call.1} parent=43 // pred_region
          %262 = dma.done %s255, 768
        $region48: #{tpu_custom_call.1} parent=43 // pred_fallthru
          _
        // Predicated region
        $region49: #{tpu_custom_call.1} parent=43 // pred_check
          %p263 = pneg %p66
        $region50: #{tpu_custom_call.1} parent=43 // pred_check_branch
          %265 = sbr.rel (%p263) target = $region52
        $region51: #{tpu_custom_call.1} parent=43 // pred_region
          %266 = dma.done [#allocation6], 61952
        $region52: #{tpu_custom_call.1} parent=43 // pred_fallthru
          _
        // Predicated region
        $region53: #{tpu_custom_call.1} parent=43 // pred_check
          %p267 = pneg %p108
        $region54: #{tpu_custom_call.1} parent=43 // pred_check_branch
          %269 = sbr.rel (%p267) target = $region56
        $region55: #{tpu_custom_call.1} parent=43 // pred_region
          %270 = dma.done [#allocation6], 64
        $region56: #{tpu_custom_call.1} parent=43 // pred_fallthru
          _
        %s271 = sand.u32 %s32, 1
        %s272 = scalar_lea.sflag [#allocation3], %s271
        %s273 = sand.u32 %s32, 1
        %s274 = smul.addr %s273, 48
        %s275 = scalar_lea.vmem [#allocation2], %s274
        %p276 = pneg %p45
        %p277 = pneg %p42
        %p278 = pneg %p66
        %p279 = pneg %p63
        %p280 = pneg %p87
        %p281 = pneg %p84
        %p282 = pneg %p108
        %p283 = pneg %p105
        %p284 = pneg %p129
        %p285 = pneg %p126
        %p286 = pneg %p150
        %p287 = pneg %p147
        %p288 = pneg %p176
        %p289 = pneg %p173
        %s290 = sand.u32 %s163, 1
        %s291 = scalar_lea.sflag [#allocation4], %s290
        %s292 = sand.u32 %s163, 1
        %s293 = smul.addr %s292, 32
        %s294 = scalar_lea.vmem [#allocation8], %s293
        %v296 = vld [vmem:[%s2] sm:$0xf]
        %v297 = vld [vmem:[%s2 + $0x4] sm:$0xf]
        %v298 = vld [vmem:[%s2 + $0x8] sm:$0xf]
        %v299 = vld [vmem:[%s2 + $0xc] sm:$0xf]
        %v300 = vld [vmem:[#allocation7] sm:$0xf]
        %v301 = vld [vmem:[%s4] sm:$0xff]
        %v302 = vld [vmem:[%s4 + $0x8] sm:$0xff]
        %v303 = vld [vmem:[%s4 + $0x10] sm:$0xff]
        %v304 = vld [vmem:[%s4 + $0x18] sm:$0xff]
        %v305 = vld [vmem:[%s5] sm:$0xff]
        %v306 = vld [vmem:[%s258] sm:$0xff]
        %v307 = vld [vmem:[%s258 + $0x8] sm:$0xff]
        %v308 = vld [vmem:[%s258 + $0x10] sm:$0xff]
        %v309 = vld [vmem:[%s258 + $0x18] sm:$0xff]
        %v310 = vld [vmem:[%s258 + $0x20] sm:$0xff]
        %v311 = vld [vmem:[%s258 + $0x28] sm:$0xff]
        %v312 = vld [vmem:[#allocation5] sm:$0xff]
        %v313 = vld [vmem:[#allocation5 + $0x8] sm:$0xff]
        %v314 = vld [vmem:[#allocation5 + $0x10] sm:$0xff]
        %v315 = vld [vmem:[#allocation5 + $0x18] sm:$0xff]
        %v316 = vmul.f32 %v306, %v312
        %v317 = vmul.f32 %v307, %v313
        %v318 = vmul.f32 %v308, %v314
        %v319 = vmul.f32 %v309, %v315
        %320 = vrot.lane.b32.xlu0 %v306, 127
        %v321 = vpop.permute.xlu0 %320
        %322 = vrot.lane.b32.xlu0 %v307, 127
        %v323 = vpop.permute.xlu0 %322
        %324 = vrot.lane.b32.xlu0 %v308, 127
        %v325 = vpop.permute.xlu0 %324
        %326 = vrot.lane.b32.xlu0 %v309, 127
        %v327 = vpop.permute.xlu0 %326
        %v328 = vlaneseq
        %v329 = vand.u32 %v328, 127
        %vm330 = vcmp.lt.s32.totalorder %v329, 127
        %v331 = vsel %vm330, %v325, %v327
        %v332 = vsel %vm330, %v323, %v325
        %v333 = vsel %vm330, %v321, %v323
        %v334 = vsel %vm330, %v327, %v321
        %s335 = scalar_lea.vmem [#allocation5], 32
        %v336 = vld [vmem:[%s335] sm:$0xff]
        %v337 = vld [vmem:[%s335 + $0x8] sm:$0xff]
        %v338 = vld [vmem:[%s335 + $0x10] sm:$0xff]
        %v339 = vld [vmem:[%s335 + $0x18] sm:$0xff]
        %v340 = vmul.f32 %v333, %v336
        %v341 = vmul.f32 %v332, %v337
        %v342 = vmul.f32 %v331, %v338
        %v343 = vmul.f32 %v334, %v339
        %v344 = vadd.f32 %v316, %v340
        %v345 = vadd.f32 %v317, %v341
        %v346 = vadd.f32 %v318, %v342
        %v347 = vadd.f32 %v319, %v343
        %348 = vrot.lane.b32.xlu0 %v306, 126
        %v349 = vpop.permute.xlu0 %348
        %350 = vrot.lane.b32.xlu0 %v307, 126
        %v351 = vpop.permute.xlu0 %350
        %352 = vrot.lane.b32.xlu0 %v308, 126
        %v353 = vpop.permute.xlu0 %352
        %354 = vrot.lane.b32.xlu0 %v309, 126
        %v355 = vpop.permute.xlu0 %354
        %vm356 = vcmp.lt.s32.totalorder %v329, 126
        %v357 = vsel %vm356, %v353, %v355
        %v358 = vsel %vm356, %v351, %v353
        %v359 = vsel %vm356, %v349, %v351
        %v360 = vsel %vm356, %v355, %v349
        %s361 = scalar_lea.vmem [#allocation5], 64
        %v362 = vld [vmem:[%s361] sm:$0xff]
        %v363 = vld [vmem:[%s361 + $0x8] sm:$0xff]
        %v364 = vld [vmem:[%s361 + $0x10] sm:$0xff]
        %v365 = vld [vmem:[%s361 + $0x18] sm:$0xff]
        %v366 = vmul.f32 %v359, %v362
        %v367 = vmul.f32 %v358, %v363
        %v368 = vmul.f32 %v357, %v364
        %v369 = vmul.f32 %v360, %v365
        %v370 = vadd.f32 %v344, %v366
        %v371 = vadd.f32 %v345, %v367
        %v372 = vadd.f32 %v346, %v368
        %v373 = vadd.f32 %v347, %v369
        %374 = vrot.lane.b32.xlu0 %v306, 125
        %v375 = vpop.permute.xlu0 %374
        %376 = vrot.lane.b32.xlu0 %v307, 125
        %v377 = vpop.permute.xlu0 %376
        %378 = vrot.lane.b32.xlu0 %v308, 125
        %v379 = vpop.permute.xlu0 %378
        %380 = vrot.lane.b32.xlu0 %v309, 125
        %v381 = vpop.permute.xlu0 %380
        %vm382 = vcmp.lt.s32.totalorder %v329, 125
        %v383 = vsel %vm382, %v379, %v381
        %v384 = vsel %vm382, %v377, %v379
        %v385 = vsel %vm382, %v375, %v377
        %v386 = vsel %vm382, %v381, %v375
        %s387 = scalar_lea.vmem [#allocation5], 96
        %v388 = vld [vmem:[%s387] sm:$0xff]
        %v389 = vld [vmem:[%s387 + $0x8] sm:$0xff]
        %v390 = vld [vmem:[%s387 + $0x10] sm:$0xff]
        %v391 = vld [vmem:[%s387 + $0x18] sm:$0xff]
        %v392 = vmul.f32 %v385, %v388
        %v393 = vmul.f32 %v384, %v389
        %v394 = vmul.f32 %v383, %v390
        %v395 = vmul.f32 %v386, %v391
        %v396 = vadd.f32 %v370, %v392
        %v397 = vadd.f32 %v371, %v393
        %v398 = vadd.f32 %v372, %v394
        %v399 = vadd.f32 %v373, %v395
        %400 = vrot.lane.b32.xlu0 %v306, 124
        %v401 = vpop.permute.xlu0 %400
        %402 = vrot.lane.b32.xlu0 %v307, 124
        %v403 = vpop.permute.xlu0 %402
        %404 = vrot.lane.b32.xlu0 %v308, 124
        %v405 = vpop.permute.xlu0 %404
        %406 = vrot.lane.b32.xlu0 %v309, 124
        %v407 = vpop.permute.xlu0 %406
        %vm408 = vcmp.lt.s32.totalorder %v329, 124
        %v409 = vsel %vm408, %v405, %v407
        %v410 = vsel %vm408, %v403, %v405
        %v411 = vsel %vm408, %v401, %v403
        %v412 = vsel %vm408, %v407, %v401
        %s413 = scalar_lea.vmem [#allocation5], 128
        %v414 = vld [vmem:[%s413] sm:$0xff]
        %v415 = vld [vmem:[%s413 + $0x8] sm:$0xff]
        %v416 = vld [vmem:[%s413 + $0x10] sm:$0xff]
        %v417 = vld [vmem:[%s413 + $0x18] sm:$0xff]
        %v418 = vmul.f32 %v411, %v414
        %v419 = vmul.f32 %v410, %v415
        %v420 = vmul.f32 %v409, %v416
        %v421 = vmul.f32 %v412, %v417
        %v422 = vadd.f32 %v396, %v418
        %v423 = vadd.f32 %v397, %v419
        %v424 = vadd.f32 %v398, %v420
        %v425 = vadd.f32 %v399, %v421
        %426 = vrot.lane.b32.xlu0 %v306, 123
        %v427 = vpop.permute.xlu0 %426
        %428 = vrot.lane.b32.xlu0 %v307, 123
        %v429 = vpop.permute.xlu0 %428
        %430 = vrot.lane.b32.xlu0 %v308, 123
        %v431 = vpop.permute.xlu0 %430
        %432 = vrot.lane.b32.xlu0 %v309, 123
        %v433 = vpop.permute.xlu0 %432
        %vm434 = vcmp.lt.s32.totalorder %v329, 123
        %v435 = vsel %vm434, %v431, %v433
        %v436 = vsel %vm434, %v429, %v431
        %v437 = vsel %vm434, %v427, %v429
        %v438 = vsel %vm434, %v433, %v427
        %s439 = scalar_lea.vmem [#allocation5], 160
        %v440 = vld [vmem:[%s439] sm:$0xff]
        %v441 = vld [vmem:[%s439 + $0x8] sm:$0xff]
        %v442 = vld [vmem:[%s439 + $0x10] sm:$0xff]
        %v443 = vld [vmem:[%s439 + $0x18] sm:$0xff]
        %v444 = vmul.f32 %v437, %v440
        %v445 = vmul.f32 %v436, %v441
        %v446 = vmul.f32 %v435, %v442
        %v447 = vmul.f32 %v438, %v443
        %v448 = vadd.f32 %v422, %v444
        %v449 = vadd.f32 %v423, %v445
        %v450 = vadd.f32 %v424, %v446
        %v451 = vadd.f32 %v425, %v447
        %452 = vrot.lane.b32.xlu0 %v306, 122
        %v453 = vpop.permute.xlu0 %452
        %454 = vrot.lane.b32.xlu0 %v307, 122
        %v455 = vpop.permute.xlu0 %454
        %456 = vrot.lane.b32.xlu0 %v308, 122
        %v457 = vpop.permute.xlu0 %456
        %458 = vrot.lane.b32.xlu0 %v309, 122
        %v459 = vpop.permute.xlu0 %458
        %vm460 = vcmp.lt.s32.totalorder %v329, 122
        %v461 = vsel %vm460, %v457, %v459
        %v462 = vsel %vm460, %v455, %v457
        %v463 = vsel %vm460, %v453, %v455
        %v464 = vsel %vm460, %v459, %v453
        %s465 = scalar_lea.vmem [#allocation5], 192
        %v466 = vld [vmem:[%s465] sm:$0xff]
        %v467 = vld [vmem:[%s465 + $0x8] sm:$0xff]
        %v468 = vld [vmem:[%s465 + $0x10] sm:$0xff]
        %v469 = vld [vmem:[%s465 + $0x18] sm:$0xff]
        %v470 = vmul.f32 %v463, %v466
        %v471 = vmul.f32 %v462, %v467
        %v472 = vmul.f32 %v461, %v468
        %v473 = vmul.f32 %v464, %v469
        %v474 = vadd.f32 %v448, %v470
        %v475 = vadd.f32 %v449, %v471
        %v476 = vadd.f32 %v450, %v472
        %v477 = vadd.f32 %v451, %v473
        %478 = vrot.lane.b32.xlu0 %v306, 121
        %v479 = vpop.permute.xlu0 %478
        %480 = vrot.lane.b32.xlu0 %v307, 121
        %v481 = vpop.permute.xlu0 %480
        %482 = vrot.lane.b32.xlu0 %v308, 121
        %v483 = vpop.permute.xlu0 %482
        %484 = vrot.lane.b32.xlu0 %v309, 121
        %v485 = vpop.permute.xlu0 %484
        %vm486 = vcmp.lt.s32.totalorder %v329, 121
        %v487 = vsel %vm486, %v483, %v485
        %v488 = vsel %vm486, %v481, %v483
        %v489 = vsel %vm486, %v479, %v481
        %v490 = vsel %vm486, %v485, %v479
        %s491 = scalar_lea.vmem [#allocation5], 224
        %v492 = vld [vmem:[%s491] sm:$0xff]
        %v493 = vld [vmem:[%s491 + $0x8] sm:$0xff]
        %v494 = vld [vmem:[%s491 + $0x10] sm:$0xff]
        %v495 = vld [vmem:[%s491 + $0x18] sm:$0xff]
        %v496 = vmul.f32 %v489, %v492
        %v497 = vmul.f32 %v488, %v493
        %v498 = vmul.f32 %v487, %v494
        %v499 = vmul.f32 %v490, %v495
        %v500 = vadd.f32 %v474, %v496
        %v501 = vadd.f32 %v475, %v497
        %v502 = vadd.f32 %v476, %v498
        %v503 = vadd.f32 %v477, %v499
        %504 = vrot.lane.b32.xlu0 %v306, 120
        %v505 = vpop.permute.xlu0 %504
        %506 = vrot.lane.b32.xlu0 %v307, 120
        %v507 = vpop.permute.xlu0 %506
        %508 = vrot.lane.b32.xlu0 %v308, 120
        %v509 = vpop.permute.xlu0 %508
        %510 = vrot.lane.b32.xlu0 %v309, 120
        %v511 = vpop.permute.xlu0 %510
        %vm512 = vcmp.lt.s32.totalorder %v329, 120
        %v513 = vsel %vm512, %v509, %v511
        %v514 = vsel %vm512, %v507, %v509
        %v515 = vsel %vm512, %v505, %v507
        %v516 = vsel %vm512, %v511, %v505
        %s517 = scalar_lea.vmem [#allocation5], 256
        %v518 = vld [vmem:[%s517] sm:$0xff]
        %v519 = vld [vmem:[%s517 + $0x8] sm:$0xff]
        %v520 = vld [vmem:[%s517 + $0x10] sm:$0xff]
        %v521 = vld [vmem:[%s517 + $0x18] sm:$0xff]
        %v522 = vmul.f32 %v515, %v518
        %v523 = vmul.f32 %v514, %v519
        %v524 = vmul.f32 %v513, %v520
        %v525 = vmul.f32 %v516, %v521
        %v526 = vadd.f32 %v500, %v522
        %v527 = vadd.f32 %v501, %v523
        %v528 = vadd.f32 %v502, %v524
        %v529 = vadd.f32 %v503, %v525
        %530 = vrot.lane.b32.xlu0 %v306, 119
        %v531 = vpop.permute.xlu0 %530
        %532 = vrot.lane.b32.xlu0 %v307, 119
        %v533 = vpop.permute.xlu0 %532
        %534 = vrot.lane.b32.xlu0 %v308, 119
        %v535 = vpop.permute.xlu0 %534
        %536 = vrot.lane.b32.xlu0 %v309, 119
        %v537 = vpop.permute.xlu0 %536
        %vm538 = vcmp.lt.s32.totalorder %v329, 119
        %v539 = vsel %vm538, %v535, %v537
        %v540 = vsel %vm538, %v533, %v535
        %v541 = vsel %vm538, %v531, %v533
        %v542 = vsel %vm538, %v537, %v531
        %s543 = scalar_lea.vmem [#allocation5], 288
        %v544 = vld [vmem:[%s543] sm:$0xff]
        %v545 = vld [vmem:[%s543 + $0x8] sm:$0xff]
        %v546 = vld [vmem:[%s543 + $0x10] sm:$0xff]
        %v547 = vld [vmem:[%s543 + $0x18] sm:$0xff]
        %v548 = vmul.f32 %v541, %v544
        %v549 = vmul.f32 %v540, %v545
        %v550 = vmul.f32 %v539, %v546
        %v551 = vmul.f32 %v542, %v547
        %v552 = vadd.f32 %v526, %v548
        %v553 = vadd.f32 %v527, %v549
        %v554 = vadd.f32 %v528, %v550
        %v555 = vadd.f32 %v529, %v551
        %556 = vrot.lane.b32.xlu0 %v306, 118
        %v557 = vpop.permute.xlu0 %556
        %558 = vrot.lane.b32.xlu0 %v307, 118
        %v559 = vpop.permute.xlu0 %558
        %560 = vrot.lane.b32.xlu0 %v308, 118
        %v561 = vpop.permute.xlu0 %560
        %562 = vrot.lane.b32.xlu0 %v309, 118
        %v563 = vpop.permute.xlu0 %562
        %vm564 = vcmp.lt.s32.totalorder %v329, 118
        %v565 = vsel %vm564, %v561, %v563
        %v566 = vsel %vm564, %v559, %v561
        %v567 = vsel %vm564, %v557, %v559
        %v568 = vsel %vm564, %v563, %v557
        %s569 = scalar_lea.vmem [#allocation5], 320
        %v570 = vld [vmem:[%s569] sm:$0xff]
        %v571 = vld [vmem:[%s569 + $0x8] sm:$0xff]
        %v572 = vld [vmem:[%s569 + $0x10] sm:$0xff]
        %v573 = vld [vmem:[%s569 + $0x18] sm:$0xff]
        %v574 = vmul.f32 %v567, %v570
        %v575 = vmul.f32 %v566, %v571
        %v576 = vmul.f32 %v565, %v572
        %v577 = vmul.f32 %v568, %v573
        %v578 = vadd.f32 %v552, %v574
        %v579 = vadd.f32 %v553, %v575
        %v580 = vadd.f32 %v554, %v576
        %v581 = vadd.f32 %v555, %v577
        %582 = vrot.lane.b32.xlu0 %v306, 102
        %v583 = vpop.permute.xlu0 %582
        %584 = vrot.lane.b32.xlu0 %v307, 102
        %v585 = vpop.permute.xlu0 %584
        %586 = vrot.lane.b32.xlu0 %v308, 102
        %v587 = vpop.permute.xlu0 %586
        %588 = vrot.lane.b32.xlu0 %v309, 102
        %v589 = vpop.permute.xlu0 %588
        %590 = vrot.lane.b32.xlu0 %v310, 102
        %v591 = vpop.permute.xlu0 %590
        %vm592 = vcmp.lt.s32.totalorder %v329, 102
        %v593 = vsel %vm592, %v589, %v591
        %v594 = vsel %vm592, %v587, %v589
        %v595 = vsel %vm592, %v585, %v587
        %v596 = vsel %vm592, %v583, %v585
        %s597 = scalar_lea.vmem [#allocation5], 352
        %v598 = vld [vmem:[%s597] sm:$0xff]
        %v599 = vld [vmem:[%s597 + $0x8] sm:$0xff]
        %v600 = vld [vmem:[%s597 + $0x10] sm:$0xff]
        %v601 = vld [vmem:[%s597 + $0x18] sm:$0xff]
        %v602 = vmul.f32 %v596, %v598
        %v603 = vmul.f32 %v595, %v599
        %v604 = vmul.f32 %v594, %v600
        %v605 = vmul.f32 %v593, %v601
        %v606 = vadd.f32 %v578, %v602
        %v607 = vadd.f32 %v579, %v603
        %v608 = vadd.f32 %v580, %v604
        %v609 = vadd.f32 %v581, %v605
        %610 = vrot.lane.b32.xlu0 %v596, 127
        %v611 = vpop.permute.xlu0 %610
        %612 = vrot.lane.b32.xlu0 %v595, 127
        %v613 = vpop.permute.xlu0 %612
        %614 = vrot.lane.b32.xlu0 %v594, 127
        %v615 = vpop.permute.xlu0 %614
        %616 = vrot.lane.b32.xlu0 %v593, 127
        %v617 = vpop.permute.xlu0 %616
        %v618 = vsel %vm330, %v615, %v617
        %v619 = vsel %vm330, %v613, %v615
        %v620 = vsel %vm330, %v611, %v613
        %v621 = vsel %vm330, %v617, %v611
        %s622 = scalar_lea.vmem [#allocation5], 384
        %v623 = vld [vmem:[%s622] sm:$0xff]
        %v624 = vld [vmem:[%s622 + $0x8] sm:$0xff]
        %v625 = vld [vmem:[%s622 + $0x10] sm:$0xff]
        %v626 = vld [vmem:[%s622 + $0x18] sm:$0xff]
        %v627 = vmul.f32 %v620, %v623
        %v628 = vmul.f32 %v619, %v624
        %v629 = vmul.f32 %v618, %v625
        %v630 = vmul.f32 %v621, %v626
        %v631 = vadd.f32 %v606, %v627
        %v632 = vadd.f32 %v607, %v628
        %v633 = vadd.f32 %v608, %v629
        %v634 = vadd.f32 %v609, %v630
        %635 = vrot.lane.b32.xlu0 %v596, 126
        %v636 = vpop.permute.xlu0 %635
        %637 = vrot.lane.b32.xlu0 %v595, 126
        %v638 = vpop.permute.xlu0 %637
        %639 = vrot.lane.b32.xlu0 %v594, 126
        %v640 = vpop.permute.xlu0 %639
        %641 = vrot.lane.b32.xlu0 %v593, 126
        %v642 = vpop.permute.xlu0 %641
        %v643 = vsel %vm356, %v640, %v642
        %v644 = vsel %vm356, %v638, %v640
        %v645 = vsel %vm356, %v636, %v638
        %v646 = vsel %vm356, %v642, %v636
        %s647 = scalar_lea.vmem [#allocation5], 416
        %v648 = vld [vmem:[%s647] sm:$0xff]
        %v649 = vld [vmem:[%s647 + $0x8] sm:$0xff]
        %v650 = vld [vmem:[%s647 + $0x10] sm:$0xff]
        %v651 = vld [vmem:[%s647 + $0x18] sm:$0xff]
        %v652 = vmul.f32 %v645, %v648
        %v653 = vmul.f32 %v644, %v649
        %v654 = vmul.f32 %v643, %v650
        %v655 = vmul.f32 %v646, %v651
        %v656 = vadd.f32 %v631, %v652
        %v657 = vadd.f32 %v632, %v653
        %v658 = vadd.f32 %v633, %v654
        %v659 = vadd.f32 %v634, %v655
        %660 = vrot.lane.b32.xlu0 %v596, 125
        %v661 = vpop.permute.xlu0 %660
        %662 = vrot.lane.b32.xlu0 %v595, 125
        %v663 = vpop.permute.xlu0 %662
        %664 = vrot.lane.b32.xlu0 %v594, 125
        %v665 = vpop.permute.xlu0 %664
        %666 = vrot.lane.b32.xlu0 %v593, 125
        %v667 = vpop.permute.xlu0 %666
        %v668 = vsel %vm382, %v665, %v667
        %v669 = vsel %vm382, %v663, %v665
        %v670 = vsel %vm382, %v661, %v663
        %v671 = vsel %vm382, %v667, %v661
        %s672 = scalar_lea.vmem [#allocation5], 448
        %v673 = vld [vmem:[%s672] sm:$0xff]
        %v674 = vld [vmem:[%s672 + $0x8] sm:$0xff]
        %v675 = vld [vmem:[%s672 + $0x10] sm:$0xff]
        %v676 = vld [vmem:[%s672 + $0x18] sm:$0xff]
        %v677 = vmul.f32 %v670, %v673
        %v678 = vmul.f32 %v669, %v674
        %v679 = vmul.f32 %v668, %v675
        %v680 = vmul.f32 %v671, %v676
        %v681 = vadd.f32 %v656, %v677
        %v682 = vadd.f32 %v657, %v678
        %v683 = vadd.f32 %v658, %v679
        %v684 = vadd.f32 %v659, %v680
        %685 = vrot.lane.b32.xlu0 %v596, 124
        %v686 = vpop.permute.xlu0 %685
        %687 = vrot.lane.b32.xlu0 %v595, 124
        %v688 = vpop.permute.xlu0 %687
        %689 = vrot.lane.b32.xlu0 %v594, 124
        %v690 = vpop.permute.xlu0 %689
        %691 = vrot.lane.b32.xlu0 %v593, 124
        %v692 = vpop.permute.xlu0 %691
        %v693 = vsel %vm408, %v690, %v692
        %v694 = vsel %vm408, %v688, %v690
        %v695 = vsel %vm408, %v686, %v688
        %v696 = vsel %vm408, %v692, %v686
        %s697 = scalar_lea.vmem [#allocation5], 480
        %v698 = vld [vmem:[%s697] sm:$0xff]
        %v699 = vld [vmem:[%s697 + $0x8] sm:$0xff]
        %v700 = vld [vmem:[%s697 + $0x10] sm:$0xff]
        %v701 = vld [vmem:[%s697 + $0x18] sm:$0xff]
        %v702 = vmul.f32 %v695, %v698
        %v703 = vmul.f32 %v694, %v699
        %v704 = vmul.f32 %v693, %v700
        %v705 = vmul.f32 %v696, %v701
        %v706 = vadd.f32 %v681, %v702
        %v707 = vadd.f32 %v682, %v703
        %v708 = vadd.f32 %v683, %v704
        %v709 = vadd.f32 %v684, %v705
        %710 = vrot.lane.b32.xlu0 %v596, 123
        %v711 = vpop.permute.xlu0 %710
        %712 = vrot.lane.b32.xlu0 %v595, 123
        %v713 = vpop.permute.xlu0 %712
        %714 = vrot.lane.b32.xlu0 %v594, 123
        %v715 = vpop.permute.xlu0 %714
        %716 = vrot.lane.b32.xlu0 %v593, 123
        %v717 = vpop.permute.xlu0 %716
        %v718 = vsel %vm434, %v715, %v717
        %v719 = vsel %vm434, %v713, %v715
        %v720 = vsel %vm434, %v711, %v713
        %v721 = vsel %vm434, %v717, %v711
        %s722 = scalar_lea.vmem [#allocation5], 512
        %v723 = vld [vmem:[%s722] sm:$0xff]
        %v724 = vld [vmem:[%s722 + $0x8] sm:$0xff]
        %v725 = vld [vmem:[%s722 + $0x10] sm:$0xff]
        %v726 = vld [vmem:[%s722 + $0x18] sm:$0xff]
        %v727 = vmul.f32 %v720, %v723
        %v728 = vmul.f32 %v719, %v724
        %v729 = vmul.f32 %v718, %v725
        %v730 = vmul.f32 %v721, %v726
        %v731 = vadd.f32 %v706, %v727
        %v732 = vadd.f32 %v707, %v728
        %v733 = vadd.f32 %v708, %v729
        %v734 = vadd.f32 %v709, %v730
        %735 = vrot.lane.b32.xlu0 %v596, 122
        %v736 = vpop.permute.xlu0 %735
        %737 = vrot.lane.b32.xlu0 %v595, 122
        %v738 = vpop.permute.xlu0 %737
        %739 = vrot.lane.b32.xlu0 %v594, 122
        %v740 = vpop.permute.xlu0 %739
        %741 = vrot.lane.b32.xlu0 %v593, 122
        %v742 = vpop.permute.xlu0 %741
        %v743 = vsel %vm460, %v740, %v742
        %v744 = vsel %vm460, %v738, %v740
        %v745 = vsel %vm460, %v736, %v738
        %v746 = vsel %vm460, %v742, %v736
        %s747 = scalar_lea.vmem [#allocation5], 544
        %v748 = vld [vmem:[%s747] sm:$0xff]
        %v749 = vld [vmem:[%s747 + $0x8] sm:$0xff]
        %v750 = vld [vmem:[%s747 + $0x10] sm:$0xff]
        %v751 = vld [vmem:[%s747 + $0x18] sm:$0xff]
        %v752 = vmul.f32 %v745, %v748
        %v753 = vmul.f32 %v744, %v749
        %v754 = vmul.f32 %v743, %v750
        %v755 = vmul.f32 %v746, %v751
        %v756 = vadd.f32 %v731, %v752
        %v757 = vadd.f32 %v732, %v753
        %v758 = vadd.f32 %v733, %v754
        %v759 = vadd.f32 %v734, %v755
        %760 = vrot.lane.b32.xlu0 %v596, 121
        %v761 = vpop.permute.xlu0 %760
        %762 = vrot.lane.b32.xlu0 %v595, 121
        %v763 = vpop.permute.xlu0 %762
        %764 = vrot.lane.b32.xlu0 %v594, 121
        %v765 = vpop.permute.xlu0 %764
        %766 = vrot.lane.b32.xlu0 %v593, 121
        %v767 = vpop.permute.xlu0 %766
        %v768 = vsel %vm486, %v765, %v767
        %v769 = vsel %vm486, %v763, %v765
        %v770 = vsel %vm486, %v761, %v763
        %v771 = vsel %vm486, %v767, %v761
        %s772 = scalar_lea.vmem [#allocation5], 576
        %v773 = vld [vmem:[%s772] sm:$0xff]
        %v774 = vld [vmem:[%s772 + $0x8] sm:$0xff]
        %v775 = vld [vmem:[%s772 + $0x10] sm:$0xff]
        %v776 = vld [vmem:[%s772 + $0x18] sm:$0xff]
        %v777 = vmul.f32 %v770, %v773
        %v778 = vmul.f32 %v769, %v774
        %v779 = vmul.f32 %v768, %v775
        %v780 = vmul.f32 %v771, %v776
        %v781 = vadd.f32 %v756, %v777
        %v782 = vadd.f32 %v757, %v778
        %v783 = vadd.f32 %v758, %v779
        %v784 = vadd.f32 %v759, %v780
        %785 = vrot.lane.b32.xlu0 %v596, 120
        %v786 = vpop.permute.xlu0 %785
        %787 = vrot.lane.b32.xlu0 %v595, 120
        %v788 = vpop.permute.xlu0 %787
        %789 = vrot.lane.b32.xlu0 %v594, 120
        %v790 = vpop.permute.xlu0 %789
        %791 = vrot.lane.b32.xlu0 %v593, 120
        %v792 = vpop.permute.xlu0 %791
        %v793 = vsel %vm512, %v790, %v792
        %v794 = vsel %vm512, %v788, %v790
        %v795 = vsel %vm512, %v786, %v788
        %v796 = vsel %vm512, %v792, %v786
        %s797 = scalar_lea.vmem [#allocation5], 608
        %v798 = vld [vmem:[%s797] sm:$0xff]
        %v799 = vld [vmem:[%s797 + $0x8] sm:$0xff]
        %v800 = vld [vmem:[%s797 + $0x10] sm:$0xff]
        %v801 = vld [vmem:[%s797 + $0x18] sm:$0xff]
        %v802 = vmul.f32 %v795, %v798
        %v803 = vmul.f32 %v794, %v799
        %v804 = vmul.f32 %v793, %v800
        %v805 = vmul.f32 %v796, %v801
        %v806 = vadd.f32 %v781, %v802
        %v807 = vadd.f32 %v782, %v803
        %v808 = vadd.f32 %v783, %v804
        %v809 = vadd.f32 %v784, %v805
        %810 = vrot.lane.b32.xlu0 %v596, 119
        %v811 = vpop.permute.xlu0 %810
        %812 = vrot.lane.b32.xlu0 %v595, 119
        %v813 = vpop.permute.xlu0 %812
        %814 = vrot.lane.b32.xlu0 %v594, 119
        %v815 = vpop.permute.xlu0 %814
        %816 = vrot.lane.b32.xlu0 %v593, 119
        %v817 = vpop.permute.xlu0 %816
        %v818 = vsel %vm538, %v815, %v817
        %v819 = vsel %vm538, %v813, %v815
        %v820 = vsel %vm538, %v811, %v813
        %v821 = vsel %vm538, %v817, %v811
        %s822 = scalar_lea.vmem [#allocation5], 640
        %v823 = vld [vmem:[%s822] sm:$0xff]
        %v824 = vld [vmem:[%s822 + $0x8] sm:$0xff]
        %v825 = vld [vmem:[%s822 + $0x10] sm:$0xff]
        %v826 = vld [vmem:[%s822 + $0x18] sm:$0xff]
        %v827 = vmul.f32 %v820, %v823
        %v828 = vmul.f32 %v819, %v824
        %v829 = vmul.f32 %v818, %v825
        %v830 = vmul.f32 %v821, %v826
        %v831 = vadd.f32 %v806, %v827
        %v832 = vadd.f32 %v807, %v828
        %v833 = vadd.f32 %v808, %v829
        %v834 = vadd.f32 %v809, %v830
        %835 = vrot.lane.b32.xlu0 %v596, 118
        %v836 = vpop.permute.xlu0 %835
        %837 = vrot.lane.b32.xlu0 %v595, 118
        %v838 = vpop.permute.xlu0 %837
        %839 = vrot.lane.b32.xlu0 %v594, 118
        %v840 = vpop.permute.xlu0 %839
        %841 = vrot.lane.b32.xlu0 %v593, 118
        %v842 = vpop.permute.xlu0 %841
        %v843 = vsel %vm564, %v840, %v842
        %v844 = vsel %vm564, %v838, %v840
        %v845 = vsel %vm564, %v836, %v838
        %v846 = vsel %vm564, %v842, %v836
        %s847 = scalar_lea.vmem [#allocation5], 672
        %v848 = vld [vmem:[%s847] sm:$0xff]
        %v849 = vld [vmem:[%s847 + $0x8] sm:$0xff]
        %v850 = vld [vmem:[%s847 + $0x10] sm:$0xff]
        %v851 = vld [vmem:[%s847 + $0x18] sm:$0xff]
        %v852 = vmul.f32 %v845, %v848
        %v853 = vmul.f32 %v844, %v849
        %v854 = vmul.f32 %v843, %v850
        %v855 = vmul.f32 %v846, %v851
        %v856 = vadd.f32 %v831, %v852
        %v857 = vadd.f32 %v832, %v853
        %v858 = vadd.f32 %v833, %v854
        %v859 = vadd.f32 %v834, %v855
        %860 = vrot.lane.b32.xlu0 %v306, 76
        %v861 = vpop.permute.xlu0 %860
        %862 = vrot.lane.b32.xlu0 %v307, 76
        %v863 = vpop.permute.xlu0 %862
        %864 = vrot.lane.b32.xlu0 %v308, 76
        %v865 = vpop.permute.xlu0 %864
        %866 = vrot.lane.b32.xlu0 %v309, 76
        %v867 = vpop.permute.xlu0 %866
        %868 = vrot.lane.b32.xlu0 %v310, 76
        %v869 = vpop.permute.xlu0 %868
        %vm870 = vcmp.lt.s32.totalorder %v329, 76
        %v871 = vsel %vm870, %v867, %v869
        %v872 = vsel %vm870, %v865, %v867
        %v873 = vsel %vm870, %v863, %v865
        %v874 = vsel %vm870, %v861, %v863
        %s875 = scalar_lea.vmem [#allocation5], 704
        %v876 = vld [vmem:[%s875] sm:$0xff]
        %v877 = vld [vmem:[%s875 + $0x8] sm:$0xff]
        %v878 = vld [vmem:[%s875 + $0x10] sm:$0xff]
        %v879 = vld [vmem:[%s875 + $0x18] sm:$0xff]
        %v880 = vmul.f32 %v874, %v876
        %v881 = vmul.f32 %v873, %v877
        %v882 = vmul.f32 %v872, %v878
        %v883 = vmul.f32 %v871, %v879
        %v884 = vadd.f32 %v856, %v880
        %v885 = vadd.f32 %v857, %v881
        %v886 = vadd.f32 %v858, %v882
        %v887 = vadd.f32 %v859, %v883
        %888 = vrot.lane.b32.xlu0 %v874, 127
        %v889 = vpop.permute.xlu0 %888
        %890 = vrot.lane.b32.xlu0 %v873, 127
        %v891 = vpop.permute.xlu0 %890
        %892 = vrot.lane.b32.xlu0 %v872, 127
        %v893 = vpop.permute.xlu0 %892
        %894 = vrot.lane.b32.xlu0 %v871, 127
        %v895 = vpop.permute.xlu0 %894
        %v896 = vsel %vm330, %v893, %v895
        %v897 = vsel %vm330, %v891, %v893
        %v898 = vsel %vm330, %v889, %v891
        %v899 = vsel %vm330, %v895, %v889
        %s900 = scalar_lea.vmem [#allocation5], 736
        %v901 = vld [vmem:[%s900] sm:$0xff]
        %v902 = vld [vmem:[%s900 + $0x8] sm:$0xff]
        %v903 = vld [vmem:[%s900 + $0x10] sm:$0xff]
        %v904 = vld [vmem:[%s900 + $0x18] sm:$0xff]
        %v905 = vmul.f32 %v898, %v901
        %v906 = vmul.f32 %v897, %v902
        %v907 = vmul.f32 %v896, %v903
        %v908 = vmul.f32 %v899, %v904
        %v909 = vadd.f32 %v884, %v905
        %v910 = vadd.f32 %v885, %v906
        %v911 = vadd.f32 %v886, %v907
        %v912 = vadd.f32 %v887, %v908
        %913 = vrot.lane.b32.xlu0 %v874, 126
        %v914 = vpop.permute.xlu0 %913
        %915 = vrot.lane.b32.xlu0 %v873, 126
        %v916 = vpop.permute.xlu0 %915
        %917 = vrot.lane.b32.xlu0 %v872, 126
        %v918 = vpop.permute.xlu0 %917
        %919 = vrot.lane.b32.xlu0 %v871, 126
        %v920 = vpop.permute.xlu0 %919
        %v921 = vsel %vm356, %v918, %v920
        %v922 = vsel %vm356, %v916, %v918
        %v923 = vsel %vm356, %v914, %v916
        %v924 = vsel %vm356, %v920, %v914
        %s925 = scalar_lea.vmem [#allocation5], 768
        %v926 = vld [vmem:[%s925] sm:$0xff]
        %v927 = vld [vmem:[%s925 + $0x8] sm:$0xff]
        %v928 = vld [vmem:[%s925 + $0x10] sm:$0xff]
        %v929 = vld [vmem:[%s925 + $0x18] sm:$0xff]
        %v930 = vmul.f32 %v923, %v926
        %v931 = vmul.f32 %v922, %v927
        %v932 = vmul.f32 %v921, %v928
        %v933 = vmul.f32 %v924, %v929
        %v934 = vadd.f32 %v909, %v930
        %v935 = vadd.f32 %v910, %v931
        %v936 = vadd.f32 %v911, %v932
        %v937 = vadd.f32 %v912, %v933
        %938 = vrot.lane.b32.xlu0 %v874, 125
        %v939 = vpop.permute.xlu0 %938
        %940 = vrot.lane.b32.xlu0 %v873, 125
        %v941 = vpop.permute.xlu0 %940
        %942 = vrot.lane.b32.xlu0 %v872, 125
        %v943 = vpop.permute.xlu0 %942
        %944 = vrot.lane.b32.xlu0 %v871, 125
        %v945 = vpop.permute.xlu0 %944
        %v946 = vsel %vm382, %v943, %v945
        %v947 = vsel %vm382, %v941, %v943
        %v948 = vsel %vm382, %v939, %v941
        %v949 = vsel %vm382, %v945, %v939
        %s950 = scalar_lea.vmem [#allocation5], 800
        %v951 = vld [vmem:[%s950] sm:$0xff]
        %v952 = vld [vmem:[%s950 + $0x8] sm:$0xff]
        %v953 = vld [vmem:[%s950 + $0x10] sm:$0xff]
        %v954 = vld [vmem:[%s950 + $0x18] sm:$0xff]
        %v955 = vmul.f32 %v948, %v951
        %v956 = vmul.f32 %v947, %v952
        %v957 = vmul.f32 %v946, %v953
        %v958 = vmul.f32 %v949, %v954
        %v959 = vadd.f32 %v934, %v955
        %v960 = vadd.f32 %v935, %v956
        %v961 = vadd.f32 %v936, %v957
        %v962 = vadd.f32 %v937, %v958
        %963 = vrot.lane.b32.xlu0 %v874, 124
        %v964 = vpop.permute.xlu0 %963
        %965 = vrot.lane.b32.xlu0 %v873, 124
        %v966 = vpop.permute.xlu0 %965
        %967 = vrot.lane.b32.xlu0 %v872, 124
        %v968 = vpop.permute.xlu0 %967
        %969 = vrot.lane.b32.xlu0 %v871, 124
        %v970 = vpop.permute.xlu0 %969
        %v971 = vsel %vm408, %v968, %v970
        %v972 = vsel %vm408, %v966, %v968
        %v973 = vsel %vm408, %v964, %v966
        %v974 = vsel %vm408, %v970, %v964
        %s975 = scalar_lea.vmem [#allocation5], 832
        %v976 = vld [vmem:[%s975] sm:$0xff]
        %v977 = vld [vmem:[%s975 + $0x8] sm:$0xff]
        %v978 = vld [vmem:[%s975 + $0x10] sm:$0xff]
        %v979 = vld [vmem:[%s975 + $0x18] sm:$0xff]
        %v980 = vmul.f32 %v973, %v976
        %v981 = vmul.f32 %v972, %v977
        %v982 = vmul.f32 %v971, %v978
        %v983 = vmul.f32 %v974, %v979
        %v984 = vadd.f32 %v959, %v980
        %v985 = vadd.f32 %v960, %v981
        %v986 = vadd.f32 %v961, %v982
        %v987 = vadd.f32 %v962, %v983
        %988 = vrot.lane.b32.xlu0 %v874, 123
        %v989 = vpop.permute.xlu0 %988
        %990 = vrot.lane.b32.xlu0 %v873, 123
        %v991 = vpop.permute.xlu0 %990
        %992 = vrot.lane.b32.xlu0 %v872, 123
        %v993 = vpop.permute.xlu0 %992
        %994 = vrot.lane.b32.xlu0 %v871, 123
        %v995 = vpop.permute.xlu0 %994
        %v996 = vsel %vm434, %v993, %v995
        %v997 = vsel %vm434, %v991, %v993
        %v998 = vsel %vm434, %v989, %v991
        %v999 = vsel %vm434, %v995, %v989
        %s1000 = scalar_lea.vmem [#allocation5], 864
        %v1001 = vld [vmem:[%s1000] sm:$0xff]
        %v1002 = vld [vmem:[%s1000 + $0x8] sm:$0xff]
        %v1003 = vld [vmem:[%s1000 + $0x10] sm:$0xff]
        %v1004 = vld [vmem:[%s1000 + $0x18] sm:$0xff]
        %v1005 = vmul.f32 %v998, %v1001
        %v1006 = vmul.f32 %v997, %v1002
        %v1007 = vmul.f32 %v996, %v1003
        %v1008 = vmul.f32 %v999, %v1004
        %v1009 = vadd.f32 %v984, %v1005
        %v1010 = vadd.f32 %v985, %v1006
        %v1011 = vadd.f32 %v986, %v1007
        %v1012 = vadd.f32 %v987, %v1008
        %1013 = vrot.lane.b32.xlu0 %v874, 122
        %v1014 = vpop.permute.xlu0 %1013
        %1015 = vrot.lane.b32.xlu0 %v873, 122
        %v1016 = vpop.permute.xlu0 %1015
        %1017 = vrot.lane.b32.xlu0 %v872, 122
        %v1018 = vpop.permute.xlu0 %1017
        %1019 = vrot.lane.b32.xlu0 %v871, 122
        %v1020 = vpop.permute.xlu0 %1019
        %v1021 = vsel %vm460, %v1018, %v1020
        %v1022 = vsel %vm460, %v1016, %v1018
        %v1023 = vsel %vm460, %v1014, %v1016
        %v1024 = vsel %vm460, %v1020, %v1014
        %s1025 = scalar_lea.vmem [#allocation5], 896
        %v1026 = vld [vmem:[%s1025] sm:$0xff]
        %v1027 = vld [vmem:[%s1025 + $0x8] sm:$0xff]
        %v1028 = vld [vmem:[%s1025 + $0x10] sm:$0xff]
        %v1029 = vld [vmem:[%s1025 + $0x18] sm:$0xff]
        %v1030 = vmul.f32 %v1023, %v1026
        %v1031 = vmul.f32 %v1022, %v1027
        %v1032 = vmul.f32 %v1021, %v1028
        %v1033 = vmul.f32 %v1024, %v1029
        %v1034 = vadd.f32 %v1009, %v1030
        %v1035 = vadd.f32 %v1010, %v1031
        %v1036 = vadd.f32 %v1011, %v1032
        %v1037 = vadd.f32 %v1012, %v1033
        %1038 = vrot.lane.b32.xlu0 %v874, 121
        %v1039 = vpop.permute.xlu0 %1038
        %1040 = vrot.lane.b32.xlu0 %v873, 121
        %v1041 = vpop.permute.xlu0 %1040
        %1042 = vrot.lane.b32.xlu0 %v872, 121
        %v1043 = vpop.permute.xlu0 %1042
        %1044 = vrot.lane.b32.xlu0 %v871, 121
        %v1045 = vpop.permute.xlu0 %1044
        %v1046 = vsel %vm486, %v1043, %v1045
        %v1047 = vsel %vm486, %v1041, %v1043
        %v1048 = vsel %vm486, %v1039, %v1041
        %v1049 = vsel %vm486, %v1045, %v1039
        %s1050 = scalar_lea.vmem [#allocation5], 928
        %v1051 = vld [vmem:[%s1050] sm:$0xff]
        %v1052 = vld [vmem:[%s1050 + $0x8] sm:$0xff]
        %v1053 = vld [vmem:[%s1050 + $0x10] sm:$0xff]
        %v1054 = vld [vmem:[%s1050 + $0x18] sm:$0xff]
        %v1055 = vmul.f32 %v1048, %v1051
        %v1056 = vmul.f32 %v1047, %v1052
        %v1057 = vmul.f32 %v1046, %v1053
        %v1058 = vmul.f32 %v1049, %v1054
        %v1059 = vadd.f32 %v1034, %v1055
        %v1060 = vadd.f32 %v1035, %v1056
        %v1061 = vadd.f32 %v1036, %v1057
        %v1062 = vadd.f32 %v1037, %v1058
        %1063 = vrot.lane.b32.xlu0 %v874, 120
        %v1064 = vpop.permute.xlu0 %1063
        %1065 = vrot.lane.b32.xlu0 %v873, 120
        %v1066 = vpop.permute.xlu0 %1065
        %1067 = vrot.lane.b32.xlu0 %v872, 120
        %v1068 = vpop.permute.xlu0 %1067
        %1069 = vrot.lane.b32.xlu0 %v871, 120
        %v1070 = vpop.permute.xlu0 %1069
        %v1071 = vsel %vm512, %v1068, %v1070
        %v1072 = vsel %vm512, %v1066, %v1068
        %v1073 = vsel %vm512, %v1064, %v1066
        %v1074 = vsel %vm512, %v1070, %v1064
        %s1075 = scalar_lea.vmem [#allocation5], 960
        %v1076 = vld [vmem:[%s1075] sm:$0xff]
        %v1077 = vld [vmem:[%s1075 + $0x8] sm:$0xff]
        %v1078 = vld [vmem:[%s1075 + $0x10] sm:$0xff]
        %v1079 = vld [vmem:[%s1075 + $0x18] sm:$0xff]
        %v1080 = vmul.f32 %v1073, %v1076
        %v1081 = vmul.f32 %v1072, %v1077
        %v1082 = vmul.f32 %v1071, %v1078
        %v1083 = vmul.f32 %v1074, %v1079
        %v1084 = vadd.f32 %v1059, %v1080
        %v1085 = vadd.f32 %v1060, %v1081
        %v1086 = vadd.f32 %v1061, %v1082
        %v1087 = vadd.f32 %v1062, %v1083
        %1088 = vrot.lane.b32.xlu0 %v874, 119
        %v1089 = vpop.permute.xlu0 %1088
        %1090 = vrot.lane.b32.xlu0 %v873, 119
        %v1091 = vpop.permute.xlu0 %1090
        %1092 = vrot.lane.b32.xlu0 %v872, 119
        %v1093 = vpop.permute.xlu0 %1092
        %1094 = vrot.lane.b32.xlu0 %v871, 119
        %v1095 = vpop.permute.xlu0 %1094
        %v1096 = vsel %vm538, %v1093, %v1095
        %v1097 = vsel %vm538, %v1091, %v1093
        %v1098 = vsel %vm538, %v1089, %v1091
        %v1099 = vsel %vm538, %v1095, %v1089
        %s1100 = scalar_lea.vmem [#allocation5], 992
        %v1101 = vld [vmem:[%s1100] sm:$0xff]
        %v1102 = vld [vmem:[%s1100 + $0x8] sm:$0xff]
        %v1103 = vld [vmem:[%s1100 + $0x10] sm:$0xff]
        %v1104 = vld [vmem:[%s1100 + $0x18] sm:$0xff]
        %v1105 = vmul.f32 %v1098, %v1101
        %v1106 = vmul.f32 %v1097, %v1102
        %v1107 = vmul.f32 %v1096, %v1103
        %v1108 = vmul.f32 %v1099, %v1104
        %v1109 = vadd.f32 %v1084, %v1105
        %v1110 = vadd.f32 %v1085, %v1106
        %v1111 = vadd.f32 %v1086, %v1107
        %v1112 = vadd.f32 %v1087, %v1108
        %1113 = vrot.lane.b32.xlu0 %v874, 118
        %v1114 = vpop.permute.xlu0 %1113
        %1115 = vrot.lane.b32.xlu0 %v873, 118
        %v1116 = vpop.permute.xlu0 %1115
        %1117 = vrot.lane.b32.xlu0 %v872, 118
        %v1118 = vpop.permute.xlu0 %1117
        %1119 = vrot.lane.b32.xlu0 %v871, 118
        %v1120 = vpop.permute.xlu0 %1119
        %v1121 = vsel %vm564, %v1118, %v1120
        %v1122 = vsel %vm564, %v1116, %v1118
        %v1123 = vsel %vm564, %v1114, %v1116
        %v1124 = vsel %vm564, %v1120, %v1114
        %s1125 = scalar_lea.vmem [#allocation5], 1024
        %v1126 = vld [vmem:[%s1125] sm:$0xff]
        %v1127 = vld [vmem:[%s1125 + $0x8] sm:$0xff]
        %v1128 = vld [vmem:[%s1125 + $0x10] sm:$0xff]
        %v1129 = vld [vmem:[%s1125 + $0x18] sm:$0xff]
        %v1130 = vmul.f32 %v1123, %v1126
        %v1131 = vmul.f32 %v1122, %v1127
        %v1132 = vmul.f32 %v1121, %v1128
        %v1133 = vmul.f32 %v1124, %v1129
        %v1134 = vadd.f32 %v1109, %v1130
        %v1135 = vadd.f32 %v1110, %v1131
        %v1136 = vadd.f32 %v1111, %v1132
        %v1137 = vadd.f32 %v1112, %v1133
        %1138 = vrot.lane.b32.xlu0 %v306, 50
        %v1139 = vpop.permute.xlu0 %1138
        %1140 = vrot.lane.b32.xlu0 %v307, 50
        %v1141 = vpop.permute.xlu0 %1140
        %1142 = vrot.lane.b32.xlu0 %v308, 50
        %v1143 = vpop.permute.xlu0 %1142
        %1144 = vrot.lane.b32.xlu0 %v309, 50
        %v1145 = vpop.permute.xlu0 %1144
        %1146 = vrot.lane.b32.xlu0 %v310, 50
        %v1147 = vpop.permute.xlu0 %1146
        %vm1148 = vcmp.lt.s32.totalorder %v329, 50
        %v1149 = vsel %vm1148, %v1145, %v1147
        %v1150 = vsel %vm1148, %v1143, %v1145
        %v1151 = vsel %vm1148, %v1141, %v1143
        %v1152 = vsel %vm1148, %v1139, %v1141
        %s1153 = scalar_lea.vmem [#allocation5], 1056
        %v1154 = vld [vmem:[%s1153] sm:$0xff]
        %v1155 = vld [vmem:[%s1153 + $0x8] sm:$0xff]
        %v1156 = vld [vmem:[%s1153 + $0x10] sm:$0xff]
        %v1157 = vld [vmem:[%s1153 + $0x18] sm:$0xff]
        %v1158 = vmul.f32 %v1152, %v1154
        %v1159 = vmul.f32 %v1151, %v1155
        %v1160 = vmul.f32 %v1150, %v1156
        %v1161 = vmul.f32 %v1149, %v1157
        %v1162 = vadd.f32 %v1134, %v1158
        %v1163 = vadd.f32 %v1135, %v1159
        %v1164 = vadd.f32 %v1136, %v1160
        %v1165 = vadd.f32 %v1137, %v1161
        %1166 = vrot.lane.b32.xlu0 %v1152, 127
        %v1167 = vpop.permute.xlu0 %1166
        %1168 = vrot.lane.b32.xlu0 %v1151, 127
        %v1169 = vpop.permute.xlu0 %1168
        %1170 = vrot.lane.b32.xlu0 %v1150, 127
        %v1171 = vpop.permute.xlu0 %1170
        %1172 = vrot.lane.b32.xlu0 %v1149, 127
        %v1173 = vpop.permute.xlu0 %1172
        %v1174 = vsel %vm330, %v1171, %v1173
        %v1175 = vsel %vm330, %v1169, %v1171
        %v1176 = vsel %vm330, %v1167, %v1169
        %v1177 = vsel %vm330, %v1173, %v1167
        %s1178 = scalar_lea.vmem [#allocation5], 1088
        %v1179 = vld [vmem:[%s1178] sm:$0xff]
        %v1180 = vld [vmem:[%s1178 + $0x8] sm:$0xff]
        %v1181 = vld [vmem:[%s1178 + $0x10] sm:$0xff]
        %v1182 = vld [vmem:[%s1178 + $0x18] sm:$0xff]
        %v1183 = vmul.f32 %v1176, %v1179
        %v1184 = vmul.f32 %v1175, %v1180
        %v1185 = vmul.f32 %v1174, %v1181
        %v1186 = vmul.f32 %v1177, %v1182
        %v1187 = vadd.f32 %v1162, %v1183
        %v1188 = vadd.f32 %v1163, %v1184
        %v1189 = vadd.f32 %v1164, %v1185
        %v1190 = vadd.f32 %v1165, %v1186
        %1191 = vrot.lane.b32.xlu0 %v1152, 126
        %v1192 = vpop.permute.xlu0 %1191
        %1193 = vrot.lane.b32.xlu0 %v1151, 126
        %v1194 = vpop.permute.xlu0 %1193
        %1195 = vrot.lane.b32.xlu0 %v1150, 126
        %v1196 = vpop.permute.xlu0 %1195
        %1197 = vrot.lane.b32.xlu0 %v1149, 126
        %v1198 = vpop.permute.xlu0 %1197
        %v1199 = vsel %vm356, %v1196, %v1198
        %v1200 = vsel %vm356, %v1194, %v1196
        %v1201 = vsel %vm356, %v1192, %v1194
        %v1202 = vsel %vm356, %v1198, %v1192
        %s1203 = scalar_lea.vmem [#allocation5], 1120
        %v1204 = vld [vmem:[%s1203] sm:$0xff]
        %v1205 = vld [vmem:[%s1203 + $0x8] sm:$0xff]
        %v1206 = vld [vmem:[%s1203 + $0x10] sm:$0xff]
        %v1207 = vld [vmem:[%s1203 + $0x18] sm:$0xff]
        %v1208 = vmul.f32 %v1201, %v1204
        %v1209 = vmul.f32 %v1200, %v1205
        %v1210 = vmul.f32 %v1199, %v1206
        %v1211 = vmul.f32 %v1202, %v1207
        %v1212 = vadd.f32 %v1187, %v1208
        %v1213 = vadd.f32 %v1188, %v1209
        %v1214 = vadd.f32 %v1189, %v1210
        %v1215 = vadd.f32 %v1190, %v1211
        %1216 = vrot.lane.b32.xlu0 %v1152, 125
        %v1217 = vpop.permute.xlu0 %1216
        %1218 = vrot.lane.b32.xlu0 %v1151, 125
        %v1219 = vpop.permute.xlu0 %1218
        %1220 = vrot.lane.b32.xlu0 %v1150, 125
        %v1221 = vpop.permute.xlu0 %1220
        %1222 = vrot.lane.b32.xlu0 %v1149, 125
        %v1223 = vpop.permute.xlu0 %1222
        %v1224 = vsel %vm382, %v1221, %v1223
        %v1225 = vsel %vm382, %v1219, %v1221
        %v1226 = vsel %vm382, %v1217, %v1219
        %v1227 = vsel %vm382, %v1223, %v1217
        %s1228 = scalar_lea.vmem [#allocation5], 1152
        %v1229 = vld [vmem:[%s1228] sm:$0xff]
        %v1230 = vld [vmem:[%s1228 + $0x8] sm:$0xff]
        %v1231 = vld [vmem:[%s1228 + $0x10] sm:$0xff]
        %v1232 = vld [vmem:[%s1228 + $0x18] sm:$0xff]
        %v1233 = vmul.f32 %v1226, %v1229
        %v1234 = vmul.f32 %v1225, %v1230
        %v1235 = vmul.f32 %v1224, %v1231
        %v1236 = vmul.f32 %v1227, %v1232
        %v1237 = vadd.f32 %v1212, %v1233
        %v1238 = vadd.f32 %v1213, %v1234
        %v1239 = vadd.f32 %v1214, %v1235
        %v1240 = vadd.f32 %v1215, %v1236
        %1241 = vrot.lane.b32.xlu0 %v1152, 124
        %v1242 = vpop.permute.xlu0 %1241
        %1243 = vrot.lane.b32.xlu0 %v1151, 124
        %v1244 = vpop.permute.xlu0 %1243
        %1245 = vrot.lane.b32.xlu0 %v1150, 124
        %v1246 = vpop.permute.xlu0 %1245
        %1247 = vrot.lane.b32.xlu0 %v1149, 124
        %v1248 = vpop.permute.xlu0 %1247
        %v1249 = vsel %vm408, %v1246, %v1248
        %v1250 = vsel %vm408, %v1244, %v1246
        %v1251 = vsel %vm408, %v1242, %v1244
        %v1252 = vsel %vm408, %v1248, %v1242
        %s1253 = scalar_lea.vmem [#allocation5], 1184
        %v1254 = vld [vmem:[%s1253] sm:$0xff]
        %v1255 = vld [vmem:[%s1253 + $0x8] sm:$0xff]
        %v1256 = vld [vmem:[%s1253 + $0x10] sm:$0xff]
        %v1257 = vld [vmem:[%s1253 + $0x18] sm:$0xff]
        %v1258 = vmul.f32 %v1251, %v1254
        %v1259 = vmul.f32 %v1250, %v1255
        %v1260 = vmul.f32 %v1249, %v1256
        %v1261 = vmul.f32 %v1252, %v1257
        %v1262 = vadd.f32 %v1237, %v1258
        %v1263 = vadd.f32 %v1238, %v1259
        %v1264 = vadd.f32 %v1239, %v1260
        %v1265 = vadd.f32 %v1240, %v1261
        %1266 = vrot.lane.b32.xlu0 %v1152, 123
        %v1267 = vpop.permute.xlu0 %1266
        %1268 = vrot.lane.b32.xlu0 %v1151, 123
        %v1269 = vpop.permute.xlu0 %1268
        %1270 = vrot.lane.b32.xlu0 %v1150, 123
        %v1271 = vpop.permute.xlu0 %1270
        %1272 = vrot.lane.b32.xlu0 %v1149, 123
        %v1273 = vpop.permute.xlu0 %1272
        %v1274 = vsel %vm434, %v1271, %v1273
        %v1275 = vsel %vm434, %v1269, %v1271
        %v1276 = vsel %vm434, %v1267, %v1269
        %v1277 = vsel %vm434, %v1273, %v1267
        %s1278 = scalar_lea.vmem [#allocation5], 1216
        %v1279 = vld [vmem:[%s1278] sm:$0xff]
        %v1280 = vld [vmem:[%s1278 + $0x8] sm:$0xff]
        %v1281 = vld [vmem:[%s1278 + $0x10] sm:$0xff]
        %v1282 = vld [vmem:[%s1278 + $0x18] sm:$0xff]
        %v1283 = vmul.f32 %v1276, %v1279
        %v1284 = vmul.f32 %v1275, %v1280
        %v1285 = vmul.f32 %v1274, %v1281
        %v1286 = vmul.f32 %v1277, %v1282
        %v1287 = vadd.f32 %v1262, %v1283
        %v1288 = vadd.f32 %v1263, %v1284
        %v1289 = vadd.f32 %v1264, %v1285
        %v1290 = vadd.f32 %v1265, %v1286
        %1291 = vrot.lane.b32.xlu0 %v1152, 122
        %v1292 = vpop.permute.xlu0 %1291
        %1293 = vrot.lane.b32.xlu0 %v1151, 122
        %v1294 = vpop.permute.xlu0 %1293
        %1295 = vrot.lane.b32.xlu0 %v1150, 122
        %v1296 = vpop.permute.xlu0 %1295
        %1297 = vrot.lane.b32.xlu0 %v1149, 122
        %v1298 = vpop.permute.xlu0 %1297
        %v1299 = vsel %vm460, %v1296, %v1298
        %v1300 = vsel %vm460, %v1294, %v1296
        %v1301 = vsel %vm460, %v1292, %v1294
        %v1302 = vsel %vm460, %v1298, %v1292
        %s1303 = scalar_lea.vmem [#allocation5], 1248
        %v1304 = vld [vmem:[%s1303] sm:$0xff]
        %v1305 = vld [vmem:[%s1303 + $0x8] sm:$0xff]
        %v1306 = vld [vmem:[%s1303 + $0x10] sm:$0xff]
        %v1307 = vld [vmem:[%s1303 + $0x18] sm:$0xff]
        %v1308 = vmul.f32 %v1301, %v1304
        %v1309 = vmul.f32 %v1300, %v1305
        %v1310 = vmul.f32 %v1299, %v1306
        %v1311 = vmul.f32 %v1302, %v1307
        %v1312 = vadd.f32 %v1287, %v1308
        %v1313 = vadd.f32 %v1288, %v1309
        %v1314 = vadd.f32 %v1289, %v1310
        %v1315 = vadd.f32 %v1290, %v1311
        %1316 = vrot.lane.b32.xlu0 %v1152, 121
        %v1317 = vpop.permute.xlu0 %1316
        %1318 = vrot.lane.b32.xlu0 %v1151, 121
        %v1319 = vpop.permute.xlu0 %1318
        %1320 = vrot.lane.b32.xlu0 %v1150, 121
        %v1321 = vpop.permute.xlu0 %1320
        %1322 = vrot.lane.b32.xlu0 %v1149, 121
        %v1323 = vpop.permute.xlu0 %1322
        %v1324 = vsel %vm486, %v1321, %v1323
        %v1325 = vsel %vm486, %v1319, %v1321
        %v1326 = vsel %vm486, %v1317, %v1319
        %v1327 = vsel %vm486, %v1323, %v1317
        %s1328 = scalar_lea.vmem [#allocation5], 1280
        %v1329 = vld [vmem:[%s1328] sm:$0xff]
        %v1330 = vld [vmem:[%s1328 + $0x8] sm:$0xff]
        %v1331 = vld [vmem:[%s1328 + $0x10] sm:$0xff]
        %v1332 = vld [vmem:[%s1328 + $0x18] sm:$0xff]
        %v1333 = vmul.f32 %v1326, %v1329
        %v1334 = vmul.f32 %v1325, %v1330
        %v1335 = vmul.f32 %v1324, %v1331
        %v1336 = vmul.f32 %v1327, %v1332
        %v1337 = vadd.f32 %v1312, %v1333
        %v1338 = vadd.f32 %v1313, %v1334
        %v1339 = vadd.f32 %v1314, %v1335
        %v1340 = vadd.f32 %v1315, %v1336
        %1341 = vrot.lane.b32.xlu0 %v1152, 120
        %v1342 = vpop.permute.xlu0 %1341
        %1343 = vrot.lane.b32.xlu0 %v1151, 120
        %v1344 = vpop.permute.xlu0 %1343
        %1345 = vrot.lane.b32.xlu0 %v1150, 120
        %v1346 = vpop.permute.xlu0 %1345
        %1347 = vrot.lane.b32.xlu0 %v1149, 120
        %v1348 = vpop.permute.xlu0 %1347
        %v1349 = vsel %vm512, %v1346, %v1348
        %v1350 = vsel %vm512, %v1344, %v1346
        %v1351 = vsel %vm512, %v1342, %v1344
        %v1352 = vsel %vm512, %v1348, %v1342
        %s1353 = scalar_lea.vmem [#allocation5], 1312
        %v1354 = vld [vmem:[%s1353] sm:$0xff]
        %v1355 = vld [vmem:[%s1353 + $0x8] sm:$0xff]
        %v1356 = vld [vmem:[%s1353 + $0x10] sm:$0xff]
        %v1357 = vld [vmem:[%s1353 + $0x18] sm:$0xff]
        %v1358 = vmul.f32 %v1351, %v1354
        %v1359 = vmul.f32 %v1350, %v1355
        %v1360 = vmul.f32 %v1349, %v1356
        %v1361 = vmul.f32 %v1352, %v1357
        %v1362 = vadd.f32 %v1337, %v1358
        %v1363 = vadd.f32 %v1338, %v1359
        %v1364 = vadd.f32 %v1339, %v1360
        %v1365 = vadd.f32 %v1340, %v1361
        %1366 = vrot.lane.b32.xlu0 %v1152, 119
        %v1367 = vpop.permute.xlu0 %1366
        %1368 = vrot.lane.b32.xlu0 %v1151, 119
        %v1369 = vpop.permute.xlu0 %1368
        %1370 = vrot.lane.b32.xlu0 %v1150, 119
        %v1371 = vpop.permute.xlu0 %1370
        %1372 = vrot.lane.b32.xlu0 %v1149, 119
        %v1373 = vpop.permute.xlu0 %1372
        %v1374 = vsel %vm538, %v1371, %v1373
        %v1375 = vsel %vm538, %v1369, %v1371
        %v1376 = vsel %vm538, %v1367, %v1369
        %v1377 = vsel %vm538, %v1373, %v1367
        %s1378 = scalar_lea.vmem [#allocation5], 1344
        %v1379 = vld [vmem:[%s1378] sm:$0xff]
        %v1380 = vld [vmem:[%s1378 + $0x8] sm:$0xff]
        %v1381 = vld [vmem:[%s1378 + $0x10] sm:$0xff]
        %v1382 = vld [vmem:[%s1378 + $0x18] sm:$0xff]
        %v1383 = vmul.f32 %v1376, %v1379
        %v1384 = vmul.f32 %v1375, %v1380
        %v1385 = vmul.f32 %v1374, %v1381
        %v1386 = vmul.f32 %v1377, %v1382
        %v1387 = vadd.f32 %v1362, %v1383
        %v1388 = vadd.f32 %v1363, %v1384
        %v1389 = vadd.f32 %v1364, %v1385
        %v1390 = vadd.f32 %v1365, %v1386
        %1391 = vrot.lane.b32.xlu0 %v1152, 118
        %v1392 = vpop.permute.xlu0 %1391
        %1393 = vrot.lane.b32.xlu0 %v1151, 118
        %v1394 = vpop.permute.xlu0 %1393
        %1395 = vrot.lane.b32.xlu0 %v1150, 118
        %v1396 = vpop.permute.xlu0 %1395
        %1397 = vrot.lane.b32.xlu0 %v1149, 118
        %v1398 = vpop.permute.xlu0 %1397
        %v1399 = vsel %vm564, %v1396, %v1398
        %v1400 = vsel %vm564, %v1394, %v1396
        %v1401 = vsel %vm564, %v1392, %v1394
        %v1402 = vsel %vm564, %v1398, %v1392
        %s1403 = scalar_lea.vmem [#allocation5], 1376
        %v1404 = vld [vmem:[%s1403] sm:$0xff]
        %v1405 = vld [vmem:[%s1403 + $0x8] sm:$0xff]
        %v1406 = vld [vmem:[%s1403 + $0x10] sm:$0xff]
        %v1407 = vld [vmem:[%s1403 + $0x18] sm:$0xff]
        %v1408 = vmul.f32 %v1401, %v1404
        %v1409 = vmul.f32 %v1400, %v1405
        %v1410 = vmul.f32 %v1399, %v1406
        %v1411 = vmul.f32 %v1402, %v1407
        %v1412 = vadd.f32 %v1387, %v1408
        %v1413 = vadd.f32 %v1388, %v1409
        %v1414 = vadd.f32 %v1389, %v1410
        %v1415 = vadd.f32 %v1390, %v1411
        %1416 = vrot.lane.b32.xlu0 %v306, 24
        %v1417 = vpop.permute.xlu0 %1416
        %1418 = vrot.lane.b32.xlu0 %v307, 24
        %v1419 = vpop.permute.xlu0 %1418
        %1420 = vrot.lane.b32.xlu0 %v308, 24
        %v1421 = vpop.permute.xlu0 %1420
        %1422 = vrot.lane.b32.xlu0 %v309, 24
        %v1423 = vpop.permute.xlu0 %1422
        %1424 = vrot.lane.b32.xlu0 %v310, 24
        %v1425 = vpop.permute.xlu0 %1424
        %vm1426 = vcmp.lt.s32.totalorder %v329, 24
        %v1427 = vsel %vm1426, %v1423, %v1425
        %v1428 = vsel %vm1426, %v1421, %v1423
        %v1429 = vsel %vm1426, %v1419, %v1421
        %v1430 = vsel %vm1426, %v1417, %v1419
        %s1431 = scalar_lea.vmem [#allocation5], 1408
        %v1432 = vld [vmem:[%s1431] sm:$0xff]
        %v1433 = vld [vmem:[%s1431 + $0x8] sm:$0xff]
        %v1434 = vld [vmem:[%s1431 + $0x10] sm:$0xff]
        %v1435 = vld [vmem:[%s1431 + $0x18] sm:$0xff]
        %v1436 = vmul.f32 %v1430, %v1432
        %v1437 = vmul.f32 %v1429, %v1433
        %v1438 = vmul.f32 %v1428, %v1434
        %v1439 = vmul.f32 %v1427, %v1435
        %v1440 = vadd.f32 %v1412, %v1436
        %v1441 = vadd.f32 %v1413, %v1437
        %v1442 = vadd.f32 %v1414, %v1438
        %v1443 = vadd.f32 %v1415, %v1439
        %1444 = vrot.lane.b32.xlu0 %v1430, 127
        %v1445 = vpop.permute.xlu0 %1444
        %1446 = vrot.lane.b32.xlu0 %v1429, 127
        %v1447 = vpop.permute.xlu0 %1446
        %1448 = vrot.lane.b32.xlu0 %v1428, 127
        %v1449 = vpop.permute.xlu0 %1448
        %1450 = vrot.lane.b32.xlu0 %v1427, 127
        %v1451 = vpop.permute.xlu0 %1450
        %v1452 = vsel %vm330, %v1449, %v1451
        %v1453 = vsel %vm330, %v1447, %v1449
        %v1454 = vsel %vm330, %v1445, %v1447
        %v1455 = vsel %vm330, %v1451, %v1445
        %s1456 = scalar_lea.vmem [#allocation5], 1440
        %v1457 = vld [vmem:[%s1456] sm:$0xff]
        %v1458 = vld [vmem:[%s1456 + $0x8] sm:$0xff]
        %v1459 = vld [vmem:[%s1456 + $0x10] sm:$0xff]
        %v1460 = vld [vmem:[%s1456 + $0x18] sm:$0xff]
        %v1461 = vmul.f32 %v1454, %v1457
        %v1462 = vmul.f32 %v1453, %v1458
        %v1463 = vmul.f32 %v1452, %v1459
        %v1464 = vmul.f32 %v1455, %v1460
        %v1465 = vadd.f32 %v1440, %v1461
        %v1466 = vadd.f32 %v1441, %v1462
        %v1467 = vadd.f32 %v1442, %v1463
        %v1468 = vadd.f32 %v1443, %v1464
        %1469 = vrot.lane.b32.xlu0 %v1430, 126
        %v1470 = vpop.permute.xlu0 %1469
        %1471 = vrot.lane.b32.xlu0 %v1429, 126
        %v1472 = vpop.permute.xlu0 %1471
        %1473 = vrot.lane.b32.xlu0 %v1428, 126
        %v1474 = vpop.permute.xlu0 %1473
        %1475 = vrot.lane.b32.xlu0 %v1427, 126
        %v1476 = vpop.permute.xlu0 %1475
        %v1477 = vsel %vm356, %v1474, %v1476
        %v1478 = vsel %vm356, %v1472, %v1474
        %v1479 = vsel %vm356, %v1470, %v1472
        %v1480 = vsel %vm356, %v1476, %v1470
        %s1481 = scalar_lea.vmem [#allocation5], 1472
        %v1482 = vld [vmem:[%s1481] sm:$0xff]
        %v1483 = vld [vmem:[%s1481 + $0x8] sm:$0xff]
        %v1484 = vld [vmem:[%s1481 + $0x10] sm:$0xff]
        %v1485 = vld [vmem:[%s1481 + $0x18] sm:$0xff]
        %v1486 = vmul.f32 %v1479, %v1482
        %v1487 = vmul.f32 %v1478, %v1483
        %v1488 = vmul.f32 %v1477, %v1484
        %v1489 = vmul.f32 %v1480, %v1485
        %v1490 = vadd.f32 %v1465, %v1486
        %v1491 = vadd.f32 %v1466, %v1487
        %v1492 = vadd.f32 %v1467, %v1488
        %v1493 = vadd.f32 %v1468, %v1489
        %1494 = vrot.lane.b32.xlu0 %v1430, 125
        %v1495 = vpop.permute.xlu0 %1494
        %1496 = vrot.lane.b32.xlu0 %v1429, 125
        %v1497 = vpop.permute.xlu0 %1496
        %1498 = vrot.lane.b32.xlu0 %v1428, 125
        %v1499 = vpop.permute.xlu0 %1498
        %1500 = vrot.lane.b32.xlu0 %v1427, 125
        %v1501 = vpop.permute.xlu0 %1500
        %v1502 = vsel %vm382, %v1499, %v1501
        %v1503 = vsel %vm382, %v1497, %v1499
        %v1504 = vsel %vm382, %v1495, %v1497
        %v1505 = vsel %vm382, %v1501, %v1495
        %s1506 = scalar_lea.vmem [#allocation5], 1504
        %v1507 = vld [vmem:[%s1506] sm:$0xff]
        %v1508 = vld [vmem:[%s1506 + $0x8] sm:$0xff]
        %v1509 = vld [vmem:[%s1506 + $0x10] sm:$0xff]
        %v1510 = vld [vmem:[%s1506 + $0x18] sm:$0xff]
        %v1511 = vmul.f32 %v1504, %v1507
        %v1512 = vmul.f32 %v1503, %v1508
        %v1513 = vmul.f32 %v1502, %v1509
        %v1514 = vmul.f32 %v1505, %v1510
        %v1515 = vadd.f32 %v1490, %v1511
        %v1516 = vadd.f32 %v1491, %v1512
        %v1517 = vadd.f32 %v1492, %v1513
        %v1518 = vadd.f32 %v1493, %v1514
        %1519 = vrot.lane.b32.xlu0 %v1430, 124
        %v1520 = vpop.permute.xlu0 %1519
        %1521 = vrot.lane.b32.xlu0 %v1429, 124
        %v1522 = vpop.permute.xlu0 %1521
        %1523 = vrot.lane.b32.xlu0 %v1428, 124
        %v1524 = vpop.permute.xlu0 %1523
        %1525 = vrot.lane.b32.xlu0 %v1427, 124
        %v1526 = vpop.permute.xlu0 %1525
        %v1527 = vsel %vm408, %v1524, %v1526
        %v1528 = vsel %vm408, %v1522, %v1524
        %v1529 = vsel %vm408, %v1520, %v1522
        %v1530 = vsel %vm408, %v1526, %v1520
        %s1531 = scalar_lea.vmem [#allocation5], 1536
        %v1532 = vld [vmem:[%s1531] sm:$0xff]
        %v1533 = vld [vmem:[%s1531 + $0x8] sm:$0xff]
        %v1534 = vld [vmem:[%s1531 + $0x10] sm:$0xff]
        %v1535 = vld [vmem:[%s1531 + $0x18] sm:$0xff]
        %v1536 = vmul.f32 %v1529, %v1532
        %v1537 = vmul.f32 %v1528, %v1533
        %v1538 = vmul.f32 %v1527, %v1534
        %v1539 = vmul.f32 %v1530, %v1535
        %v1540 = vadd.f32 %v1515, %v1536
        %v1541 = vadd.f32 %v1516, %v1537
        %v1542 = vadd.f32 %v1517, %v1538
        %v1543 = vadd.f32 %v1518, %v1539
        %1544 = vrot.lane.b32.xlu0 %v1430, 123
        %v1545 = vpop.permute.xlu0 %1544
        %1546 = vrot.lane.b32.xlu0 %v1429, 123
        %v1547 = vpop.permute.xlu0 %1546
        %1548 = vrot.lane.b32.xlu0 %v1428, 123
        %v1549 = vpop.permute.xlu0 %1548
        %1550 = vrot.lane.b32.xlu0 %v1427, 123
        %v1551 = vpop.permute.xlu0 %1550
        %v1552 = vsel %vm434, %v1549, %v1551
        %v1553 = vsel %vm434, %v1547, %v1549
        %v1554 = vsel %vm434, %v1545, %v1547
        %v1555 = vsel %vm434, %v1551, %v1545
        %s1556 = scalar_lea.vmem [#allocation5], 1568
        %v1557 = vld [vmem:[%s1556] sm:$0xff]
        %v1558 = vld [vmem:[%s1556 + $0x8] sm:$0xff]
        %v1559 = vld [vmem:[%s1556 + $0x10] sm:$0xff]
        %v1560 = vld [vmem:[%s1556 + $0x18] sm:$0xff]
        %v1561 = vmul.f32 %v1554, %v1557
        %v1562 = vmul.f32 %v1553, %v1558
        %v1563 = vmul.f32 %v1552, %v1559
        %v1564 = vmul.f32 %v1555, %v1560
        %v1565 = vadd.f32 %v1540, %v1561
        %v1566 = vadd.f32 %v1541, %v1562
        %v1567 = vadd.f32 %v1542, %v1563
        %v1568 = vadd.f32 %v1543, %v1564
        %1569 = vrot.lane.b32.xlu0 %v1430, 122
        %v1570 = vpop.permute.xlu0 %1569
        %1571 = vrot.lane.b32.xlu0 %v1429, 122
        %v1572 = vpop.permute.xlu0 %1571
        %1573 = vrot.lane.b32.xlu0 %v1428, 122
        %v1574 = vpop.permute.xlu0 %1573
        %1575 = vrot.lane.b32.xlu0 %v1427, 122
        %v1576 = vpop.permute.xlu0 %1575
        %v1577 = vsel %vm460, %v1574, %v1576
        %v1578 = vsel %vm460, %v1572, %v1574
        %v1579 = vsel %vm460, %v1570, %v1572
        %v1580 = vsel %vm460, %v1576, %v1570
        %s1581 = scalar_lea.vmem [#allocation5], 1600
        %v1582 = vld [vmem:[%s1581] sm:$0xff]
        %v1583 = vld [vmem:[%s1581 + $0x8] sm:$0xff]
        %v1584 = vld [vmem:[%s1581 + $0x10] sm:$0xff]
        %v1585 = vld [vmem:[%s1581 + $0x18] sm:$0xff]
        %v1586 = vmul.f32 %v1579, %v1582
        %v1587 = vmul.f32 %v1578, %v1583
        %v1588 = vmul.f32 %v1577, %v1584
        %v1589 = vmul.f32 %v1580, %v1585
        %v1590 = vadd.f32 %v1565, %v1586
        %v1591 = vadd.f32 %v1566, %v1587
        %v1592 = vadd.f32 %v1567, %v1588
        %v1593 = vadd.f32 %v1568, %v1589
        %1594 = vrot.lane.b32.xlu0 %v1430, 121
        %v1595 = vpop.permute.xlu0 %1594
        %1596 = vrot.lane.b32.xlu0 %v1429, 121
        %v1597 = vpop.permute.xlu0 %1596
        %1598 = vrot.lane.b32.xlu0 %v1428, 121
        %v1599 = vpop.permute.xlu0 %1598
        %1600 = vrot.lane.b32.xlu0 %v1427, 121
        %v1601 = vpop.permute.xlu0 %1600
        %v1602 = vsel %vm486, %v1599, %v1601
        %v1603 = vsel %vm486, %v1597, %v1599
        %v1604 = vsel %vm486, %v1595, %v1597
        %v1605 = vsel %vm486, %v1601, %v1595
        %s1606 = scalar_lea.vmem [#allocation5], 1632
        %v1607 = vld [vmem:[%s1606] sm:$0xff]
        %v1608 = vld [vmem:[%s1606 + $0x8] sm:$0xff]
        %v1609 = vld [vmem:[%s1606 + $0x10] sm:$0xff]
        %v1610 = vld [vmem:[%s1606 + $0x18] sm:$0xff]
        %v1611 = vmul.f32 %v1604, %v1607
        %v1612 = vmul.f32 %v1603, %v1608
        %v1613 = vmul.f32 %v1602, %v1609
        %v1614 = vmul.f32 %v1605, %v1610
        %v1615 = vadd.f32 %v1590, %v1611
        %v1616 = vadd.f32 %v1591, %v1612
        %v1617 = vadd.f32 %v1592, %v1613
        %v1618 = vadd.f32 %v1593, %v1614
        %1619 = vrot.lane.b32.xlu0 %v1430, 120
        %v1620 = vpop.permute.xlu0 %1619
        %1621 = vrot.lane.b32.xlu0 %v1429, 120
        %v1622 = vpop.permute.xlu0 %1621
        %1623 = vrot.lane.b32.xlu0 %v1428, 120
        %v1624 = vpop.permute.xlu0 %1623
        %1625 = vrot.lane.b32.xlu0 %v1427, 120
        %v1626 = vpop.permute.xlu0 %1625
        %v1627 = vsel %vm512, %v1624, %v1626
        %v1628 = vsel %vm512, %v1622, %v1624
        %v1629 = vsel %vm512, %v1620, %v1622
        %v1630 = vsel %vm512, %v1626, %v1620
        %s1631 = scalar_lea.vmem [#allocation5], 1664
        %v1632 = vld [vmem:[%s1631] sm:$0xff]
        %v1633 = vld [vmem:[%s1631 + $0x8] sm:$0xff]
        %v1634 = vld [vmem:[%s1631 + $0x10] sm:$0xff]
        %v1635 = vld [vmem:[%s1631 + $0x18] sm:$0xff]
        %v1636 = vmul.f32 %v1629, %v1632
        %v1637 = vmul.f32 %v1628, %v1633
        %v1638 = vmul.f32 %v1627, %v1634
        %v1639 = vmul.f32 %v1630, %v1635
        %v1640 = vadd.f32 %v1615, %v1636
        %v1641 = vadd.f32 %v1616, %v1637
        %v1642 = vadd.f32 %v1617, %v1638
        %v1643 = vadd.f32 %v1618, %v1639
        %1644 = vrot.lane.b32.xlu0 %v1430, 119
        %v1645 = vpop.permute.xlu0 %1644
        %1646 = vrot.lane.b32.xlu0 %v1429, 119
        %v1647 = vpop.permute.xlu0 %1646
        %1648 = vrot.lane.b32.xlu0 %v1428, 119
        %v1649 = vpop.permute.xlu0 %1648
        %1650 = vrot.lane.b32.xlu0 %v1427, 119
        %v1651 = vpop.permute.xlu0 %1650
        %v1652 = vsel %vm538, %v1649, %v1651
        %v1653 = vsel %vm538, %v1647, %v1649
        %v1654 = vsel %vm538, %v1645, %v1647
        %v1655 = vsel %vm538, %v1651, %v1645
        %s1656 = scalar_lea.vmem [#allocation5], 1696
        %v1657 = vld [vmem:[%s1656] sm:$0xff]
        %v1658 = vld [vmem:[%s1656 + $0x8] sm:$0xff]
        %v1659 = vld [vmem:[%s1656 + $0x10] sm:$0xff]
        %v1660 = vld [vmem:[%s1656 + $0x18] sm:$0xff]
        %v1661 = vmul.f32 %v1654, %v1657
        %v1662 = vmul.f32 %v1653, %v1658
        %v1663 = vmul.f32 %v1652, %v1659
        %v1664 = vmul.f32 %v1655, %v1660
        %v1665 = vadd.f32 %v1640, %v1661
        %v1666 = vadd.f32 %v1641, %v1662
        %v1667 = vadd.f32 %v1642, %v1663
        %v1668 = vadd.f32 %v1643, %v1664
        %1669 = vrot.lane.b32.xlu0 %v1430, 118
        %v1670 = vpop.permute.xlu0 %1669
        %1671 = vrot.lane.b32.xlu0 %v1429, 118
        %v1672 = vpop.permute.xlu0 %1671
        %1673 = vrot.lane.b32.xlu0 %v1428, 118
        %v1674 = vpop.permute.xlu0 %1673
        %1675 = vrot.lane.b32.xlu0 %v1427, 118
        %v1676 = vpop.permute.xlu0 %1675
        %v1677 = vsel %vm564, %v1674, %v1676
        %v1678 = vsel %vm564, %v1672, %v1674
        %v1679 = vsel %vm564, %v1670, %v1672
        %v1680 = vsel %vm564, %v1676, %v1670
        %s1681 = scalar_lea.vmem [#allocation5], 1728
        %v1682 = vld [vmem:[%s1681] sm:$0xff]
        %v1683 = vld [vmem:[%s1681 + $0x8] sm:$0xff]
        %v1684 = vld [vmem:[%s1681 + $0x10] sm:$0xff]
        %v1685 = vld [vmem:[%s1681 + $0x18] sm:$0xff]
        %v1686 = vmul.f32 %v1679, %v1682
        %v1687 = vmul.f32 %v1678, %v1683
        %v1688 = vmul.f32 %v1677, %v1684
        %v1689 = vmul.f32 %v1680, %v1685
        %v1690 = vadd.f32 %v1665, %v1686
        %v1691 = vadd.f32 %v1666, %v1687
        %v1692 = vadd.f32 %v1667, %v1688
        %v1693 = vadd.f32 %v1668, %v1689
        %1694 = vrot.lane.b32.xlu0 %v310, 126
        %v1695 = vpop.permute.xlu0 %1694
        %1696 = vrot.lane.b32.xlu0 %v311, 126
        %v1697 = vpop.permute.xlu0 %1696
        %v1698 = vsel %vm356, %v1695, %v1697
        %v1699 = vsel %vm356, %v355, %v1695
        %s1700 = scalar_lea.vmem [#allocation5], 1760
        %v1701 = vld [vmem:[%s1700] sm:$0xff]
        %v1702 = vld [vmem:[%s1700 + $0x8] sm:$0xff]
        %v1703 = vld [vmem:[%s1700 + $0x10] sm:$0xff]
        %v1704 = vld [vmem:[%s1700 + $0x18] sm:$0xff]
        %v1705 = vmul.f32 %v358, %v1701
        %v1706 = vmul.f32 %v357, %v1702
        %v1707 = vmul.f32 %v1699, %v1703
        %v1708 = vmul.f32 %v1698, %v1704
        %v1709 = vadd.f32 %v1690, %v1705
        %v1710 = vadd.f32 %v1691, %v1706
        %v1711 = vadd.f32 %v1692, %v1707
        %v1712 = vadd.f32 %v1693, %v1708
        %1713 = vrot.lane.b32.xlu0 %v358, 127
        %v1714 = vpop.permute.xlu0 %1713
        %1715 = vrot.lane.b32.xlu0 %v357, 127
        %v1716 = vpop.permute.xlu0 %1715
        %1717 = vrot.lane.b32.xlu0 %v1699, 127
        %v1718 = vpop.permute.xlu0 %1717
        %1719 = vrot.lane.b32.xlu0 %v1698, 127
        %v1720 = vpop.permute.xlu0 %1719
        %v1721 = vsel %vm330, %v1718, %v1720
        %v1722 = vsel %vm330, %v1716, %v1718
        %v1723 = vsel %vm330, %v1714, %v1716
        %v1724 = vsel %vm330, %v1720, %v1714
        %s1725 = scalar_lea.vmem [#allocation5], 1792
        %v1726 = vld [vmem:[%s1725] sm:$0xff]
        %v1727 = vld [vmem:[%s1725 + $0x8] sm:$0xff]
        %v1728 = vld [vmem:[%s1725 + $0x10] sm:$0xff]
        %v1729 = vld [vmem:[%s1725 + $0x18] sm:$0xff]
        %v1730 = vmul.f32 %v1723, %v1726
        %v1731 = vmul.f32 %v1722, %v1727
        %v1732 = vmul.f32 %v1721, %v1728
        %v1733 = vmul.f32 %v1724, %v1729
        %v1734 = vadd.f32 %v1709, %v1730
        %v1735 = vadd.f32 %v1710, %v1731
        %v1736 = vadd.f32 %v1711, %v1732
        %v1737 = vadd.f32 %v1712, %v1733
        %1738 = vrot.lane.b32.xlu0 %v358, 126
        %v1739 = vpop.permute.xlu0 %1738
        %1740 = vrot.lane.b32.xlu0 %v357, 126
        %v1741 = vpop.permute.xlu0 %1740
        %1742 = vrot.lane.b32.xlu0 %v1699, 126
        %v1743 = vpop.permute.xlu0 %1742
        %1744 = vrot.lane.b32.xlu0 %v1698, 126
        %v1745 = vpop.permute.xlu0 %1744
        %v1746 = vsel %vm356, %v1743, %v1745
        %v1747 = vsel %vm356, %v1741, %v1743
        %v1748 = vsel %vm356, %v1739, %v1741
        %v1749 = vsel %vm356, %v1745, %v1739
        %s1750 = scalar_lea.vmem [#allocation5], 1824
        %v1751 = vld [vmem:[%s1750] sm:$0xff]
        %v1752 = vld [vmem:[%s1750 + $0x8] sm:$0xff]
        %v1753 = vld [vmem:[%s1750 + $0x10] sm:$0xff]
        %v1754 = vld [vmem:[%s1750 + $0x18] sm:$0xff]
        %v1755 = vmul.f32 %v1748, %v1751
        %v1756 = vmul.f32 %v1747, %v1752
        %v1757 = vmul.f32 %v1746, %v1753
        %v1758 = vmul.f32 %v1749, %v1754
        %v1759 = vadd.f32 %v1734, %v1755
        %v1760 = vadd.f32 %v1735, %v1756
        %v1761 = vadd.f32 %v1736, %v1757
        %v1762 = vadd.f32 %v1737, %v1758
        %1763 = vrot.lane.b32.xlu0 %v358, 125
        %v1764 = vpop.permute.xlu0 %1763
        %1765 = vrot.lane.b32.xlu0 %v357, 125
        %v1766 = vpop.permute.xlu0 %1765
        %1767 = vrot.lane.b32.xlu0 %v1699, 125
        %v1768 = vpop.permute.xlu0 %1767
        %1769 = vrot.lane.b32.xlu0 %v1698, 125
        %v1770 = vpop.permute.xlu0 %1769
        %v1771 = vsel %vm382, %v1768, %v1770
        %v1772 = vsel %vm382, %v1766, %v1768
        %v1773 = vsel %vm382, %v1764, %v1766
        %v1774 = vsel %vm382, %v1770, %v1764
        %s1775 = scalar_lea.vmem [#allocation5], 1856
        %v1776 = vld [vmem:[%s1775] sm:$0xff]
        %v1777 = vld [vmem:[%s1775 + $0x8] sm:$0xff]
        %v1778 = vld [vmem:[%s1775 + $0x10] sm:$0xff]
        %v1779 = vld [vmem:[%s1775 + $0x18] sm:$0xff]
        %v1780 = vmul.f32 %v1773, %v1776
        %v1781 = vmul.f32 %v1772, %v1777
        %v1782 = vmul.f32 %v1771, %v1778
        %v1783 = vmul.f32 %v1774, %v1779
        %v1784 = vadd.f32 %v1759, %v1780
        %v1785 = vadd.f32 %v1760, %v1781
        %v1786 = vadd.f32 %v1761, %v1782
        %v1787 = vadd.f32 %v1762, %v1783
        %1788 = vrot.lane.b32.xlu0 %v358, 124
        %v1789 = vpop.permute.xlu0 %1788
        %1790 = vrot.lane.b32.xlu0 %v357, 124
        %v1791 = vpop.permute.xlu0 %1790
        %1792 = vrot.lane.b32.xlu0 %v1699, 124
        %v1793 = vpop.permute.xlu0 %1792
        %1794 = vrot.lane.b32.xlu0 %v1698, 124
        %v1795 = vpop.permute.xlu0 %1794
        %v1796 = vsel %vm408, %v1793, %v1795
        %v1797 = vsel %vm408, %v1791, %v1793
        %v1798 = vsel %vm408, %v1789, %v1791
        %v1799 = vsel %vm408, %v1795, %v1789
        %s1800 = scalar_lea.vmem [#allocation5], 1888
        %v1801 = vld [vmem:[%s1800] sm:$0xff]
        %v1802 = vld [vmem:[%s1800 + $0x8] sm:$0xff]
        %v1803 = vld [vmem:[%s1800 + $0x10] sm:$0xff]
        %v1804 = vld [vmem:[%s1800 + $0x18] sm:$0xff]
        %v1805 = vmul.f32 %v1798, %v1801
        %v1806 = vmul.f32 %v1797, %v1802
        %v1807 = vmul.f32 %v1796, %v1803
        %v1808 = vmul.f32 %v1799, %v1804
        %v1809 = vadd.f32 %v1784, %v1805
        %v1810 = vadd.f32 %v1785, %v1806
        %v1811 = vadd.f32 %v1786, %v1807
        %v1812 = vadd.f32 %v1787, %v1808
        %1813 = vrot.lane.b32.xlu0 %v358, 123
        %v1814 = vpop.permute.xlu0 %1813
        %1815 = vrot.lane.b32.xlu0 %v357, 123
        %v1816 = vpop.permute.xlu0 %1815
        %1817 = vrot.lane.b32.xlu0 %v1699, 123
        %v1818 = vpop.permute.xlu0 %1817
        %1819 = vrot.lane.b32.xlu0 %v1698, 123
        %v1820 = vpop.permute.xlu0 %1819
        %v1821 = vsel %vm434, %v1818, %v1820
        %v1822 = vsel %vm434, %v1816, %v1818
        %v1823 = vsel %vm434, %v1814, %v1816
        %v1824 = vsel %vm434, %v1820, %v1814
        %s1825 = scalar_lea.vmem [#allocation5], 1920
        %v1826 = vld [vmem:[%s1825] sm:$0xff]
        %v1827 = vld [vmem:[%s1825 + $0x8] sm:$0xff]
        %v1828 = vld [vmem:[%s1825 + $0x10] sm:$0xff]
        %v1829 = vld [vmem:[%s1825 + $0x18] sm:$0xff]
        %v1830 = vmul.f32 %v1823, %v1826
        %v1831 = vmul.f32 %v1822, %v1827
        %v1832 = vmul.f32 %v1821, %v1828
        %v1833 = vmul.f32 %v1824, %v1829
        %v1834 = vadd.f32 %v1809, %v1830
        %v1835 = vadd.f32 %v1810, %v1831
        %v1836 = vadd.f32 %v1811, %v1832
        %v1837 = vadd.f32 %v1812, %v1833
        %1838 = vrot.lane.b32.xlu0 %v358, 122
        %v1839 = vpop.permute.xlu0 %1838
        %1840 = vrot.lane.b32.xlu0 %v357, 122
        %v1841 = vpop.permute.xlu0 %1840
        %1842 = vrot.lane.b32.xlu0 %v1699, 122
        %v1843 = vpop.permute.xlu0 %1842
        %1844 = vrot.lane.b32.xlu0 %v1698, 122
        %v1845 = vpop.permute.xlu0 %1844
        %v1846 = vsel %vm460, %v1843, %v1845
        %v1847 = vsel %vm460, %v1841, %v1843
        %v1848 = vsel %vm460, %v1839, %v1841
        %v1849 = vsel %vm460, %v1845, %v1839
        %s1850 = scalar_lea.vmem [#allocation5], 1952
        %v1851 = vld [vmem:[%s1850] sm:$0xff]
        %v1852 = vld [vmem:[%s1850 + $0x8] sm:$0xff]
        %v1853 = vld [vmem:[%s1850 + $0x10] sm:$0xff]
        %v1854 = vld [vmem:[%s1850 + $0x18] sm:$0xff]
        %v1855 = vmul.f32 %v1848, %v1851
        %v1856 = vmul.f32 %v1847, %v1852
        %v1857 = vmul.f32 %v1846, %v1853
        %v1858 = vmul.f32 %v1849, %v1854
        %v1859 = vadd.f32 %v1834, %v1855
        %v1860 = vadd.f32 %v1835, %v1856
        %v1861 = vadd.f32 %v1836, %v1857
        %v1862 = vadd.f32 %v1837, %v1858
        %1863 = vrot.lane.b32.xlu0 %v358, 121
        %v1864 = vpop.permute.xlu0 %1863
        %1865 = vrot.lane.b32.xlu0 %v357, 121
        %v1866 = vpop.permute.xlu0 %1865
        %1867 = vrot.lane.b32.xlu0 %v1699, 121
        %v1868 = vpop.permute.xlu0 %1867
        %1869 = vrot.lane.b32.xlu0 %v1698, 121
        %v1870 = vpop.permute.xlu0 %1869
        %v1871 = vsel %vm486, %v1868, %v1870
        %v1872 = vsel %vm486, %v1866, %v1868
        %v1873 = vsel %vm486, %v1864, %v1866
        %v1874 = vsel %vm486, %v1870, %v1864
        %s1875 = scalar_lea.vmem [#allocation5], 1984
        %v1876 = vld [vmem:[%s1875] sm:$0xff]
        %v1877 = vld [vmem:[%s1875 + $0x8] sm:$0xff]
        %v1878 = vld [vmem:[%s1875 + $0x10] sm:$0xff]
        %v1879 = vld [vmem:[%s1875 + $0x18] sm:$0xff]
        %v1880 = vmul.f32 %v1873, %v1876
        %v1881 = vmul.f32 %v1872, %v1877
        %v1882 = vmul.f32 %v1871, %v1878
        %v1883 = vmul.f32 %v1874, %v1879
        %v1884 = vadd.f32 %v1859, %v1880
        %v1885 = vadd.f32 %v1860, %v1881
        %v1886 = vadd.f32 %v1861, %v1882
        %v1887 = vadd.f32 %v1862, %v1883
        %1888 = vrot.lane.b32.xlu0 %v358, 120
        %v1889 = vpop.permute.xlu0 %1888
        %1890 = vrot.lane.b32.xlu0 %v357, 120
        %v1891 = vpop.permute.xlu0 %1890
        %1892 = vrot.lane.b32.xlu0 %v1699, 120
        %v1893 = vpop.permute.xlu0 %1892
        %1894 = vrot.lane.b32.xlu0 %v1698, 120
        %v1895 = vpop.permute.xlu0 %1894
        %v1896 = vsel %vm512, %v1893, %v1895
        %v1897 = vsel %vm512, %v1891, %v1893
        %v1898 = vsel %vm512, %v1889, %v1891
        %v1899 = vsel %vm512, %v1895, %v1889
        %s1900 = scalar_lea.vmem [#allocation5], 2016
        %v1901 = vld [vmem:[%s1900] sm:$0xff]
        %v1902 = vld [vmem:[%s1900 + $0x8] sm:$0xff]
        %v1903 = vld [vmem:[%s1900 + $0x10] sm:$0xff]
        %v1904 = vld [vmem:[%s1900 + $0x18] sm:$0xff]
        %v1905 = vmul.f32 %v1898, %v1901
        %v1906 = vmul.f32 %v1897, %v1902
        %v1907 = vmul.f32 %v1896, %v1903
        %v1908 = vmul.f32 %v1899, %v1904
        %v1909 = vadd.f32 %v1884, %v1905
        %v1910 = vadd.f32 %v1885, %v1906
        %v1911 = vadd.f32 %v1886, %v1907
        %v1912 = vadd.f32 %v1887, %v1908
        %1913 = vrot.lane.b32.xlu0 %v358, 119
        %v1914 = vpop.permute.xlu0 %1913
        %1915 = vrot.lane.b32.xlu0 %v357, 119
        %v1916 = vpop.permute.xlu0 %1915
        %1917 = vrot.lane.b32.xlu0 %v1699, 119
        %v1918 = vpop.permute.xlu0 %1917
        %1919 = vrot.lane.b32.xlu0 %v1698, 119
        %v1920 = vpop.permute.xlu0 %1919
        %v1921 = vsel %vm538, %v1918, %v1920
        %v1922 = vsel %vm538, %v1916, %v1918
        %v1923 = vsel %vm538, %v1914, %v1916
        %v1924 = vsel %vm538, %v1920, %v1914
        %s1925 = scalar_lea.vmem [#allocation5], 2048
        %v1926 = vld [vmem:[%s1925] sm:$0xff]
        %v1927 = vld [vmem:[%s1925 + $0x8] sm:$0xff]
        %v1928 = vld [vmem:[%s1925 + $0x10] sm:$0xff]
        %v1929 = vld [vmem:[%s1925 + $0x18] sm:$0xff]
        %v1930 = vmul.f32 %v1923, %v1926
        %v1931 = vmul.f32 %v1922, %v1927
        %v1932 = vmul.f32 %v1921, %v1928
        %v1933 = vmul.f32 %v1924, %v1929
        %v1934 = vadd.f32 %v1909, %v1930
        %v1935 = vadd.f32 %v1910, %v1931
        %v1936 = vadd.f32 %v1911, %v1932
        %v1937 = vadd.f32 %v1912, %v1933
        %1938 = vrot.lane.b32.xlu0 %v358, 118
        %v1939 = vpop.permute.xlu0 %1938
        %1940 = vrot.lane.b32.xlu0 %v357, 118
        %v1941 = vpop.permute.xlu0 %1940
        %1942 = vrot.lane.b32.xlu0 %v1699, 118
        %v1943 = vpop.permute.xlu0 %1942
        %1944 = vrot.lane.b32.xlu0 %v1698, 118
        %v1945 = vpop.permute.xlu0 %1944
        %v1946 = vsel %vm564, %v1943, %v1945
        %v1947 = vsel %vm564, %v1941, %v1943
        %v1948 = vsel %vm564, %v1939, %v1941
        %v1949 = vsel %vm564, %v1945, %v1939
        %s1950 = scalar_lea.vmem [#allocation5], 2080
        %v1951 = vld [vmem:[%s1950] sm:$0xff]
        %v1952 = vld [vmem:[%s1950 + $0x8] sm:$0xff]
        %v1953 = vld [vmem:[%s1950 + $0x10] sm:$0xff]
        %v1954 = vld [vmem:[%s1950 + $0x18] sm:$0xff]
        %v1955 = vmul.f32 %v1948, %v1951
        %v1956 = vmul.f32 %v1947, %v1952
        %v1957 = vmul.f32 %v1946, %v1953
        %v1958 = vmul.f32 %v1949, %v1954
        %v1959 = vadd.f32 %v1934, %v1955
        %v1960 = vadd.f32 %v1935, %v1956
        %v1961 = vadd.f32 %v1936, %v1957
        %v1962 = vadd.f32 %v1937, %v1958
        %1963 = vrot.lane.b32.xlu0 %v307, 100
        %v1964 = vpop.permute.xlu0 %1963
        %1965 = vrot.lane.b32.xlu0 %v308, 100
        %v1966 = vpop.permute.xlu0 %1965
        %1967 = vrot.lane.b32.xlu0 %v309, 100
        %v1968 = vpop.permute.xlu0 %1967
        %1969 = vrot.lane.b32.xlu0 %v310, 100
        %v1970 = vpop.permute.xlu0 %1969
        %1971 = vrot.lane.b32.xlu0 %v311, 100
        %v1972 = vpop.permute.xlu0 %1971
        %vm1973 = vcmp.lt.s32.totalorder %v329, 100
        %v1974 = vsel %vm1973, %v1970, %v1972
        %v1975 = vsel %vm1973, %v1968, %v1970
        %v1976 = vsel %vm1973, %v1966, %v1968
        %v1977 = vsel %vm1973, %v1964, %v1966
        %s1978 = scalar_lea.vmem [#allocation5], 2112
        %v1979 = vld [vmem:[%s1978] sm:$0xff]
        %v1980 = vld [vmem:[%s1978 + $0x8] sm:$0xff]
        %v1981 = vld [vmem:[%s1978 + $0x10] sm:$0xff]
        %v1982 = vld [vmem:[%s1978 + $0x18] sm:$0xff]
        %v1983 = vmul.f32 %v1977, %v1979
        %v1984 = vmul.f32 %v1976, %v1980
        %v1985 = vmul.f32 %v1975, %v1981
        %v1986 = vmul.f32 %v1974, %v1982
        %v1987 = vadd.f32 %v1959, %v1983
        %v1988 = vadd.f32 %v1960, %v1984
        %v1989 = vadd.f32 %v1961, %v1985
        %v1990 = vadd.f32 %v1962, %v1986
        %1991 = vrot.lane.b32.xlu0 %v1977, 127
        %v1992 = vpop.permute.xlu0 %1991
        %1993 = vrot.lane.b32.xlu0 %v1976, 127
        %v1994 = vpop.permute.xlu0 %1993
        %1995 = vrot.lane.b32.xlu0 %v1975, 127
        %v1996 = vpop.permute.xlu0 %1995
        %1997 = vrot.lane.b32.xlu0 %v1974, 127
        %v1998 = vpop.permute.xlu0 %1997
        %v1999 = vsel %vm330, %v1996, %v1998
        %v2000 = vsel %vm330, %v1994, %v1996
        %v2001 = vsel %vm330, %v1992, %v1994
        %v2002 = vsel %vm330, %v1998, %v1992
        %s2003 = scalar_lea.vmem [#allocation5], 2144
        %v2004 = vld [vmem:[%s2003] sm:$0xff]
        %v2005 = vld [vmem:[%s2003 + $0x8] sm:$0xff]
        %v2006 = vld [vmem:[%s2003 + $0x10] sm:$0xff]
        %v2007 = vld [vmem:[%s2003 + $0x18] sm:$0xff]
        %v2008 = vmul.f32 %v2001, %v2004
        %v2009 = vmul.f32 %v2000, %v2005
        %v2010 = vmul.f32 %v1999, %v2006
        %v2011 = vmul.f32 %v2002, %v2007
        %v2012 = vadd.f32 %v1987, %v2008
        %v2013 = vadd.f32 %v1988, %v2009
        %v2014 = vadd.f32 %v1989, %v2010
        %v2015 = vadd.f32 %v1990, %v2011
        %2016 = vrot.lane.b32.xlu0 %v1977, 126
        %v2017 = vpop.permute.xlu0 %2016
        %2018 = vrot.lane.b32.xlu0 %v1976, 126
        %v2019 = vpop.permute.xlu0 %2018
        %2020 = vrot.lane.b32.xlu0 %v1975, 126
        %v2021 = vpop.permute.xlu0 %2020
        %2022 = vrot.lane.b32.xlu0 %v1974, 126
        %v2023 = vpop.permute.xlu0 %2022
        %v2024 = vsel %vm356, %v2021, %v2023
        %v2025 = vsel %vm356, %v2019, %v2021
        %v2026 = vsel %vm356, %v2017, %v2019
        %v2027 = vsel %vm356, %v2023, %v2017
        %s2028 = scalar_lea.vmem [#allocation5], 2176
        %v2029 = vld [vmem:[%s2028] sm:$0xff]
        %v2030 = vld [vmem:[%s2028 + $0x8] sm:$0xff]
        %v2031 = vld [vmem:[%s2028 + $0x10] sm:$0xff]
        %v2032 = vld [vmem:[%s2028 + $0x18] sm:$0xff]
        %v2033 = vmul.f32 %v2026, %v2029
        %v2034 = vmul.f32 %v2025, %v2030
        %v2035 = vmul.f32 %v2024, %v2031
        %v2036 = vmul.f32 %v2027, %v2032
        %v2037 = vadd.f32 %v2012, %v2033
        %v2038 = vadd.f32 %v2013, %v2034
        %v2039 = vadd.f32 %v2014, %v2035
        %v2040 = vadd.f32 %v2015, %v2036
        %2041 = vrot.lane.b32.xlu0 %v1977, 125
        %v2042 = vpop.permute.xlu0 %2041
        %2043 = vrot.lane.b32.xlu0 %v1976, 125
        %v2044 = vpop.permute.xlu0 %2043
        %2045 = vrot.lane.b32.xlu0 %v1975, 125
        %v2046 = vpop.permute.xlu0 %2045
        %2047 = vrot.lane.b32.xlu0 %v1974, 125
        %v2048 = vpop.permute.xlu0 %2047
        %v2049 = vsel %vm382, %v2046, %v2048
        %v2050 = vsel %vm382, %v2044, %v2046
        %v2051 = vsel %vm382, %v2042, %v2044
        %v2052 = vsel %vm382, %v2048, %v2042
        %s2053 = scalar_lea.vmem [#allocation5], 2208
        %v2054 = vld [vmem:[%s2053] sm:$0xff]
        %v2055 = vld [vmem:[%s2053 + $0x8] sm:$0xff]
        %v2056 = vld [vmem:[%s2053 + $0x10] sm:$0xff]
        %v2057 = vld [vmem:[%s2053 + $0x18] sm:$0xff]
        %v2058 = vmul.f32 %v2051, %v2054
        %v2059 = vmul.f32 %v2050, %v2055
        %v2060 = vmul.f32 %v2049, %v2056
        %v2061 = vmul.f32 %v2052, %v2057
        %v2062 = vadd.f32 %v2037, %v2058
        %v2063 = vadd.f32 %v2038, %v2059
        %v2064 = vadd.f32 %v2039, %v2060
        %v2065 = vadd.f32 %v2040, %v2061
        %2066 = vrot.lane.b32.xlu0 %v1977, 124
        %v2067 = vpop.permute.xlu0 %2066
        %2068 = vrot.lane.b32.xlu0 %v1976, 124
        %v2069 = vpop.permute.xlu0 %2068
        %2070 = vrot.lane.b32.xlu0 %v1975, 124
        %v2071 = vpop.permute.xlu0 %2070
        %2072 = vrot.lane.b32.xlu0 %v1974, 124
        %v2073 = vpop.permute.xlu0 %2072
        %v2074 = vsel %vm408, %v2071, %v2073
        %v2075 = vsel %vm408, %v2069, %v2071
        %v2076 = vsel %vm408, %v2067, %v2069
        %v2077 = vsel %vm408, %v2073, %v2067
        %s2078 = scalar_lea.vmem [#allocation5], 2240
        %v2079 = vld [vmem:[%s2078] sm:$0xff]
        %v2080 = vld [vmem:[%s2078 + $0x8] sm:$0xff]
        %v2081 = vld [vmem:[%s2078 + $0x10] sm:$0xff]
        %v2082 = vld [vmem:[%s2078 + $0x18] sm:$0xff]
        %v2083 = vmul.f32 %v2076, %v2079
        %v2084 = vmul.f32 %v2075, %v2080
        %v2085 = vmul.f32 %v2074, %v2081
        %v2086 = vmul.f32 %v2077, %v2082
        %v2087 = vadd.f32 %v2062, %v2083
        %v2088 = vadd.f32 %v2063, %v2084
        %v2089 = vadd.f32 %v2064, %v2085
        %v2090 = vadd.f32 %v2065, %v2086
        %2091 = vrot.lane.b32.xlu0 %v1977, 123
        %v2092 = vpop.permute.xlu0 %2091
        %2093 = vrot.lane.b32.xlu0 %v1976, 123
        %v2094 = vpop.permute.xlu0 %2093
        %2095 = vrot.lane.b32.xlu0 %v1975, 123
        %v2096 = vpop.permute.xlu0 %2095
        %2097 = vrot.lane.b32.xlu0 %v1974, 123
        %v2098 = vpop.permute.xlu0 %2097
        %v2099 = vsel %vm434, %v2096, %v2098
        %v2100 = vsel %vm434, %v2094, %v2096
        %v2101 = vsel %vm434, %v2092, %v2094
        %v2102 = vsel %vm434, %v2098, %v2092
        %s2103 = scalar_lea.vmem [#allocation5], 2272
        %v2104 = vld [vmem:[%s2103] sm:$0xff]
        %v2105 = vld [vmem:[%s2103 + $0x8] sm:$0xff]
        %v2106 = vld [vmem:[%s2103 + $0x10] sm:$0xff]
        %v2107 = vld [vmem:[%s2103 + $0x18] sm:$0xff]
        %v2108 = vmul.f32 %v2101, %v2104
        %v2109 = vmul.f32 %v2100, %v2105
        %v2110 = vmul.f32 %v2099, %v2106
        %v2111 = vmul.f32 %v2102, %v2107
        %v2112 = vadd.f32 %v2087, %v2108
        %v2113 = vadd.f32 %v2088, %v2109
        %v2114 = vadd.f32 %v2089, %v2110
        %v2115 = vadd.f32 %v2090, %v2111
        %2116 = vrot.lane.b32.xlu0 %v1977, 122
        %v2117 = vpop.permute.xlu0 %2116
        %2118 = vrot.lane.b32.xlu0 %v1976, 122
        %v2119 = vpop.permute.xlu0 %2118
        %2120 = vrot.lane.b32.xlu0 %v1975, 122
        %v2121 = vpop.permute.xlu0 %2120
        %2122 = vrot.lane.b32.xlu0 %v1974, 122
        %v2123 = vpop.permute.xlu0 %2122
        %v2124 = vsel %vm460, %v2121, %v2123
        %v2125 = vsel %vm460, %v2119, %v2121
        %v2126 = vsel %vm460, %v2117, %v2119
        %v2127 = vsel %vm460, %v2123, %v2117
        %s2128 = scalar_lea.vmem [#allocation5], 2304
        %v2129 = vld [vmem:[%s2128] sm:$0xff]
        %v2130 = vld [vmem:[%s2128 + $0x8] sm:$0xff]
        %v2131 = vld [vmem:[%s2128 + $0x10] sm:$0xff]
        %v2132 = vld [vmem:[%s2128 + $0x18] sm:$0xff]
        %v2133 = vmul.f32 %v2126, %v2129
        %v2134 = vmul.f32 %v2125, %v2130
        %v2135 = vmul.f32 %v2124, %v2131
        %v2136 = vmul.f32 %v2127, %v2132
        %v2137 = vadd.f32 %v2112, %v2133
        %v2138 = vadd.f32 %v2113, %v2134
        %v2139 = vadd.f32 %v2114, %v2135
        %v2140 = vadd.f32 %v2115, %v2136
        %2141 = vrot.lane.b32.xlu0 %v1977, 121
        %v2142 = vpop.permute.xlu0 %2141
        %2143 = vrot.lane.b32.xlu0 %v1976, 121
        %v2144 = vpop.permute.xlu0 %2143
        %2145 = vrot.lane.b32.xlu0 %v1975, 121
        %v2146 = vpop.permute.xlu0 %2145
        %2147 = vrot.lane.b32.xlu0 %v1974, 121
        %v2148 = vpop.permute.xlu0 %2147
        %v2149 = vsel %vm486, %v2146, %v2148
        %v2150 = vsel %vm486, %v2144, %v2146
        %v2151 = vsel %vm486, %v2142, %v2144
        %v2152 = vsel %vm486, %v2148, %v2142
        %s2153 = scalar_lea.vmem [#allocation5], 2336
        %v2154 = vld [vmem:[%s2153] sm:$0xff]
        %v2155 = vld [vmem:[%s2153 + $0x8] sm:$0xff]
        %v2156 = vld [vmem:[%s2153 + $0x10] sm:$0xff]
        %v2157 = vld [vmem:[%s2153 + $0x18] sm:$0xff]
        %v2158 = vmul.f32 %v2151, %v2154
        %v2159 = vmul.f32 %v2150, %v2155
        %v2160 = vmul.f32 %v2149, %v2156
        %v2161 = vmul.f32 %v2152, %v2157
        %v2162 = vadd.f32 %v2137, %v2158
        %v2163 = vadd.f32 %v2138, %v2159
        %v2164 = vadd.f32 %v2139, %v2160
        %v2165 = vadd.f32 %v2140, %v2161
        %2166 = vrot.lane.b32.xlu0 %v1977, 120
        %v2167 = vpop.permute.xlu0 %2166
        %2168 = vrot.lane.b32.xlu0 %v1976, 120
        %v2169 = vpop.permute.xlu0 %2168
        %2170 = vrot.lane.b32.xlu0 %v1975, 120
        %v2171 = vpop.permute.xlu0 %2170
        %2172 = vrot.lane.b32.xlu0 %v1974, 120
        %v2173 = vpop.permute.xlu0 %2172
        %v2174 = vsel %vm512, %v2171, %v2173
        %v2175 = vsel %vm512, %v2169, %v2171
        %v2176 = vsel %vm512, %v2167, %v2169
        %v2177 = vsel %vm512, %v2173, %v2167
        %s2178 = scalar_lea.vmem [#allocation5], 2368
        %v2179 = vld [vmem:[%s2178] sm:$0xff]
        %v2180 = vld [vmem:[%s2178 + $0x8] sm:$0xff]
        %v2181 = vld [vmem:[%s2178 + $0x10] sm:$0xff]
        %v2182 = vld [vmem:[%s2178 + $0x18] sm:$0xff]
        %v2183 = vmul.f32 %v2176, %v2179
        %v2184 = vmul.f32 %v2175, %v2180
        %v2185 = vmul.f32 %v2174, %v2181
        %v2186 = vmul.f32 %v2177, %v2182
        %v2187 = vadd.f32 %v2162, %v2183
        %v2188 = vadd.f32 %v2163, %v2184
        %v2189 = vadd.f32 %v2164, %v2185
        %v2190 = vadd.f32 %v2165, %v2186
        %2191 = vrot.lane.b32.xlu0 %v1977, 119
        %v2192 = vpop.permute.xlu0 %2191
        %2193 = vrot.lane.b32.xlu0 %v1976, 119
        %v2194 = vpop.permute.xlu0 %2193
        %2195 = vrot.lane.b32.xlu0 %v1975, 119
        %v2196 = vpop.permute.xlu0 %2195
        %2197 = vrot.lane.b32.xlu0 %v1974, 119
        %v2198 = vpop.permute.xlu0 %2197
        %v2199 = vsel %vm538, %v2196, %v2198
        %v2200 = vsel %vm538, %v2194, %v2196
        %v2201 = vsel %vm538, %v2192, %v2194
        %v2202 = vsel %vm538, %v2198, %v2192
        %s2203 = scalar_lea.vmem [#allocation5], 2400
        %v2204 = vld [vmem:[%s2203] sm:$0xff]
        %v2205 = vld [vmem:[%s2203 + $0x8] sm:$0xff]
        %v2206 = vld [vmem:[%s2203 + $0x10] sm:$0xff]
        %v2207 = vld [vmem:[%s2203 + $0x18] sm:$0xff]
        %v2208 = vmul.f32 %v2201, %v2204
        %v2209 = vmul.f32 %v2200, %v2205
        %v2210 = vmul.f32 %v2199, %v2206
        %v2211 = vmul.f32 %v2202, %v2207
        %v2212 = vadd.f32 %v2187, %v2208
        %v2213 = vadd.f32 %v2188, %v2209
        %v2214 = vadd.f32 %v2189, %v2210
        %v2215 = vadd.f32 %v2190, %v2211
        %2216 = vrot.lane.b32.xlu0 %v1977, 118
        %v2217 = vpop.permute.xlu0 %2216
        %2218 = vrot.lane.b32.xlu0 %v1976, 118
        %v2219 = vpop.permute.xlu0 %2218
        %2220 = vrot.lane.b32.xlu0 %v1975, 118
        %v2221 = vpop.permute.xlu0 %2220
        %2222 = vrot.lane.b32.xlu0 %v1974, 118
        %v2223 = vpop.permute.xlu0 %2222
        %v2224 = vsel %vm564, %v2221, %v2223
        %v2225 = vsel %vm564, %v2219, %v2221
        %v2226 = vsel %vm564, %v2217, %v2219
        %v2227 = vsel %vm564, %v2223, %v2217
        %s2228 = scalar_lea.vmem [#allocation5], 2432
        %v2229 = vld [vmem:[%s2228] sm:$0xff]
        %v2230 = vld [vmem:[%s2228 + $0x8] sm:$0xff]
        %v2231 = vld [vmem:[%s2228 + $0x10] sm:$0xff]
        %v2232 = vld [vmem:[%s2228 + $0x18] sm:$0xff]
        %v2233 = vmul.f32 %v2226, %v2229
        %v2234 = vmul.f32 %v2225, %v2230
        %v2235 = vmul.f32 %v2224, %v2231
        %v2236 = vmul.f32 %v2227, %v2232
        %v2237 = vadd.f32 %v2212, %v2233
        %v2238 = vadd.f32 %v2213, %v2234
        %v2239 = vadd.f32 %v2214, %v2235
        %v2240 = vadd.f32 %v2215, %v2236
        %2241 = vrot.lane.b32.xlu0 %v307, 74
        %v2242 = vpop.permute.xlu0 %2241
        %2243 = vrot.lane.b32.xlu0 %v308, 74
        %v2244 = vpop.permute.xlu0 %2243
        %2245 = vrot.lane.b32.xlu0 %v309, 74
        %v2246 = vpop.permute.xlu0 %2245
        %2247 = vrot.lane.b32.xlu0 %v310, 74
        %v2248 = vpop.permute.xlu0 %2247
        %2249 = vrot.lane.b32.xlu0 %v311, 74
        %v2250 = vpop.permute.xlu0 %2249
        %vm2251 = vcmp.lt.s32.totalorder %v329, 74
        %v2252 = vsel %vm2251, %v2248, %v2250
        %v2253 = vsel %vm2251, %v2246, %v2248
        %v2254 = vsel %vm2251, %v2244, %v2246
        %v2255 = vsel %vm2251, %v2242, %v2244
        %s2256 = scalar_lea.vmem [#allocation5], 2464
        %v2257 = vld [vmem:[%s2256] sm:$0xff]
        %v2258 = vld [vmem:[%s2256 + $0x8] sm:$0xff]
        %v2259 = vld [vmem:[%s2256 + $0x10] sm:$0xff]
        %v2260 = vld [vmem:[%s2256 + $0x18] sm:$0xff]
        %v2261 = vmul.f32 %v2255, %v2257
        %v2262 = vmul.f32 %v2254, %v2258
        %v2263 = vmul.f32 %v2253, %v2259
        %v2264 = vmul.f32 %v2252, %v2260
        %v2265 = vadd.f32 %v2237, %v2261
        %v2266 = vadd.f32 %v2238, %v2262
        %v2267 = vadd.f32 %v2239, %v2263
        %v2268 = vadd.f32 %v2240, %v2264
        %2269 = vrot.lane.b32.xlu0 %v2255, 127
        %v2270 = vpop.permute.xlu0 %2269
        %2271 = vrot.lane.b32.xlu0 %v2254, 127
        %v2272 = vpop.permute.xlu0 %2271
        %2273 = vrot.lane.b32.xlu0 %v2253, 127
        %v2274 = vpop.permute.xlu0 %2273
        %2275 = vrot.lane.b32.xlu0 %v2252, 127
        %v2276 = vpop.permute.xlu0 %2275
        %v2277 = vsel %vm330, %v2274, %v2276
        %v2278 = vsel %vm330, %v2272, %v2274
        %v2279 = vsel %vm330, %v2270, %v2272
        %v2280 = vsel %vm330, %v2276, %v2270
        %s2281 = scalar_lea.vmem [#allocation5], 2496
        %v2282 = vld [vmem:[%s2281] sm:$0xff]
        %v2283 = vld [vmem:[%s2281 + $0x8] sm:$0xff]
        %v2284 = vld [vmem:[%s2281 + $0x10] sm:$0xff]
        %v2285 = vld [vmem:[%s2281 + $0x18] sm:$0xff]
        %v2286 = vmul.f32 %v2279, %v2282
        %v2287 = vmul.f32 %v2278, %v2283
        %v2288 = vmul.f32 %v2277, %v2284
        %v2289 = vmul.f32 %v2280, %v2285
        %v2290 = vadd.f32 %v2265, %v2286
        %v2291 = vadd.f32 %v2266, %v2287
        %v2292 = vadd.f32 %v2267, %v2288
        %v2293 = vadd.f32 %v2268, %v2289
        %2294 = vrot.lane.b32.xlu0 %v2255, 126
        %v2295 = vpop.permute.xlu0 %2294
        %2296 = vrot.lane.b32.xlu0 %v2254, 126
        %v2297 = vpop.permute.xlu0 %2296
        %2298 = vrot.lane.b32.xlu0 %v2253, 126
        %v2299 = vpop.permute.xlu0 %2298
        %2300 = vrot.lane.b32.xlu0 %v2252, 126
        %v2301 = vpop.permute.xlu0 %2300
        %v2302 = vsel %vm356, %v2299, %v2301
        %v2303 = vsel %vm356, %v2297, %v2299
        %v2304 = vsel %vm356, %v2295, %v2297
        %v2305 = vsel %vm356, %v2301, %v2295
        %s2306 = scalar_lea.vmem [#allocation5], 2528
        %v2307 = vld [vmem:[%s2306] sm:$0xff]
        %v2308 = vld [vmem:[%s2306 + $0x8] sm:$0xff]
        %v2309 = vld [vmem:[%s2306 + $0x10] sm:$0xff]
        %v2310 = vld [vmem:[%s2306 + $0x18] sm:$0xff]
        %v2311 = vmul.f32 %v2304, %v2307
        %v2312 = vmul.f32 %v2303, %v2308
        %v2313 = vmul.f32 %v2302, %v2309
        %v2314 = vmul.f32 %v2305, %v2310
        %v2315 = vadd.f32 %v2290, %v2311
        %v2316 = vadd.f32 %v2291, %v2312
        %v2317 = vadd.f32 %v2292, %v2313
        %v2318 = vadd.f32 %v2293, %v2314
        %2319 = vrot.lane.b32.xlu0 %v2255, 125
        %v2320 = vpop.permute.xlu0 %2319
        %2321 = vrot.lane.b32.xlu0 %v2254, 125
        %v2322 = vpop.permute.xlu0 %2321
        %2323 = vrot.lane.b32.xlu0 %v2253, 125
        %v2324 = vpop.permute.xlu0 %2323
        %2325 = vrot.lane.b32.xlu0 %v2252, 125
        %v2326 = vpop.permute.xlu0 %2325
        %v2327 = vsel %vm382, %v2324, %v2326
        %v2328 = vsel %vm382, %v2322, %v2324
        %v2329 = vsel %vm382, %v2320, %v2322
        %v2330 = vsel %vm382, %v2326, %v2320
        %s2331 = scalar_lea.vmem [#allocation5], 2560
        %v2332 = vld [vmem:[%s2331] sm:$0xff]
        %v2333 = vld [vmem:[%s2331 + $0x8] sm:$0xff]
        %v2334 = vld [vmem:[%s2331 + $0x10] sm:$0xff]
        %v2335 = vld [vmem:[%s2331 + $0x18] sm:$0xff]
        %v2336 = vmul.f32 %v2329, %v2332
        %v2337 = vmul.f32 %v2328, %v2333
        %v2338 = vmul.f32 %v2327, %v2334
        %v2339 = vmul.f32 %v2330, %v2335
        %v2340 = vadd.f32 %v2315, %v2336
        %v2341 = vadd.f32 %v2316, %v2337
        %v2342 = vadd.f32 %v2317, %v2338
        %v2343 = vadd.f32 %v2318, %v2339
        %2344 = vrot.lane.b32.xlu0 %v2255, 124
        %v2345 = vpop.permute.xlu0 %2344
        %2346 = vrot.lane.b32.xlu0 %v2254, 124
        %v2347 = vpop.permute.xlu0 %2346
        %2348 = vrot.lane.b32.xlu0 %v2253, 124
        %v2349 = vpop.permute.xlu0 %2348
        %2350 = vrot.lane.b32.xlu0 %v2252, 124
        %v2351 = vpop.permute.xlu0 %2350
        %v2352 = vsel %vm408, %v2349, %v2351
        %v2353 = vsel %vm408, %v2347, %v2349
        %v2354 = vsel %vm408, %v2345, %v2347
        %v2355 = vsel %vm408, %v2351, %v2345
        %s2356 = scalar_lea.vmem [#allocation5], 2592
        %v2357 = vld [vmem:[%s2356] sm:$0xff]
        %v2358 = vld [vmem:[%s2356 + $0x8] sm:$0xff]
        %v2359 = vld [vmem:[%s2356 + $0x10] sm:$0xff]
        %v2360 = vld [vmem:[%s2356 + $0x18] sm:$0xff]
        %v2361 = vmul.f32 %v2354, %v2357
        %v2362 = vmul.f32 %v2353, %v2358
        %v2363 = vmul.f32 %v2352, %v2359
        %v2364 = vmul.f32 %v2355, %v2360
        %v2365 = vadd.f32 %v2340, %v2361
        %v2366 = vadd.f32 %v2341, %v2362
        %v2367 = vadd.f32 %v2342, %v2363
        %v2368 = vadd.f32 %v2343, %v2364
        %2369 = vrot.lane.b32.xlu0 %v2255, 123
        %v2370 = vpop.permute.xlu0 %2369
        %2371 = vrot.lane.b32.xlu0 %v2254, 123
        %v2372 = vpop.permute.xlu0 %2371
        %2373 = vrot.lane.b32.xlu0 %v2253, 123
        %v2374 = vpop.permute.xlu0 %2373
        %2375 = vrot.lane.b32.xlu0 %v2252, 123
        %v2376 = vpop.permute.xlu0 %2375
        %v2377 = vsel %vm434, %v2374, %v2376
        %v2378 = vsel %vm434, %v2372, %v2374
        %v2379 = vsel %vm434, %v2370, %v2372
        %v2380 = vsel %vm434, %v2376, %v2370
        %s2381 = scalar_lea.vmem [#allocation5], 2624
        %v2382 = vld [vmem:[%s2381] sm:$0xff]
        %v2383 = vld [vmem:[%s2381 + $0x8] sm:$0xff]
        %v2384 = vld [vmem:[%s2381 + $0x10] sm:$0xff]
        %v2385 = vld [vmem:[%s2381 + $0x18] sm:$0xff]
        %v2386 = vmul.f32 %v2379, %v2382
        %v2387 = vmul.f32 %v2378, %v2383
        %v2388 = vmul.f32 %v2377, %v2384
        %v2389 = vmul.f32 %v2380, %v2385
        %v2390 = vadd.f32 %v2365, %v2386
        %v2391 = vadd.f32 %v2366, %v2387
        %v2392 = vadd.f32 %v2367, %v2388
        %v2393 = vadd.f32 %v2368, %v2389
        %2394 = vrot.lane.b32.xlu0 %v2255, 122
        %v2395 = vpop.permute.xlu0 %2394
        %2396 = vrot.lane.b32.xlu0 %v2254, 122
        %v2397 = vpop.permute.xlu0 %2396
        %2398 = vrot.lane.b32.xlu0 %v2253, 122
        %v2399 = vpop.permute.xlu0 %2398
        %2400 = vrot.lane.b32.xlu0 %v2252, 122
        %v2401 = vpop.permute.xlu0 %2400
        %v2402 = vsel %vm460, %v2399, %v2401
        %v2403 = vsel %vm460, %v2397, %v2399
        %v2404 = vsel %vm460, %v2395, %v2397
        %v2405 = vsel %vm460, %v2401, %v2395
        %s2406 = scalar_lea.vmem [#allocation5], 2656
        %v2407 = vld [vmem:[%s2406] sm:$0xff]
        %v2408 = vld [vmem:[%s2406 + $0x8] sm:$0xff]
        %v2409 = vld [vmem:[%s2406 + $0x10] sm:$0xff]
        %v2410 = vld [vmem:[%s2406 + $0x18] sm:$0xff]
        %v2411 = vmul.f32 %v2404, %v2407
        %v2412 = vmul.f32 %v2403, %v2408
        %v2413 = vmul.f32 %v2402, %v2409
        %v2414 = vmul.f32 %v2405, %v2410
        %v2415 = vadd.f32 %v2390, %v2411
        %v2416 = vadd.f32 %v2391, %v2412
        %v2417 = vadd.f32 %v2392, %v2413
        %v2418 = vadd.f32 %v2393, %v2414
        %2419 = vrot.lane.b32.xlu0 %v2255, 121
        %v2420 = vpop.permute.xlu0 %2419
        %2421 = vrot.lane.b32.xlu0 %v2254, 121
        %v2422 = vpop.permute.xlu0 %2421
        %2423 = vrot.lane.b32.xlu0 %v2253, 121
        %v2424 = vpop.permute.xlu0 %2423
        %2425 = vrot.lane.b32.xlu0 %v2252, 121
        %v2426 = vpop.permute.xlu0 %2425
        %v2427 = vsel %vm486, %v2424, %v2426
        %v2428 = vsel %vm486, %v2422, %v2424
        %v2429 = vsel %vm486, %v2420, %v2422
        %v2430 = vsel %vm486, %v2426, %v2420
        %s2431 = scalar_lea.vmem [#allocation5], 2688
        %v2432 = vld [vmem:[%s2431] sm:$0xff]
        %v2433 = vld [vmem:[%s2431 + $0x8] sm:$0xff]
        %v2434 = vld [vmem:[%s2431 + $0x10] sm:$0xff]
        %v2435 = vld [vmem:[%s2431 + $0x18] sm:$0xff]
        %v2436 = vmul.f32 %v2429, %v2432
        %v2437 = vmul.f32 %v2428, %v2433
        %v2438 = vmul.f32 %v2427, %v2434
        %v2439 = vmul.f32 %v2430, %v2435
        %v2440 = vadd.f32 %v2415, %v2436
        %v2441 = vadd.f32 %v2416, %v2437
        %v2442 = vadd.f32 %v2417, %v2438
        %v2443 = vadd.f32 %v2418, %v2439
        %2444 = vrot.lane.b32.xlu0 %v2255, 120
        %v2445 = vpop.permute.xlu0 %2444
        %2446 = vrot.lane.b32.xlu0 %v2254, 120
        %v2447 = vpop.permute.xlu0 %2446
        %2448 = vrot.lane.b32.xlu0 %v2253, 120
        %v2449 = vpop.permute.xlu0 %2448
        %2450 = vrot.lane.b32.xlu0 %v2252, 120
        %v2451 = vpop.permute.xlu0 %2450
        %v2452 = vsel %vm512, %v2449, %v2451
        %v2453 = vsel %vm512, %v2447, %v2449
        %v2454 = vsel %vm512, %v2445, %v2447
        %v2455 = vsel %vm512, %v2451, %v2445
        %s2456 = scalar_lea.vmem [#allocation5], 2720
        %v2457 = vld [vmem:[%s2456] sm:$0xff]
        %v2458 = vld [vmem:[%s2456 + $0x8] sm:$0xff]
        %v2459 = vld [vmem:[%s2456 + $0x10] sm:$0xff]
        %v2460 = vld [vmem:[%s2456 + $0x18] sm:$0xff]
        %v2461 = vmul.f32 %v2454, %v2457
        %v2462 = vmul.f32 %v2453, %v2458
        %v2463 = vmul.f32 %v2452, %v2459
        %v2464 = vmul.f32 %v2455, %v2460
        %v2465 = vadd.f32 %v2440, %v2461
        %v2466 = vadd.f32 %v2441, %v2462
        %v2467 = vadd.f32 %v2442, %v2463
        %v2468 = vadd.f32 %v2443, %v2464
        %2469 = vrot.lane.b32.xlu0 %v2255, 119
        %v2470 = vpop.permute.xlu0 %2469
        %2471 = vrot.lane.b32.xlu0 %v2254, 119
        %v2472 = vpop.permute.xlu0 %2471
        %2473 = vrot.lane.b32.xlu0 %v2253, 119
        %v2474 = vpop.permute.xlu0 %2473
        %2475 = vrot.lane.b32.xlu0 %v2252, 119
        %v2476 = vpop.permute.xlu0 %2475
        %v2477 = vsel %vm538, %v2474, %v2476
        %v2478 = vsel %vm538, %v2472, %v2474
        %v2479 = vsel %vm538, %v2470, %v2472
        %v2480 = vsel %vm538, %v2476, %v2470
        %s2481 = scalar_lea.vmem [#allocation5], 2752
        %v2482 = vld [vmem:[%s2481] sm:$0xff]
        %v2483 = vld [vmem:[%s2481 + $0x8] sm:$0xff]
        %v2484 = vld [vmem:[%s2481 + $0x10] sm:$0xff]
        %v2485 = vld [vmem:[%s2481 + $0x18] sm:$0xff]
        %v2486 = vmul.f32 %v2479, %v2482
        %v2487 = vmul.f32 %v2478, %v2483
        %v2488 = vmul.f32 %v2477, %v2484
        %v2489 = vmul.f32 %v2480, %v2485
        %v2490 = vadd.f32 %v2465, %v2486
        %v2491 = vadd.f32 %v2466, %v2487
        %v2492 = vadd.f32 %v2467, %v2488
        %v2493 = vadd.f32 %v2468, %v2489
        %2494 = vrot.lane.b32.xlu0 %v2255, 118
        %v2495 = vpop.permute.xlu0 %2494
        %2496 = vrot.lane.b32.xlu0 %v2254, 118
        %v2497 = vpop.permute.xlu0 %2496
        %2498 = vrot.lane.b32.xlu0 %v2253, 118
        %v2499 = vpop.permute.xlu0 %2498
        %2500 = vrot.lane.b32.xlu0 %v2252, 118
        %v2501 = vpop.permute.xlu0 %2500
        %v2502 = vsel %vm564, %v2499, %v2501
        %v2503 = vsel %vm564, %v2497, %v2499
        %v2504 = vsel %vm564, %v2495, %v2497
        %v2505 = vsel %vm564, %v2501, %v2495
        %s2506 = scalar_lea.vmem [#allocation5], 2784
        %v2507 = vld [vmem:[%s2506] sm:$0xff]
        %v2508 = vld [vmem:[%s2506 + $0x8] sm:$0xff]
        %v2509 = vld [vmem:[%s2506 + $0x10] sm:$0xff]
        %v2510 = vld [vmem:[%s2506 + $0x18] sm:$0xff]
        %v2511 = vmul.f32 %v2504, %v2507
        %v2512 = vmul.f32 %v2503, %v2508
        %v2513 = vmul.f32 %v2502, %v2509
        %v2514 = vmul.f32 %v2505, %v2510
        %v2515 = vadd.f32 %v2490, %v2511
        %v2516 = vadd.f32 %v2491, %v2512
        %v2517 = vadd.f32 %v2492, %v2513
        %v2518 = vadd.f32 %v2493, %v2514
        %2519 = vrot.lane.b32.xlu0 %v307, 48
        %v2520 = vpop.permute.xlu0 %2519
        %2521 = vrot.lane.b32.xlu0 %v308, 48
        %v2522 = vpop.permute.xlu0 %2521
        %2523 = vrot.lane.b32.xlu0 %v309, 48
        %v2524 = vpop.permute.xlu0 %2523
        %2525 = vrot.lane.b32.xlu0 %v310, 48
        %v2526 = vpop.permute.xlu0 %2525
        %2527 = vrot.lane.b32.xlu0 %v311, 48
        %v2528 = vpop.permute.xlu0 %2527
        %vm2529 = vcmp.lt.s32.totalorder %v329, 48
        %v2530 = vsel %vm2529, %v2526, %v2528
        %v2531 = vsel %vm2529, %v2524, %v2526
        %v2532 = vsel %vm2529, %v2522, %v2524
        %v2533 = vsel %vm2529, %v2520, %v2522
        %s2534 = scalar_lea.vmem [#allocation5], 2816
        %v2535 = vld [vmem:[%s2534] sm:$0xff]
        %v2536 = vld [vmem:[%s2534 + $0x8] sm:$0xff]
        %v2537 = vld [vmem:[%s2534 + $0x10] sm:$0xff]
        %v2538 = vld [vmem:[%s2534 + $0x18] sm:$0xff]
        %v2539 = vmul.f32 %v2533, %v2535
        %v2540 = vmul.f32 %v2532, %v2536
        %v2541 = vmul.f32 %v2531, %v2537
        %v2542 = vmul.f32 %v2530, %v2538
        %v2543 = vadd.f32 %v2515, %v2539
        %v2544 = vadd.f32 %v2516, %v2540
        %v2545 = vadd.f32 %v2517, %v2541
        %v2546 = vadd.f32 %v2518, %v2542
        %2547 = vrot.lane.b32.xlu0 %v2533, 127
        %v2548 = vpop.permute.xlu0 %2547
        %2549 = vrot.lane.b32.xlu0 %v2532, 127
        %v2550 = vpop.permute.xlu0 %2549
        %2551 = vrot.lane.b32.xlu0 %v2531, 127
        %v2552 = vpop.permute.xlu0 %2551
        %2553 = vrot.lane.b32.xlu0 %v2530, 127
        %v2554 = vpop.permute.xlu0 %2553
        %v2555 = vsel %vm330, %v2552, %v2554
        %v2556 = vsel %vm330, %v2550, %v2552
        %v2557 = vsel %vm330, %v2548, %v2550
        %v2558 = vsel %vm330, %v2554, %v2548
        %s2559 = scalar_lea.vmem [#allocation5], 2848
        %v2560 = vld [vmem:[%s2559] sm:$0xff]
        %v2561 = vld [vmem:[%s2559 + $0x8] sm:$0xff]
        %v2562 = vld [vmem:[%s2559 + $0x10] sm:$0xff]
        %v2563 = vld [vmem:[%s2559 + $0x18] sm:$0xff]
        %v2564 = vmul.f32 %v2557, %v2560
        %v2565 = vmul.f32 %v2556, %v2561
        %v2566 = vmul.f32 %v2555, %v2562
        %v2567 = vmul.f32 %v2558, %v2563
        %v2568 = vadd.f32 %v2543, %v2564
        %v2569 = vadd.f32 %v2544, %v2565
        %v2570 = vadd.f32 %v2545, %v2566
        %v2571 = vadd.f32 %v2546, %v2567
        %2572 = vrot.lane.b32.xlu0 %v2533, 126
        %v2573 = vpop.permute.xlu0 %2572
        %2574 = vrot.lane.b32.xlu0 %v2532, 126
        %v2575 = vpop.permute.xlu0 %2574
        %2576 = vrot.lane.b32.xlu0 %v2531, 126
        %v2577 = vpop.permute.xlu0 %2576
        %2578 = vrot.lane.b32.xlu0 %v2530, 126
        %v2579 = vpop.permute.xlu0 %2578
        %v2580 = vsel %vm356, %v2577, %v2579
        %v2581 = vsel %vm356, %v2575, %v2577
        %v2582 = vsel %vm356, %v2573, %v2575
        %v2583 = vsel %vm356, %v2579, %v2573
        %s2584 = scalar_lea.vmem [#allocation5], 2880
        %v2585 = vld [vmem:[%s2584] sm:$0xff]
        %v2586 = vld [vmem:[%s2584 + $0x8] sm:$0xff]
        %v2587 = vld [vmem:[%s2584 + $0x10] sm:$0xff]
        %v2588 = vld [vmem:[%s2584 + $0x18] sm:$0xff]
        %v2589 = vmul.f32 %v2582, %v2585
        %v2590 = vmul.f32 %v2581, %v2586
        %v2591 = vmul.f32 %v2580, %v2587
        %v2592 = vmul.f32 %v2583, %v2588
        %v2593 = vadd.f32 %v2568, %v2589
        %v2594 = vadd.f32 %v2569, %v2590
        %v2595 = vadd.f32 %v2570, %v2591
        %v2596 = vadd.f32 %v2571, %v2592
        %2597 = vrot.lane.b32.xlu0 %v2533, 125
        %v2598 = vpop.permute.xlu0 %2597
        %2599 = vrot.lane.b32.xlu0 %v2532, 125
        %v2600 = vpop.permute.xlu0 %2599
        %2601 = vrot.lane.b32.xlu0 %v2531, 125
        %v2602 = vpop.permute.xlu0 %2601
        %2603 = vrot.lane.b32.xlu0 %v2530, 125
        %v2604 = vpop.permute.xlu0 %2603
        %v2605 = vsel %vm382, %v2602, %v2604
        %v2606 = vsel %vm382, %v2600, %v2602
        %v2607 = vsel %vm382, %v2598, %v2600
        %v2608 = vsel %vm382, %v2604, %v2598
        %s2609 = scalar_lea.vmem [#allocation5], 2912
        %v2610 = vld [vmem:[%s2609] sm:$0xff]
        %v2611 = vld [vmem:[%s2609 + $0x8] sm:$0xff]
        %v2612 = vld [vmem:[%s2609 + $0x10] sm:$0xff]
        %v2613 = vld [vmem:[%s2609 + $0x18] sm:$0xff]
        %v2614 = vmul.f32 %v2607, %v2610
        %v2615 = vmul.f32 %v2606, %v2611
        %v2616 = vmul.f32 %v2605, %v2612
        %v2617 = vmul.f32 %v2608, %v2613
        %v2618 = vadd.f32 %v2593, %v2614
        %v2619 = vadd.f32 %v2594, %v2615
        %v2620 = vadd.f32 %v2595, %v2616
        %v2621 = vadd.f32 %v2596, %v2617
        %2622 = vrot.lane.b32.xlu0 %v2533, 124
        %v2623 = vpop.permute.xlu0 %2622
        %2624 = vrot.lane.b32.xlu0 %v2532, 124
        %v2625 = vpop.permute.xlu0 %2624
        %2626 = vrot.lane.b32.xlu0 %v2531, 124
        %v2627 = vpop.permute.xlu0 %2626
        %2628 = vrot.lane.b32.xlu0 %v2530, 124
        %v2629 = vpop.permute.xlu0 %2628
        %v2630 = vsel %vm408, %v2627, %v2629
        %v2631 = vsel %vm408, %v2625, %v2627
        %v2632 = vsel %vm408, %v2623, %v2625
        %v2633 = vsel %vm408, %v2629, %v2623
        %s2634 = scalar_lea.vmem [#allocation5], 2944
        %v2635 = vld [vmem:[%s2634] sm:$0xff]
        %v2636 = vld [vmem:[%s2634 + $0x8] sm:$0xff]
        %v2637 = vld [vmem:[%s2634 + $0x10] sm:$0xff]
        %v2638 = vld [vmem:[%s2634 + $0x18] sm:$0xff]
        %v2639 = vmul.f32 %v2632, %v2635
        %v2640 = vmul.f32 %v2631, %v2636
        %v2641 = vmul.f32 %v2630, %v2637
        %v2642 = vmul.f32 %v2633, %v2638
        %v2643 = vadd.f32 %v2618, %v2639
        %v2644 = vadd.f32 %v2619, %v2640
        %v2645 = vadd.f32 %v2620, %v2641
        %v2646 = vadd.f32 %v2621, %v2642
        %2647 = vrot.lane.b32.xlu0 %v2533, 123
        %v2648 = vpop.permute.xlu0 %2647
        %2649 = vrot.lane.b32.xlu0 %v2532, 123
        %v2650 = vpop.permute.xlu0 %2649
        %2651 = vrot.lane.b32.xlu0 %v2531, 123
        %v2652 = vpop.permute.xlu0 %2651
        %2653 = vrot.lane.b32.xlu0 %v2530, 123
        %v2654 = vpop.permute.xlu0 %2653
        %v2655 = vsel %vm434, %v2652, %v2654
        %v2656 = vsel %vm434, %v2650, %v2652
        %v2657 = vsel %vm434, %v2648, %v2650
        %v2658 = vsel %vm434, %v2654, %v2648
        %s2659 = scalar_lea.vmem [#allocation5], 2976
        %v2660 = vld [vmem:[%s2659] sm:$0xff]
        %v2661 = vld [vmem:[%s2659 + $0x8] sm:$0xff]
        %v2662 = vld [vmem:[%s2659 + $0x10] sm:$0xff]
        %v2663 = vld [vmem:[%s2659 + $0x18] sm:$0xff]
        %v2664 = vmul.f32 %v2657, %v2660
        %v2665 = vmul.f32 %v2656, %v2661
        %v2666 = vmul.f32 %v2655, %v2662
        %v2667 = vmul.f32 %v2658, %v2663
        %v2668 = vadd.f32 %v2643, %v2664
        %v2669 = vadd.f32 %v2644, %v2665
        %v2670 = vadd.f32 %v2645, %v2666
        %v2671 = vadd.f32 %v2646, %v2667
        %2672 = vrot.lane.b32.xlu0 %v2533, 122
        %v2673 = vpop.permute.xlu0 %2672
        %2674 = vrot.lane.b32.xlu0 %v2532, 122
        %v2675 = vpop.permute.xlu0 %2674
        %2676 = vrot.lane.b32.xlu0 %v2531, 122
        %v2677 = vpop.permute.xlu0 %2676
        %2678 = vrot.lane.b32.xlu0 %v2530, 122
        %v2679 = vpop.permute.xlu0 %2678
        %v2680 = vsel %vm460, %v2677, %v2679
        %v2681 = vsel %vm460, %v2675, %v2677
        %v2682 = vsel %vm460, %v2673, %v2675
        %v2683 = vsel %vm460, %v2679, %v2673
        %s2684 = scalar_lea.vmem [#allocation5], 3008
        %v2685 = vld [vmem:[%s2684] sm:$0xff]
        %v2686 = vld [vmem:[%s2684 + $0x8] sm:$0xff]
        %v2687 = vld [vmem:[%s2684 + $0x10] sm:$0xff]
        %v2688 = vld [vmem:[%s2684 + $0x18] sm:$0xff]
        %v2689 = vmul.f32 %v2682, %v2685
        %v2690 = vmul.f32 %v2681, %v2686
        %v2691 = vmul.f32 %v2680, %v2687
        %v2692 = vmul.f32 %v2683, %v2688
        %v2693 = vadd.f32 %v2668, %v2689
        %v2694 = vadd.f32 %v2669, %v2690
        %v2695 = vadd.f32 %v2670, %v2691
        %v2696 = vadd.f32 %v2671, %v2692
        %2697 = vrot.lane.b32.xlu0 %v2533, 121
        %v2698 = vpop.permute.xlu0 %2697
        %2699 = vrot.lane.b32.xlu0 %v2532, 121
        %v2700 = vpop.permute.xlu0 %2699
        %2701 = vrot.lane.b32.xlu0 %v2531, 121
        %v2702 = vpop.permute.xlu0 %2701
        %2703 = vrot.lane.b32.xlu0 %v2530, 121
        %v2704 = vpop.permute.xlu0 %2703
        %v2705 = vsel %vm486, %v2702, %v2704
        %v2706 = vsel %vm486, %v2700, %v2702
        %v2707 = vsel %vm486, %v2698, %v2700
        %v2708 = vsel %vm486, %v2704, %v2698
        %s2709 = scalar_lea.vmem [#allocation5], 3040
        %v2710 = vld [vmem:[%s2709] sm:$0xff]
        %v2711 = vld [vmem:[%s2709 + $0x8] sm:$0xff]
        %v2712 = vld [vmem:[%s2709 + $0x10] sm:$0xff]
        %v2713 = vld [vmem:[%s2709 + $0x18] sm:$0xff]
        %v2714 = vmul.f32 %v2707, %v2710
        %v2715 = vmul.f32 %v2706, %v2711
        %v2716 = vmul.f32 %v2705, %v2712
        %v2717 = vmul.f32 %v2708, %v2713
        %v2718 = vadd.f32 %v2693, %v2714
        %v2719 = vadd.f32 %v2694, %v2715
        %v2720 = vadd.f32 %v2695, %v2716
        %v2721 = vadd.f32 %v2696, %v2717
        %2722 = vrot.lane.b32.xlu0 %v2533, 120
        %v2723 = vpop.permute.xlu0 %2722
        %2724 = vrot.lane.b32.xlu0 %v2532, 120
        %v2725 = vpop.permute.xlu0 %2724
        %2726 = vrot.lane.b32.xlu0 %v2531, 120
        %v2727 = vpop.permute.xlu0 %2726
        %2728 = vrot.lane.b32.xlu0 %v2530, 120
        %v2729 = vpop.permute.xlu0 %2728
        %v2730 = vsel %vm512, %v2727, %v2729
        %v2731 = vsel %vm512, %v2725, %v2727
        %v2732 = vsel %vm512, %v2723, %v2725
        %v2733 = vsel %vm512, %v2729, %v2723
        %s2734 = scalar_lea.vmem [#allocation5], 3072
        %v2735 = vld [vmem:[%s2734] sm:$0xff]
        %v2736 = vld [vmem:[%s2734 + $0x8] sm:$0xff]
        %v2737 = vld [vmem:[%s2734 + $0x10] sm:$0xff]
        %v2738 = vld [vmem:[%s2734 + $0x18] sm:$0xff]
        %v2739 = vmul.f32 %v2732, %v2735
        %v2740 = vmul.f32 %v2731, %v2736
        %v2741 = vmul.f32 %v2730, %v2737
        %v2742 = vmul.f32 %v2733, %v2738
        %v2743 = vadd.f32 %v2718, %v2739
        %v2744 = vadd.f32 %v2719, %v2740
        %v2745 = vadd.f32 %v2720, %v2741
        %v2746 = vadd.f32 %v2721, %v2742
        %2747 = vrot.lane.b32.xlu0 %v2533, 119
        %v2748 = vpop.permute.xlu0 %2747
        %2749 = vrot.lane.b32.xlu0 %v2532, 119
        %v2750 = vpop.permute.xlu0 %2749
        %2751 = vrot.lane.b32.xlu0 %v2531, 119
        %v2752 = vpop.permute.xlu0 %2751
        %2753 = vrot.lane.b32.xlu0 %v2530, 119
        %v2754 = vpop.permute.xlu0 %2753
        %v2755 = vsel %vm538, %v2752, %v2754
        %v2756 = vsel %vm538, %v2750, %v2752
        %v2757 = vsel %vm538, %v2748, %v2750
        %v2758 = vsel %vm538, %v2754, %v2748
        %s2759 = scalar_lea.vmem [#allocation5], 3104
        %v2760 = vld [vmem:[%s2759] sm:$0xff]
        %v2761 = vld [vmem:[%s2759 + $0x8] sm:$0xff]
        %v2762 = vld [vmem:[%s2759 + $0x10] sm:$0xff]
        %v2763 = vld [vmem:[%s2759 + $0x18] sm:$0xff]
        %v2764 = vmul.f32 %v2757, %v2760
        %v2765 = vmul.f32 %v2756, %v2761
        %v2766 = vmul.f32 %v2755, %v2762
        %v2767 = vmul.f32 %v2758, %v2763
        %v2768 = vadd.f32 %v2743, %v2764
        %v2769 = vadd.f32 %v2744, %v2765
        %v2770 = vadd.f32 %v2745, %v2766
        %v2771 = vadd.f32 %v2746, %v2767
        %2772 = vrot.lane.b32.xlu0 %v2533, 118
        %v2773 = vpop.permute.xlu0 %2772
        %2774 = vrot.lane.b32.xlu0 %v2532, 118
        %v2775 = vpop.permute.xlu0 %2774
        %2776 = vrot.lane.b32.xlu0 %v2531, 118
        %v2777 = vpop.permute.xlu0 %2776
        %2778 = vrot.lane.b32.xlu0 %v2530, 118
        %v2779 = vpop.permute.xlu0 %2778
        %v2780 = vsel %vm564, %v2777, %v2779
        %v2781 = vsel %vm564, %v2775, %v2777
        %v2782 = vsel %vm564, %v2773, %v2775
        %v2783 = vsel %vm564, %v2779, %v2773
        %s2784 = scalar_lea.vmem [#allocation5], 3136
        %v2785 = vld [vmem:[%s2784] sm:$0xff]
        %v2786 = vld [vmem:[%s2784 + $0x8] sm:$0xff]
        %v2787 = vld [vmem:[%s2784 + $0x10] sm:$0xff]
        %v2788 = vld [vmem:[%s2784 + $0x18] sm:$0xff]
        %v2789 = vmul.f32 %v2782, %v2785
        %v2790 = vmul.f32 %v2781, %v2786
        %v2791 = vmul.f32 %v2780, %v2787
        %v2792 = vmul.f32 %v2783, %v2788
        %v2793 = vadd.f32 %v2768, %v2789
        %v2794 = vadd.f32 %v2769, %v2790
        %v2795 = vadd.f32 %v2770, %v2791
        %v2796 = vadd.f32 %v2771, %v2792
        %2797 = vrot.lane.b32.xlu0 %v307, 22
        %v2798 = vpop.permute.xlu0 %2797
        %2799 = vrot.lane.b32.xlu0 %v308, 22
        %v2800 = vpop.permute.xlu0 %2799
        %2801 = vrot.lane.b32.xlu0 %v309, 22
        %v2802 = vpop.permute.xlu0 %2801
        %2803 = vrot.lane.b32.xlu0 %v310, 22
        %v2804 = vpop.permute.xlu0 %2803
        %2805 = vrot.lane.b32.xlu0 %v311, 22
        %v2806 = vpop.permute.xlu0 %2805
        %vm2807 = vcmp.lt.s32.totalorder %v329, 22
        %v2808 = vsel %vm2807, %v2804, %v2806
        %v2809 = vsel %vm2807, %v2802, %v2804
        %v2810 = vsel %vm2807, %v2800, %v2802
        %v2811 = vsel %vm2807, %v2798, %v2800
        %s2812 = scalar_lea.vmem [#allocation5], 3168
        %v2813 = vld [vmem:[%s2812] sm:$0xff]
        %v2814 = vld [vmem:[%s2812 + $0x8] sm:$0xff]
        %v2815 = vld [vmem:[%s2812 + $0x10] sm:$0xff]
        %v2816 = vld [vmem:[%s2812 + $0x18] sm:$0xff]
        %v2817 = vmul.f32 %v2811, %v2813
        %v2818 = vmul.f32 %v2810, %v2814
        %v2819 = vmul.f32 %v2809, %v2815
        %v2820 = vmul.f32 %v2808, %v2816
        %v2821 = vadd.f32 %v2793, %v2817
        %v2822 = vadd.f32 %v2794, %v2818
        %v2823 = vadd.f32 %v2795, %v2819
        %v2824 = vadd.f32 %v2796, %v2820
        %2825 = vrot.lane.b32.xlu0 %v2811, 127
        %v2826 = vpop.permute.xlu0 %2825
        %2827 = vrot.lane.b32.xlu0 %v2810, 127
        %v2828 = vpop.permute.xlu0 %2827
        %2829 = vrot.lane.b32.xlu0 %v2809, 127
        %v2830 = vpop.permute.xlu0 %2829
        %2831 = vrot.lane.b32.xlu0 %v2808, 127
        %v2832 = vpop.permute.xlu0 %2831
        %v2833 = vsel %vm330, %v2830, %v2832
        %v2834 = vsel %vm330, %v2828, %v2830
        %v2835 = vsel %vm330, %v2826, %v2828
        %v2836 = vsel %vm330, %v2832, %v2826
        %s2837 = scalar_lea.vmem [#allocation5], 3200
        %v2838 = vld [vmem:[%s2837] sm:$0xff]
        %v2839 = vld [vmem:[%s2837 + $0x8] sm:$0xff]
        %v2840 = vld [vmem:[%s2837 + $0x10] sm:$0xff]
        %v2841 = vld [vmem:[%s2837 + $0x18] sm:$0xff]
        %v2842 = vmul.f32 %v2835, %v2838
        %v2843 = vmul.f32 %v2834, %v2839
        %v2844 = vmul.f32 %v2833, %v2840
        %v2845 = vmul.f32 %v2836, %v2841
        %v2846 = vadd.f32 %v2821, %v2842
        %v2847 = vadd.f32 %v2822, %v2843
        %v2848 = vadd.f32 %v2823, %v2844
        %v2849 = vadd.f32 %v2824, %v2845
        %2850 = vrot.lane.b32.xlu0 %v2811, 126
        %v2851 = vpop.permute.xlu0 %2850
        %2852 = vrot.lane.b32.xlu0 %v2810, 126
        %v2853 = vpop.permute.xlu0 %2852
        %2854 = vrot.lane.b32.xlu0 %v2809, 126
        %v2855 = vpop.permute.xlu0 %2854
        %2856 = vrot.lane.b32.xlu0 %v2808, 126
        %v2857 = vpop.permute.xlu0 %2856
        %v2858 = vsel %vm356, %v2855, %v2857
        %v2859 = vsel %vm356, %v2853, %v2855
        %v2860 = vsel %vm356, %v2851, %v2853
        %v2861 = vsel %vm356, %v2857, %v2851
        %s2862 = scalar_lea.vmem [#allocation5], 3232
        %v2863 = vld [vmem:[%s2862] sm:$0xff]
        %v2864 = vld [vmem:[%s2862 + $0x8] sm:$0xff]
        %v2865 = vld [vmem:[%s2862 + $0x10] sm:$0xff]
        %v2866 = vld [vmem:[%s2862 + $0x18] sm:$0xff]
        %v2867 = vmul.f32 %v2860, %v2863
        %v2868 = vmul.f32 %v2859, %v2864
        %v2869 = vmul.f32 %v2858, %v2865
        %v2870 = vmul.f32 %v2861, %v2866
        %v2871 = vadd.f32 %v2846, %v2867
        %v2872 = vadd.f32 %v2847, %v2868
        %v2873 = vadd.f32 %v2848, %v2869
        %v2874 = vadd.f32 %v2849, %v2870
        %2875 = vrot.lane.b32.xlu0 %v2811, 125
        %v2876 = vpop.permute.xlu0 %2875
        %2877 = vrot.lane.b32.xlu0 %v2810, 125
        %v2878 = vpop.permute.xlu0 %2877
        %2879 = vrot.lane.b32.xlu0 %v2809, 125
        %v2880 = vpop.permute.xlu0 %2879
        %2881 = vrot.lane.b32.xlu0 %v2808, 125
        %v2882 = vpop.permute.xlu0 %2881
        %v2883 = vsel %vm382, %v2880, %v2882
        %v2884 = vsel %vm382, %v2878, %v2880
        %v2885 = vsel %vm382, %v2876, %v2878
        %v2886 = vsel %vm382, %v2882, %v2876
        %s2887 = scalar_lea.vmem [#allocation5], 3264
        %v2888 = vld [vmem:[%s2887] sm:$0xff]
        %v2889 = vld [vmem:[%s2887 + $0x8] sm:$0xff]
        %v2890 = vld [vmem:[%s2887 + $0x10] sm:$0xff]
        %v2891 = vld [vmem:[%s2887 + $0x18] sm:$0xff]
        %v2892 = vmul.f32 %v2885, %v2888
        %v2893 = vmul.f32 %v2884, %v2889
        %v2894 = vmul.f32 %v2883, %v2890
        %v2895 = vmul.f32 %v2886, %v2891
        %v2896 = vadd.f32 %v2871, %v2892
        %v2897 = vadd.f32 %v2872, %v2893
        %v2898 = vadd.f32 %v2873, %v2894
        %v2899 = vadd.f32 %v2874, %v2895
        %2900 = vrot.lane.b32.xlu0 %v2811, 124
        %v2901 = vpop.permute.xlu0 %2900
        %2902 = vrot.lane.b32.xlu0 %v2810, 124
        %v2903 = vpop.permute.xlu0 %2902
        %2904 = vrot.lane.b32.xlu0 %v2809, 124
        %v2905 = vpop.permute.xlu0 %2904
        %2906 = vrot.lane.b32.xlu0 %v2808, 124
        %v2907 = vpop.permute.xlu0 %2906
        %v2908 = vsel %vm408, %v2905, %v2907
        %v2909 = vsel %vm408, %v2903, %v2905
        %v2910 = vsel %vm408, %v2901, %v2903
        %v2911 = vsel %vm408, %v2907, %v2901
        %s2912 = scalar_lea.vmem [#allocation5], 3296
        %v2913 = vld [vmem:[%s2912] sm:$0xff]
        %v2914 = vld [vmem:[%s2912 + $0x8] sm:$0xff]
        %v2915 = vld [vmem:[%s2912 + $0x10] sm:$0xff]
        %v2916 = vld [vmem:[%s2912 + $0x18] sm:$0xff]
        %v2917 = vmul.f32 %v2910, %v2913
        %v2918 = vmul.f32 %v2909, %v2914
        %v2919 = vmul.f32 %v2908, %v2915
        %v2920 = vmul.f32 %v2911, %v2916
        %v2921 = vadd.f32 %v2896, %v2917
        %v2922 = vadd.f32 %v2897, %v2918
        %v2923 = vadd.f32 %v2898, %v2919
        %v2924 = vadd.f32 %v2899, %v2920
        %2925 = vrot.lane.b32.xlu0 %v2811, 123
        %v2926 = vpop.permute.xlu0 %2925
        %2927 = vrot.lane.b32.xlu0 %v2810, 123
        %v2928 = vpop.permute.xlu0 %2927
        %2929 = vrot.lane.b32.xlu0 %v2809, 123
        %v2930 = vpop.permute.xlu0 %2929
        %2931 = vrot.lane.b32.xlu0 %v2808, 123
        %v2932 = vpop.permute.xlu0 %2931
        %v2933 = vsel %vm434, %v2930, %v2932
        %v2934 = vsel %vm434, %v2928, %v2930
        %v2935 = vsel %vm434, %v2926, %v2928
        %v2936 = vsel %vm434, %v2932, %v2926
        %s2937 = scalar_lea.vmem [#allocation5], 3328
        %v2938 = vld [vmem:[%s2937] sm:$0xff]
        %v2939 = vld [vmem:[%s2937 + $0x8] sm:$0xff]
        %v2940 = vld [vmem:[%s2937 + $0x10] sm:$0xff]
        %v2941 = vld [vmem:[%s2937 + $0x18] sm:$0xff]
        %v2942 = vmul.f32 %v2935, %v2938
        %v2943 = vmul.f32 %v2934, %v2939
        %v2944 = vmul.f32 %v2933, %v2940
        %v2945 = vmul.f32 %v2936, %v2941
        %v2946 = vadd.f32 %v2921, %v2942
        %v2947 = vadd.f32 %v2922, %v2943
        %v2948 = vadd.f32 %v2923, %v2944
        %v2949 = vadd.f32 %v2924, %v2945
        %2950 = vrot.lane.b32.xlu0 %v2811, 122
        %v2951 = vpop.permute.xlu0 %2950
        %2952 = vrot.lane.b32.xlu0 %v2810, 122
        %v2953 = vpop.permute.xlu0 %2952
        %2954 = vrot.lane.b32.xlu0 %v2809, 122
        %v2955 = vpop.permute.xlu0 %2954
        %2956 = vrot.lane.b32.xlu0 %v2808, 122
        %v2957 = vpop.permute.xlu0 %2956
        %v2958 = vsel %vm460, %v2955, %v2957
        %v2959 = vsel %vm460, %v2953, %v2955
        %v2960 = vsel %vm460, %v2951, %v2953
        %v2961 = vsel %vm460, %v2957, %v2951
        %s2962 = scalar_lea.vmem [#allocation5], 3360
        %v2963 = vld [vmem:[%s2962] sm:$0xff]
        %v2964 = vld [vmem:[%s2962 + $0x8] sm:$0xff]
        %v2965 = vld [vmem:[%s2962 + $0x10] sm:$0xff]
        %v2966 = vld [vmem:[%s2962 + $0x18] sm:$0xff]
        %v2967 = vmul.f32 %v2960, %v2963
        %v2968 = vmul.f32 %v2959, %v2964
        %v2969 = vmul.f32 %v2958, %v2965
        %v2970 = vmul.f32 %v2961, %v2966
        %v2971 = vadd.f32 %v2946, %v2967
        %v2972 = vadd.f32 %v2947, %v2968
        %v2973 = vadd.f32 %v2948, %v2969
        %v2974 = vadd.f32 %v2949, %v2970
        %2975 = vrot.lane.b32.xlu0 %v2811, 121
        %v2976 = vpop.permute.xlu0 %2975
        %2977 = vrot.lane.b32.xlu0 %v2810, 121
        %v2978 = vpop.permute.xlu0 %2977
        %2979 = vrot.lane.b32.xlu0 %v2809, 121
        %v2980 = vpop.permute.xlu0 %2979
        %2981 = vrot.lane.b32.xlu0 %v2808, 121
        %v2982 = vpop.permute.xlu0 %2981
        %v2983 = vsel %vm486, %v2980, %v2982
        %v2984 = vsel %vm486, %v2978, %v2980
        %v2985 = vsel %vm486, %v2976, %v2978
        %v2986 = vsel %vm486, %v2982, %v2976
        %s2987 = scalar_lea.vmem [#allocation5], 3392
        %v2988 = vld [vmem:[%s2987] sm:$0xff]
        %v2989 = vld [vmem:[%s2987 + $0x8] sm:$0xff]
        %v2990 = vld [vmem:[%s2987 + $0x10] sm:$0xff]
        %v2991 = vld [vmem:[%s2987 + $0x18] sm:$0xff]
        %v2992 = vmul.f32 %v2985, %v2988
        %v2993 = vmul.f32 %v2984, %v2989
        %v2994 = vmul.f32 %v2983, %v2990
        %v2995 = vmul.f32 %v2986, %v2991
        %v2996 = vadd.f32 %v2971, %v2992
        %v2997 = vadd.f32 %v2972, %v2993
        %v2998 = vadd.f32 %v2973, %v2994
        %v2999 = vadd.f32 %v2974, %v2995
        %3000 = vrot.lane.b32.xlu0 %v2811, 120
        %v3001 = vpop.permute.xlu0 %3000
        %3002 = vrot.lane.b32.xlu0 %v2810, 120
        %v3003 = vpop.permute.xlu0 %3002
        %3004 = vrot.lane.b32.xlu0 %v2809, 120
        %v3005 = vpop.permute.xlu0 %3004
        %3006 = vrot.lane.b32.xlu0 %v2808, 120
        %v3007 = vpop.permute.xlu0 %3006
        %v3008 = vsel %vm512, %v3005, %v3007
        %v3009 = vsel %vm512, %v3003, %v3005
        %v3010 = vsel %vm512, %v3001, %v3003
        %v3011 = vsel %vm512, %v3007, %v3001
        %s3012 = scalar_lea.vmem [#allocation5], 3424
        %v3013 = vld [vmem:[%s3012] sm:$0xff]
        %v3014 = vld [vmem:[%s3012 + $0x8] sm:$0xff]
        %v3015 = vld [vmem:[%s3012 + $0x10] sm:$0xff]
        %v3016 = vld [vmem:[%s3012 + $0x18] sm:$0xff]
        %v3017 = vmul.f32 %v3010, %v3013
        %v3018 = vmul.f32 %v3009, %v3014
        %v3019 = vmul.f32 %v3008, %v3015
        %v3020 = vmul.f32 %v3011, %v3016
        %v3021 = vadd.f32 %v2996, %v3017
        %v3022 = vadd.f32 %v2997, %v3018
        %v3023 = vadd.f32 %v2998, %v3019
        %v3024 = vadd.f32 %v2999, %v3020
        %3025 = vrot.lane.b32.xlu0 %v2811, 119
        %v3026 = vpop.permute.xlu0 %3025
        %3027 = vrot.lane.b32.xlu0 %v2810, 119
        %v3028 = vpop.permute.xlu0 %3027
        %3029 = vrot.lane.b32.xlu0 %v2809, 119
        %v3030 = vpop.permute.xlu0 %3029
        %3031 = vrot.lane.b32.xlu0 %v2808, 119
        %v3032 = vpop.permute.xlu0 %3031
        %v3033 = vsel %vm538, %v3030, %v3032
        %v3034 = vsel %vm538, %v3028, %v3030
        %v3035 = vsel %vm538, %v3026, %v3028
        %v3036 = vsel %vm538, %v3032, %v3026
        %s3037 = scalar_lea.vmem [#allocation5], 3456
        %v3038 = vld [vmem:[%s3037] sm:$0xff]
        %v3039 = vld [vmem:[%s3037 + $0x8] sm:$0xff]
        %v3040 = vld [vmem:[%s3037 + $0x10] sm:$0xff]
        %v3041 = vld [vmem:[%s3037 + $0x18] sm:$0xff]
        %v3042 = vmul.f32 %v3035, %v3038
        %v3043 = vmul.f32 %v3034, %v3039
        %v3044 = vmul.f32 %v3033, %v3040
        %v3045 = vmul.f32 %v3036, %v3041
        %v3046 = vadd.f32 %v3021, %v3042
        %v3047 = vadd.f32 %v3022, %v3043
        %v3048 = vadd.f32 %v3023, %v3044
        %v3049 = vadd.f32 %v3024, %v3045
        %3050 = vrot.lane.b32.xlu0 %v2811, 118
        %v3051 = vpop.permute.xlu0 %3050
        %3052 = vrot.lane.b32.xlu0 %v2810, 118
        %v3053 = vpop.permute.xlu0 %3052
        %3054 = vrot.lane.b32.xlu0 %v2809, 118
        %v3055 = vpop.permute.xlu0 %3054
        %3056 = vrot.lane.b32.xlu0 %v2808, 118
        %v3057 = vpop.permute.xlu0 %3056
        %v3058 = vsel %vm564, %v3055, %v3057
        %v3059 = vsel %vm564, %v3053, %v3055
        %v3060 = vsel %vm564, %v3051, %v3053
        %v3061 = vsel %vm564, %v3057, %v3051
        %s3062 = scalar_lea.vmem [#allocation5], 3488
        %v3063 = vld [vmem:[%s3062] sm:$0xff]
        %v3064 = vld [vmem:[%s3062 + $0x8] sm:$0xff]
        %v3065 = vld [vmem:[%s3062 + $0x10] sm:$0xff]
        %v3066 = vld [vmem:[%s3062 + $0x18] sm:$0xff]
        %v3067 = vmul.f32 %v3060, %v3063
        %v3068 = vmul.f32 %v3059, %v3064
        %v3069 = vmul.f32 %v3058, %v3065
        %v3070 = vmul.f32 %v3061, %v3066
        %v3071 = vadd.f32 %v3046, %v3067
        %v3072 = vadd.f32 %v3047, %v3068
        %v3073 = vadd.f32 %v3048, %v3069
        %v3074 = vadd.f32 %v3049, %v3070
        %3075 = vrot.lane.b32.xlu0 %v310, 124
        %v3076 = vpop.permute.xlu0 %3075
        %3077 = vrot.lane.b32.xlu0 %v311, 124
        %v3078 = vpop.permute.xlu0 %3077
        %v3079 = vsel %vm408, %v3076, %v3078
        %v3080 = vsel %vm408, %v407, %v3076
        %v3081 = vsel %vm408, %v3078, %v401
        %s3082 = scalar_lea.vmem [#allocation5], 3520
        %v3083 = vld [vmem:[%s3082] sm:$0xff]
        %v3084 = vld [vmem:[%s3082 + $0x8] sm:$0xff]
        %v3085 = vld [vmem:[%s3082 + $0x10] sm:$0xff]
        %v3086 = vld [vmem:[%s3082 + $0x18] sm:$0xff]
        %v3087 = vmul.f32 %v409, %v3083
        %v3088 = vmul.f32 %v3080, %v3084
        %v3089 = vmul.f32 %v3079, %v3085
        %v3090 = vmul.f32 %v3081, %v3086
        %v3091 = vadd.f32 %v3071, %v3087
        %v3092 = vadd.f32 %v3072, %v3088
        %v3093 = vadd.f32 %v3073, %v3089
        %v3094 = vadd.f32 %v3074, %v3090
        %3095 = vrot.lane.b32.xlu0 %v409, 127
        %v3096 = vpop.permute.xlu0 %3095
        %3097 = vrot.lane.b32.xlu0 %v3080, 127
        %v3098 = vpop.permute.xlu0 %3097
        %3099 = vrot.lane.b32.xlu0 %v3079, 127
        %v3100 = vpop.permute.xlu0 %3099
        %3101 = vrot.lane.b32.xlu0 %v3081, 127
        %v3102 = vpop.permute.xlu0 %3101
        %v3103 = vsel %vm330, %v3100, %v3102
        %v3104 = vsel %vm330, %v3098, %v3100
        %v3105 = vsel %vm330, %v3096, %v3098
        %v3106 = vsel %vm330, %v3102, %v3096
        %s3107 = scalar_lea.vmem [#allocation5], 3552
        %v3108 = vld [vmem:[%s3107] sm:$0xff]
        %v3109 = vld [vmem:[%s3107 + $0x8] sm:$0xff]
        %v3110 = vld [vmem:[%s3107 + $0x10] sm:$0xff]
        %v3111 = vld [vmem:[%s3107 + $0x18] sm:$0xff]
        %v3112 = vmul.f32 %v3105, %v3108
        %v3113 = vmul.f32 %v3104, %v3109
        %v3114 = vmul.f32 %v3103, %v3110
        %v3115 = vmul.f32 %v3106, %v3111
        %v3116 = vadd.f32 %v3091, %v3112
        %v3117 = vadd.f32 %v3092, %v3113
        %v3118 = vadd.f32 %v3093, %v3114
        %v3119 = vadd.f32 %v3094, %v3115
        %3120 = vrot.lane.b32.xlu0 %v409, 126
        %v3121 = vpop.permute.xlu0 %3120
        %3122 = vrot.lane.b32.xlu0 %v3080, 126
        %v3123 = vpop.permute.xlu0 %3122
        %3124 = vrot.lane.b32.xlu0 %v3079, 126
        %v3125 = vpop.permute.xlu0 %3124
        %3126 = vrot.lane.b32.xlu0 %v3081, 126
        %v3127 = vpop.permute.xlu0 %3126
        %v3128 = vsel %vm356, %v3125, %v3127
        %v3129 = vsel %vm356, %v3123, %v3125
        %v3130 = vsel %vm356, %v3121, %v3123
        %v3131 = vsel %vm356, %v3127, %v3121
        %s3132 = scalar_lea.vmem [#allocation5], 3584
        %v3133 = vld [vmem:[%s3132] sm:$0xff]
        %v3134 = vld [vmem:[%s3132 + $0x8] sm:$0xff]
        %v3135 = vld [vmem:[%s3132 + $0x10] sm:$0xff]
        %v3136 = vld [vmem:[%s3132 + $0x18] sm:$0xff]
        %v3137 = vmul.f32 %v3130, %v3133
        %v3138 = vmul.f32 %v3129, %v3134
        %v3139 = vmul.f32 %v3128, %v3135
        %v3140 = vmul.f32 %v3131, %v3136
        %v3141 = vadd.f32 %v3116, %v3137
        %v3142 = vadd.f32 %v3117, %v3138
        %v3143 = vadd.f32 %v3118, %v3139
        %v3144 = vadd.f32 %v3119, %v3140
        %3145 = vrot.lane.b32.xlu0 %v409, 125
        %v3146 = vpop.permute.xlu0 %3145
        %3147 = vrot.lane.b32.xlu0 %v3080, 125
        %v3148 = vpop.permute.xlu0 %3147
        %3149 = vrot.lane.b32.xlu0 %v3079, 125
        %v3150 = vpop.permute.xlu0 %3149
        %3151 = vrot.lane.b32.xlu0 %v3081, 125
        %v3152 = vpop.permute.xlu0 %3151
        %v3153 = vsel %vm382, %v3150, %v3152
        %v3154 = vsel %vm382, %v3148, %v3150
        %v3155 = vsel %vm382, %v3146, %v3148
        %v3156 = vsel %vm382, %v3152, %v3146
        %s3157 = scalar_lea.vmem [#allocation5], 3616
        %v3158 = vld [vmem:[%s3157] sm:$0xff]
        %v3159 = vld [vmem:[%s3157 + $0x8] sm:$0xff]
        %v3160 = vld [vmem:[%s3157 + $0x10] sm:$0xff]
        %v3161 = vld [vmem:[%s3157 + $0x18] sm:$0xff]
        %v3162 = vmul.f32 %v3155, %v3158
        %v3163 = vmul.f32 %v3154, %v3159
        %v3164 = vmul.f32 %v3153, %v3160
        %v3165 = vmul.f32 %v3156, %v3161
        %v3166 = vadd.f32 %v3141, %v3162
        %v3167 = vadd.f32 %v3142, %v3163
        %v3168 = vadd.f32 %v3143, %v3164
        %v3169 = vadd.f32 %v3144, %v3165
        %3170 = vrot.lane.b32.xlu0 %v409, 124
        %v3171 = vpop.permute.xlu0 %3170
        %3172 = vrot.lane.b32.xlu0 %v3080, 124
        %v3173 = vpop.permute.xlu0 %3172
        %3174 = vrot.lane.b32.xlu0 %v3079, 124
        %v3175 = vpop.permute.xlu0 %3174
        %3176 = vrot.lane.b32.xlu0 %v3081, 124
        %v3177 = vpop.permute.xlu0 %3176
        %v3178 = vsel %vm408, %v3175, %v3177
        %v3179 = vsel %vm408, %v3173, %v3175
        %v3180 = vsel %vm408, %v3171, %v3173
        %v3181 = vsel %vm408, %v3177, %v3171
        %s3182 = scalar_lea.vmem [#allocation5], 3648
        %v3183 = vld [vmem:[%s3182] sm:$0xff]
        %v3184 = vld [vmem:[%s3182 + $0x8] sm:$0xff]
        %v3185 = vld [vmem:[%s3182 + $0x10] sm:$0xff]
        %v3186 = vld [vmem:[%s3182 + $0x18] sm:$0xff]
        %v3187 = vmul.f32 %v3180, %v3183
        %v3188 = vmul.f32 %v3179, %v3184
        %v3189 = vmul.f32 %v3178, %v3185
        %v3190 = vmul.f32 %v3181, %v3186
        %v3191 = vadd.f32 %v3166, %v3187
        %v3192 = vadd.f32 %v3167, %v3188
        %v3193 = vadd.f32 %v3168, %v3189
        %v3194 = vadd.f32 %v3169, %v3190
        %3195 = vrot.lane.b32.xlu0 %v409, 123
        %v3196 = vpop.permute.xlu0 %3195
        %3197 = vrot.lane.b32.xlu0 %v3080, 123
        %v3198 = vpop.permute.xlu0 %3197
        %3199 = vrot.lane.b32.xlu0 %v3079, 123
        %v3200 = vpop.permute.xlu0 %3199
        %3201 = vrot.lane.b32.xlu0 %v3081, 123
        %v3202 = vpop.permute.xlu0 %3201
        %v3203 = vsel %vm434, %v3200, %v3202
        %v3204 = vsel %vm434, %v3198, %v3200
        %v3205 = vsel %vm434, %v3196, %v3198
        %v3206 = vsel %vm434, %v3202, %v3196
        %s3207 = scalar_lea.vmem [#allocation5], 3680
        %v3208 = vld [vmem:[%s3207] sm:$0xff]
        %v3209 = vld [vmem:[%s3207 + $0x8] sm:$0xff]
        %v3210 = vld [vmem:[%s3207 + $0x10] sm:$0xff]
        %v3211 = vld [vmem:[%s3207 + $0x18] sm:$0xff]
        %v3212 = vmul.f32 %v3205, %v3208
        %v3213 = vmul.f32 %v3204, %v3209
        %v3214 = vmul.f32 %v3203, %v3210
        %v3215 = vmul.f32 %v3206, %v3211
        %v3216 = vadd.f32 %v3191, %v3212
        %v3217 = vadd.f32 %v3192, %v3213
        %v3218 = vadd.f32 %v3193, %v3214
        %v3219 = vadd.f32 %v3194, %v3215
        %3220 = vrot.lane.b32.xlu0 %v409, 122
        %v3221 = vpop.permute.xlu0 %3220
        %3222 = vrot.lane.b32.xlu0 %v3080, 122
        %v3223 = vpop.permute.xlu0 %3222
        %3224 = vrot.lane.b32.xlu0 %v3079, 122
        %v3225 = vpop.permute.xlu0 %3224
        %3226 = vrot.lane.b32.xlu0 %v3081, 122
        %v3227 = vpop.permute.xlu0 %3226
        %v3228 = vsel %vm460, %v3225, %v3227
        %v3229 = vsel %vm460, %v3223, %v3225
        %v3230 = vsel %vm460, %v3221, %v3223
        %v3231 = vsel %vm460, %v3227, %v3221
        %s3232 = scalar_lea.vmem [#allocation5], 3712
        %v3233 = vld [vmem:[%s3232] sm:$0xff]
        %v3234 = vld [vmem:[%s3232 + $0x8] sm:$0xff]
        %v3235 = vld [vmem:[%s3232 + $0x10] sm:$0xff]
        %v3236 = vld [vmem:[%s3232 + $0x18] sm:$0xff]
        %v3237 = vmul.f32 %v3230, %v3233
        %v3238 = vmul.f32 %v3229, %v3234
        %v3239 = vmul.f32 %v3228, %v3235
        %v3240 = vmul.f32 %v3231, %v3236
        %v3241 = vadd.f32 %v3216, %v3237
        %v3242 = vadd.f32 %v3217, %v3238
        %v3243 = vadd.f32 %v3218, %v3239
        %v3244 = vadd.f32 %v3219, %v3240
        %3245 = vrot.lane.b32.xlu0 %v409, 121
        %v3246 = vpop.permute.xlu0 %3245
        %3247 = vrot.lane.b32.xlu0 %v3080, 121
        %v3248 = vpop.permute.xlu0 %3247
        %3249 = vrot.lane.b32.xlu0 %v3079, 121
        %v3250 = vpop.permute.xlu0 %3249
        %3251 = vrot.lane.b32.xlu0 %v3081, 121
        %v3252 = vpop.permute.xlu0 %3251
        %v3253 = vsel %vm486, %v3250, %v3252
        %v3254 = vsel %vm486, %v3248, %v3250
        %v3255 = vsel %vm486, %v3246, %v3248
        %v3256 = vsel %vm486, %v3252, %v3246
        %s3257 = scalar_lea.vmem [#allocation5], 3744
        %v3258 = vld [vmem:[%s3257] sm:$0xff]
        %v3259 = vld [vmem:[%s3257 + $0x8] sm:$0xff]
        %v3260 = vld [vmem:[%s3257 + $0x10] sm:$0xff]
        %v3261 = vld [vmem:[%s3257 + $0x18] sm:$0xff]
        %v3262 = vmul.f32 %v3255, %v3258
        %v3263 = vmul.f32 %v3254, %v3259
        %v3264 = vmul.f32 %v3253, %v3260
        %v3265 = vmul.f32 %v3256, %v3261
        %v3266 = vadd.f32 %v3241, %v3262
        %v3267 = vadd.f32 %v3242, %v3263
        %v3268 = vadd.f32 %v3243, %v3264
        %v3269 = vadd.f32 %v3244, %v3265
        %3270 = vrot.lane.b32.xlu0 %v409, 120
        %v3271 = vpop.permute.xlu0 %3270
        %3272 = vrot.lane.b32.xlu0 %v3080, 120
        %v3273 = vpop.permute.xlu0 %3272
        %3274 = vrot.lane.b32.xlu0 %v3079, 120
        %v3275 = vpop.permute.xlu0 %3274
        %3276 = vrot.lane.b32.xlu0 %v3081, 120
        %v3277 = vpop.permute.xlu0 %3276
        %v3278 = vsel %vm512, %v3275, %v3277
        %v3279 = vsel %vm512, %v3273, %v3275
        %v3280 = vsel %vm512, %v3271, %v3273
        %v3281 = vsel %vm512, %v3277, %v3271
        %s3282 = scalar_lea.vmem [#allocation5], 3776
        %v3283 = vld [vmem:[%s3282] sm:$0xff]
        %v3284 = vld [vmem:[%s3282 + $0x8] sm:$0xff]
        %v3285 = vld [vmem:[%s3282 + $0x10] sm:$0xff]
        %v3286 = vld [vmem:[%s3282 + $0x18] sm:$0xff]
        %v3287 = vmul.f32 %v3280, %v3283
        %v3288 = vmul.f32 %v3279, %v3284
        %v3289 = vmul.f32 %v3278, %v3285
        %v3290 = vmul.f32 %v3281, %v3286
        %v3291 = vadd.f32 %v3266, %v3287
        %v3292 = vadd.f32 %v3267, %v3288
        %v3293 = vadd.f32 %v3268, %v3289
        %v3294 = vadd.f32 %v3269, %v3290
        %3295 = vrot.lane.b32.xlu0 %v409, 119
        %v3296 = vpop.permute.xlu0 %3295
        %3297 = vrot.lane.b32.xlu0 %v3080, 119
        %v3298 = vpop.permute.xlu0 %3297
        %3299 = vrot.lane.b32.xlu0 %v3079, 119
        %v3300 = vpop.permute.xlu0 %3299
        %3301 = vrot.lane.b32.xlu0 %v3081, 119
        %v3302 = vpop.permute.xlu0 %3301
        %v3303 = vsel %vm538, %v3300, %v3302
        %v3304 = vsel %vm538, %v3298, %v3300
        %v3305 = vsel %vm538, %v3296, %v3298
        %v3306 = vsel %vm538, %v3302, %v3296
        %s3307 = scalar_lea.vmem [#allocation5], 3808
        %v3308 = vld [vmem:[%s3307] sm:$0xff]
        %v3309 = vld [vmem:[%s3307 + $0x8] sm:$0xff]
        %v3310 = vld [vmem:[%s3307 + $0x10] sm:$0xff]
        %v3311 = vld [vmem:[%s3307 + $0x18] sm:$0xff]
        %v3312 = vmul.f32 %v3305, %v3308
        %v3313 = vmul.f32 %v3304, %v3309
        %v3314 = vmul.f32 %v3303, %v3310
        %v3315 = vmul.f32 %v3306, %v3311
        %v3316 = vadd.f32 %v3291, %v3312
        %v3317 = vadd.f32 %v3292, %v3313
        %v3318 = vadd.f32 %v3293, %v3314
        %v3319 = vadd.f32 %v3294, %v3315
        %3320 = vrot.lane.b32.xlu0 %v409, 118
        %v3321 = vpop.permute.xlu0 %3320
        %3322 = vrot.lane.b32.xlu0 %v3080, 118
        %v3323 = vpop.permute.xlu0 %3322
        %3324 = vrot.lane.b32.xlu0 %v3079, 118
        %v3325 = vpop.permute.xlu0 %3324
        %3326 = vrot.lane.b32.xlu0 %v3081, 118
        %v3327 = vpop.permute.xlu0 %3326
        %v3328 = vsel %vm564, %v3325, %v3327
        %v3329 = vsel %vm564, %v3323, %v3325
        %v3330 = vsel %vm564, %v3321, %v3323
        %v3331 = vsel %vm564, %v3327, %v3321
        %s3332 = scalar_lea.vmem [#allocation5], 3840
        %v3333 = vld [vmem:[%s3332] sm:$0xff]
        %v3334 = vld [vmem:[%s3332 + $0x8] sm:$0xff]
        %v3335 = vld [vmem:[%s3332 + $0x10] sm:$0xff]
        %v3336 = vld [vmem:[%s3332 + $0x18] sm:$0xff]
        %v3337 = vmul.f32 %v3330, %v3333
        %v3338 = vmul.f32 %v3329, %v3334
        %v3339 = vmul.f32 %v3328, %v3335
        %v3340 = vmul.f32 %v3331, %v3336
        %v3341 = vadd.f32 %v3316, %v3337
        %v3342 = vadd.f32 %v3317, %v3338
        %v3343 = vadd.f32 %v3318, %v3339
        %v3344 = vadd.f32 %v3319, %v3340
        %v3345 = vpack.c.bf16 %v3341, %v3341
        %v3346 = vpack.c.bf16 %v3342, %v3342
        %v3347 = vpack.c.bf16 %v3343, %v3343
        %v3348 = vpack.c.bf16 %v3344, %v3344
        %3350 = vset.pattern.permute.xlu0 0
        %3351 = vperm.xlu0 %3350, %v301
        %v3352 = vpop.permute.xlu0 %3351
        %3355 = vset.pattern.permute.xlu0 0
        %3356 = vperm.xlu0 %3355, %v302
        %v3357 = vpop.permute.xlu0 %3356
        %3360 = vset.pattern.permute.xlu0 0
        %3361 = vperm.xlu0 %3360, %v303
        %v3362 = vpop.permute.xlu0 %3361
        %3365 = vset.pattern.permute.xlu0 0
        %3366 = vperm.xlu0 %3365, %v304
        %v3367 = vpop.permute.xlu0 %3366
        %v3373 = vunpack.c.l.b16 %v296
        %v3374 = vunpack.c.l.b16 %v297
        %v3375 = vunpack.c.l.b16 %v298
        %v3376 = vunpack.c.l.b16 %v299
        %v3377 = vpack.c.b16 %v3374, %v3373
        %v3378 = vpack.c.b16 %v3376, %v3375
        %vm3379 = vcmask 64512
        %v3381 = vsel %vm3379, %v3377, 0
        %v3384 = vsel %vm3379, %v3378, 0
        %vm3386 = vcmask 1043456
        %v3388 = vsel %vm3386, %v3345, 0
        %v3391 = vsel %vm3386, %v3346, 0
        %v3394 = vsel %vm3386, %v3347, 0
        %v3397 = vsel %vm3386, %v3348, 0
        %3399 = vmatprep.subr.bf16.mxu0 %v3391
        %3400 = vmatpush1.bf16.msra.mxu0 %v3388
        %3401 = vmatprep.subr.bf16.mxu0 0
        %3402 = vmatpush1.bf16.msra.mxu0 0
        %3403 = vmatprep.subr.bf16.mxu0 0
        %3404 = vmatpush1.bf16.msra.mxu0 0
        %3405 = vmatprep.subr.bf16.mxu0 0
        %3406 = vmatpush1.bf16.msra.mxu0 0
        %3407 = vmatprep.subr.bf16.mxu0 0
        %3408 = vmatpush1.bf16.msra.mxu0 0
        %3409 = vmatprep.subr.bf16.mxu0 0
        %3410 = vmatpush1.bf16.msra.mxu0 0
        %3411 = vmatprep.subr.bf16.mxu0 0
        %3412 = vmatpush1.bf16.msra.mxu0 0
        %3413 = vmatprep.subr.bf16.mxu0 0
        %3414 = vmatpush1.bf16.msra.mxu0 0
        %3415 = vmatprep.subr.bf16.mxu0 0
        %3416 = vmatpush1.bf16.msra.mxu0 0
        %3417 = vmatprep.subr.bf16.mxu0 0
        %3418 = vmatpush1.bf16.msra.mxu0 0
        %3419 = vmatprep.subr.bf16.mxu0 0
        %3420 = vmatpush1.bf16.msra.mxu0 0
        %3421 = vmatprep.subr.bf16.mxu0 0
        %3422 = vmatpush1.bf16.msra.mxu0 0
        %3423 = vmatprep.subr.bf16.mxu0 0
        %3424 = vmatpush1.bf16.msra.mxu0 0
        %3425 = vmatprep.subr.bf16.mxu0 0
        %3426 = vmatpush1.bf16.msra.mxu0 0
        %3427 = vmatprep.subr.bf16.mxu0 0
        %3428 = vmatpush1.bf16.msra.mxu0 0
        %3429 = vmatprep.subr.bf16.mxu0 0
        %3430 = vmatpush1.bf16.msra.mxu0 0
        %3431 = vmatprep.mubr.bf16.mxu0 0
        %3432 = vmatmul.mubr.bf16.gmra.mrb[0].mxu0 %v3381
        %v3433 = vpop.f32.mrb[0].mxu0
        %v3434 = vadd.f32 %v3352, %v3433
        %v3435 = vpop.f32.mrb[0].mxu0
        %v3436 = vadd.f32 %v3352, %v3435
        %v3437 = vpop.f32.mrb[0].mxu0
        %v3438 = vadd.f32 %v3357, %v3437
        %v3439 = vpop.f32.mrb[0].mxu0
        %v3440 = vadd.f32 %v3357, %v3439
        %3441 = vmatprep.mubr.bf16.mxu0 0
        %3442 = vmatmul.mubr.bf16.gmra.mrb[0].mxu0 %v3384
        %v3443 = vpop.f32.mrb[0].mxu0
        %v3444 = vadd.f32 %v3362, %v3443
        %v3445 = vpop.f32.mrb[0].mxu0
        %v3446 = vadd.f32 %v3362, %v3445
        %v3447 = vpop.f32.mrb[0].mxu0
        %v3448 = vadd.f32 %v3367, %v3447
        %v3449 = vpop.f32.mrb[0].mxu0
        %v3450 = vadd.f32 %v3367, %v3449
        %3451 = vdwg.mxu0
        %3452 = vmatprep.subr.bf16.mxu0 %v3397
        %3453 = vmatpush1.bf16.msra.mxu0 %v3394
        %3454 = vmatprep.subr.bf16.mxu0 0
        %3455 = vmatpush1.bf16.msra.mxu0 0
        %3456 = vmatprep.subr.bf16.mxu0 0
        %3457 = vmatpush1.bf16.msra.mxu0 0
        %3458 = vmatprep.subr.bf16.mxu0 0
        %3459 = vmatpush1.bf16.msra.mxu0 0
        %3460 = vmatprep.subr.bf16.mxu0 0
        %3461 = vmatpush1.bf16.msra.mxu0 0
        %3462 = vmatprep.subr.bf16.mxu0 0
        %3463 = vmatpush1.bf16.msra.mxu0 0
        %3464 = vmatprep.subr.bf16.mxu0 0
        %3465 = vmatpush1.bf16.msra.mxu0 0
        %3466 = vmatprep.subr.bf16.mxu0 0
        %3467 = vmatpush1.bf16.msra.mxu0 0
        %3468 = vmatprep.subr.bf16.mxu0 0
        %3469 = vmatpush1.bf16.msra.mxu0 0
        %3470 = vmatprep.subr.bf16.mxu0 0
        %3471 = vmatpush1.bf16.msra.mxu0 0
        %3472 = vmatprep.subr.bf16.mxu0 0
        %3473 = vmatpush1.bf16.msra.mxu0 0
        %3474 = vmatprep.subr.bf16.mxu0 0
        %3475 = vmatpush1.bf16.msra.mxu0 0
        %3476 = vmatprep.subr.bf16.mxu0 0
        %3477 = vmatpush1.bf16.msra.mxu0 0
        %3478 = vmatprep.subr.bf16.mxu0 0
        %3479 = vmatpush1.bf16.msra.mxu0 0
        %3480 = vmatprep.subr.bf16.mxu0 0
        %3481 = vmatpush1.bf16.msra.mxu0 0
        %3482 = vmatprep.subr.bf16.mxu0 0
        %3483 = vmatpush1.bf16.msra.mxu0 0
        %3484 = vmatprep.mubr.bf16.mxu0 0
        %3485 = vmatmul.mubr.bf16.gmra.mrb[0].mxu0 %v3381
        %v3486 = vpop.f32.mrb[0].mxu0
        %v3487 = vadd.f32 %v3352, %v3486
        %v3488 = vpop.f32.mrb[0].mxu0
        %v3489 = vadd.f32 %v3352, %v3488
        %v3490 = vpop.f32.mrb[0].mxu0
        %v3491 = vadd.f32 %v3357, %v3490
        %v3492 = vpop.f32.mrb[0].mxu0
        %v3493 = vadd.f32 %v3357, %v3492
        %3494 = vmatprep.mubr.bf16.mxu0 0
        %3495 = vmatmul.mubr.bf16.gmra.mrb[0].mxu0 %v3384
        %v3496 = vpop.f32.mrb[0].mxu0
        %v3497 = vadd.f32 %v3362, %v3496
        %v3498 = vpop.f32.mrb[0].mxu0
        %v3499 = vadd.f32 %v3362, %v3498
        %v3500 = vpop.f32.mrb[0].mxu0
        %v3501 = vadd.f32 %v3367, %v3500
        %v3502 = vpop.f32.mrb[0].mxu0
        %v3503 = vadd.f32 %v3367, %v3502
        %3504 = vdwg.mxu0
        %v3505 = vmax.f32 %v3434, 0.0
        %v3506 = vmax.f32 %v3436, 0.0
        %v3507 = vmax.f32 %v3487, 0.0
        %v3508 = vmax.f32 %v3489, 0.0
        %v3509 = vmax.f32 %v3438, 0.0
        %v3510 = vmax.f32 %v3440, 0.0
        %v3511 = vmax.f32 %v3491, 0.0
        %v3512 = vmax.f32 %v3493, 0.0
        %v3513 = vmax.f32 %v3444, 0.0
        %v3514 = vmax.f32 %v3446, 0.0
        %v3515 = vmax.f32 %v3497, 0.0
        %v3516 = vmax.f32 %v3499, 0.0
        %v3517 = vmax.f32 %v3448, 0.0
        %v3518 = vmax.f32 %v3450, 0.0
        %v3519 = vmax.f32 %v3501, 0.0
        %v3520 = vmax.f32 %v3503, 0.0
        %v3521 = vpack.c.bf16 %v3509, %v3505
        %v3522 = vpack.c.bf16 %v3510, %v3506
        %v3523 = vpack.c.bf16 %v3511, %v3507
        %v3524 = vpack.c.bf16 %v3512, %v3508
        %v3525 = vpack.c.bf16 %v3517, %v3513
        %v3526 = vpack.c.bf16 %v3518, %v3514
        %v3527 = vpack.c.bf16 %v3519, %v3515
        %v3528 = vpack.c.bf16 %v3520, %v3516
        %3530 = vset.pattern.permute.xlu0 0
        %3531 = vperm.xlu0 %3530, %v305
        %v3532 = vpop.permute.xlu0 %3531
        %vm3534 = vcmask 261120
        %v3536 = vsel %vm3534, %v300, 0
        %3538 = vmatprep.subr.bf16.mxu0 %v3522
        %3539 = vmatpush1.bf16.msra.mxu0 %v3521
        %3540 = vmatprep.subr.bf16.mxu0 %v3526
        %3541 = vmatpush1.bf16.msra.mxu0 %v3525
        %3542 = vmatprep.subr.bf16.mxu0 0
        %3543 = vmatpush1.bf16.msra.mxu0 0
        %3544 = vmatprep.subr.bf16.mxu0 0
        %3545 = vmatpush1.bf16.msra.mxu0 0
        %3546 = vmatprep.subr.bf16.mxu0 0
        %3547 = vmatpush1.bf16.msra.mxu0 0
        %3548 = vmatprep.subr.bf16.mxu0 0
        %3549 = vmatpush1.bf16.msra.mxu0 0
        %3550 = vmatprep.subr.bf16.mxu0 0
        %3551 = vmatpush1.bf16.msra.mxu0 0
        %3552 = vmatprep.subr.bf16.mxu0 0
        %3553 = vmatpush1.bf16.msra.mxu0 0
        %3554 = vmatprep.subr.bf16.mxu0 0
        %3555 = vmatpush1.bf16.msra.mxu0 0
        %3556 = vmatprep.subr.bf16.mxu0 0
        %3557 = vmatpush1.bf16.msra.mxu0 0
        %3558 = vmatprep.subr.bf16.mxu0 0
        %3559 = vmatpush1.bf16.msra.mxu0 0
        %3560 = vmatprep.subr.bf16.mxu0 0
        %3561 = vmatpush1.bf16.msra.mxu0 0
        %3562 = vmatprep.subr.bf16.mxu0 0
        %3563 = vmatpush1.bf16.msra.mxu0 0
        %3564 = vmatprep.subr.bf16.mxu0 0
        %3565 = vmatpush1.bf16.msra.mxu0 0
        %3566 = vmatprep.subr.bf16.mxu0 0
        %3567 = vmatpush1.bf16.msra.mxu0 0
        %3568 = vmatprep.subr.bf16.mxu0 0
        %3569 = vmatpush1.bf16.msra.mxu0 0
        %3570 = vmatprep.mubr.bf16.mxu0 0
        %3571 = vmatmul.mubr.bf16.gmra.mrb[0].mxu0 %v3536
        %v3572 = vpop.f32.mrb[0].mxu0
        %v3573 = vadd.f32 %v3532, %v3572
        %v3574 = vpop.f32.mrb[0].mxu0
        %v3575 = vadd.f32 %v3532, %v3574
        %v3576 = vpop.f32.mrb[0].mxu0
        %v3577 = vpop.f32.mrb[0].mxu0
        %3578 = vdwg.mxu0
        %3579 = vmatprep.subr.bf16.mxu0 %v3524
        %3580 = vmatpush1.bf16.msra.mxu0 %v3523
        %3581 = vmatprep.subr.bf16.mxu0 %v3528
        %3582 = vmatpush1.bf16.msra.mxu0 %v3527
        %3583 = vmatprep.subr.bf16.mxu0 0
        %3584 = vmatpush1.bf16.msra.mxu0 0
        %3585 = vmatprep.subr.bf16.mxu0 0
        %3586 = vmatpush1.bf16.msra.mxu0 0
        %3587 = vmatprep.subr.bf16.mxu0 0
        %3588 = vmatpush1.bf16.msra.mxu0 0
        %3589 = vmatprep.subr.bf16.mxu0 0
        %3590 = vmatpush1.bf16.msra.mxu0 0
        %3591 = vmatprep.subr.bf16.mxu0 0
        %3592 = vmatpush1.bf16.msra.mxu0 0
        %3593 = vmatprep.subr.bf16.mxu0 0
        %3594 = vmatpush1.bf16.msra.mxu0 0
        %3595 = vmatprep.subr.bf16.mxu0 0
        %3596 = vmatpush1.bf16.msra.mxu0 0
        %3597 = vmatprep.subr.bf16.mxu0 0
        %3598 = vmatpush1.bf16.msra.mxu0 0
        %3599 = vmatprep.subr.bf16.mxu0 0
        %3600 = vmatpush1.bf16.msra.mxu0 0
        %3601 = vmatprep.subr.bf16.mxu0 0
        %3602 = vmatpush1.bf16.msra.mxu0 0
        %3603 = vmatprep.subr.bf16.mxu0 0
        %3604 = vmatpush1.bf16.msra.mxu0 0
        %3605 = vmatprep.subr.bf16.mxu0 0
        %3606 = vmatpush1.bf16.msra.mxu0 0
        %3607 = vmatprep.subr.bf16.mxu0 0
        %3608 = vmatpush1.bf16.msra.mxu0 0
        %3609 = vmatprep.subr.bf16.mxu0 0
        %3610 = vmatpush1.bf16.msra.mxu0 0
        %3611 = vmatprep.mubr.bf16.mxu0 0
        %3612 = vmatmul.mubr.bf16.gmra.mrb[0].mxu0 %v3536
        %v3613 = vpop.f32.mrb[0].mxu0
        %v3614 = vadd.f32 %v3532, %v3613
        %v3615 = vpop.f32.mrb[0].mxu0
        %v3616 = vadd.f32 %v3532, %v3615
        %v3617 = vpop.f32.mrb[0].mxu0
        %v3618 = vpop.f32.mrb[0].mxu0
        %3619 = vdwg.mxu0
        %v3620 = vadd.f32 %v3573, %v1823
        %v3621 = vadd.f32 %v3575, %v1822
        %v3622 = vadd.f32 %v3614, %v1821
        %v3623 = vadd.f32 %v3616, %v1824
        %3624 = vst [vmem:[%s294] sm:$0xff] %v3620
        %3625 = vst [vmem:[%s294 + $0x8] sm:$0xff] %v3621
        %3626 = vst [vmem:[%s294 + $0x10] sm:$0xff] %v3622
        %3627 = vst [vmem:[%s294 + $0x18] sm:$0xff] %v3623
        %s3628 = sand.u32 %s163, 1
        %s3629 = scalar_lea.sflag [#allocation4], %s3628
        %s3630 = sand.u32 %s163, 1
        %s3631 = smul.addr %s3630, 32
        %s3632 = scalar_lea.vmem [#allocation8], %s3631
        // Predicated region
        $region57: #{tpu_custom_call.1} parent=43 // pred_check
          %p3633 = pneg %p173
        $region58: #{tpu_custom_call.1} parent=43 // pred_check_branch
          %3635 = sbr.rel (%p3633) target = $region60
        $region59: #{tpu_custom_call.1} parent=43 // pred_region
          %s3637 = ssub.s32 512, 512
          %3638 = vsyncadd %s3629, %s3637
          %s3639 = smul.addr %s24, 4
          %s3640 = smul.addr %s3639, 128
          %s3641 = scalar_lea.hbm %s6, %s3640
          %s3643 = sshll.u32 %s3632, 4
          %s3644 = int_to_ptr.vmem [resolvable:$true] %s3643
          %3646 = dma.vmem_to_hbm [thread:$0]  %s3644, 512, %s3641, %s3629
        $region60: #{tpu_custom_call.1} parent=43 // pred_fallthru
          _
      $region44: #{tpu_custom_call.1} parent=5 // pred_fallthru
        _
      %p3647 = scmp.le.s32.totalorder 2, %s19
      // Predicated region
      $region61: #{tpu_custom_call.1} parent=5 // pred_check
        %p3648 = pneg %p3647
      $region62: #{tpu_custom_call.1} parent=5 // pred_check_branch
        %3650 = sbr.rel (%p3648) target = $region64
      $region63: #{tpu_custom_call.1} parent=5 // pred_region
        %s3651 = ssub.s32 %s19, 2
        // Predicated region
        $region65: #{tpu_custom_call.1} parent=63 // pred_check
          %p3652 = pneg %p179
        $region66: #{tpu_custom_call.1} parent=63 // pred_check_branch
          %3654 = sbr.rel (%p3652) target = $region68
        $region67: #{tpu_custom_call.1} parent=63 // pred_region
          %s3655 = sand.u32 %s164, 1
          %s3656 = scalar_lea.sflag [#allocation4], %s3655
          %s3657 = sand.u32 %s164, 1
          %s3658 = smul.addr %s3657, 32
          %s3659 = scalar_lea.vmem [#allocation8], %s3658
          %3660 = dma.done %s3656, 512
        $region68: #{tpu_custom_call.1} parent=63 // pred_fallthru
          _
      $region64: #{tpu_custom_call.1} parent=5 // pred_fallthru
        _
    $region6: #{tpu_custom_call.1} parent=1 // loop_footer
      %s23 = sadd.s32 1, %s19
    $region7: #{tpu_custom_call.1} parent=1 // loop_footer_branch
      %18 = sbr.rel target = $region3
    $region8: #{tpu_custom_call.1} parent=1 // loop_exit
      _
    %3661 = vsyncpa [#allocation3], 1
    %s3662 = scalar_lea.sflag [#allocation3], 1
    %3663 = vsyncpa %s3662, 1
    %3664 = vsyncpa [#allocation6], 1
    %3665 = vsyncpa [#allocation4], 1
    %s3666 = scalar_lea.sflag [#allocation4], 1
    %3667 = vsyncpa %s3666, 1

</llo_original>
